<compile_context>
chip_gen: v5e
topology: v5e:2x2
jax: 0.10.0
libtpu: 0.0.40
codegen_flags: <defaults>
</compile_context>

<pallas_src>
import functools

import jax
import jax.numpy as jnp
from jax.experimental import pallas as pl
from jax.experimental.pallas import tpu as pltpu


def _choose_tile_c(c, hw, max_block_bytes=2 << 20):
    """Largest multiple-of-8 divisor of c with block f32 bytes <= cap (<=1024)."""
    if c % 8 != 0:
        return c  # full-channel block is always a legal block shape
    budget_rows = max(8, max_block_bytes // (4 * max(hw, 1)))
    best = 8
    t = 8
    upper = min(c, 1024, budget_rows)
    while t <= upper:
        if c % t == 0:
            best = t
        t += 8
    return best


def _bn_stats_kernel(x_ref, g_ref, b_ref, scale_ref, shift_ref,
                     sum_acc, sq_acc, *, eps, inv_count):
    """Accumulate per-channel sum / sum_sq over the N grid axis, then emit
    fused scale/shift at the last step.

    x_ref:     (1, tile_c, HW)
    g_ref/b_ref/scale_ref/shift_ref/sum_acc/sq_acc: (tile_c, 1)
    """
    ni = pl.program_id(1)

    @pl.when(ni == 0)
    def _init():
        sum_acc[...] = jnp.zeros_like(sum_acc)
        sq_acc[...] = jnp.zeros_like(sq_acc)

    x = x_ref[...].astype(jnp.float32)                       # (1, tile_c, HW)
    sum_acc[...] += jnp.sum(x, axis=(0, 2), keepdims=True)[0]        # (tile_c,1)
    sq_acc[...] += jnp.sum(x * x, axis=(0, 2), keepdims=True)[0]     # (tile_c,1)

    @pl.when(ni == pl.num_programs(1) - 1)
    def _finalize():
        mean = sum_acc[...] * inv_count
        var = jnp.maximum(sq_acc[...] * inv_count - mean * mean, 0.0)
        scale = g_ref[...].astype(jnp.float32) * jax.lax.rsqrt(var + eps)
        scale_ref[...] = scale
        shift_ref[...] = b_ref[...].astype(jnp.float32) - mean * scale


def _bn_apply_kernel(x_ref, scale_ref, shift_ref, o_ref):
    """y = x * scale + shift, broadcasting (tile_c,1) over the lane (HW) axis."""
    x = x_ref[...].astype(jnp.float32)                       # (1, tile_c, HW)
    y = x * scale_ref[...][None] + shift_ref[...][None]
    o_ref[...] = y.astype(o_ref.dtype)


def batchnorm2d_train(x_nchw, gamma, beta, *, eps=1e-3):
    """BatchNorm2d forward with training-mode (batch) statistics.

    x_nchw: (N, C, H, W);  gamma, beta: (C,)
    """
    n, c, h, w = x_nchw.shape
    hw = h * w

    # Native-layout view: contiguous reshape, no data movement.
    x3 = x_nchw.reshape(n, c, hw)

    tile_c = _choose_tile_c(c, hw)
    pad = (-c) % tile_c
    if pad:
        # Zero-padded channels: var=0, eps>0 keeps rsqrt finite; sliced off below.
        x3 = jnp.pad(x3, ((0, 0), (0, pad), (0, 0)))
        gamma = jnp.pad(gamma, (0, pad))
        beta = jnp.pad(beta, (0, pad))
    cp = c + pad
    num_ct = cp // tile_c

    g2 = gamma.reshape(cp, 1).astype(jnp.float32)
    b2 = beta.reshape(cp, 1).astype(jnp.float32)
    inv_count = 1.0 / float(n * hw)

    # ---- Pass 1: per-channel statistics -> fused (scale, shift) ----
    scale, shift = pl.pallas_call(
        functools.partial(_bn_stats_kernel, eps=float(eps), inv_count=inv_count),
        out_shape=(jax.ShapeDtypeStruct((cp, 1), jnp.float32),
                   jax.ShapeDtypeStruct((cp, 1), jnp.float32)),
        grid_spec=pltpu.PrefetchScalarGridSpec(
            num_scalar_prefetch=0,
            grid=(num_ct, n),
            in_specs=[
                pl.BlockSpec((1, tile_c, hw), lambda ci, ni: (ni, ci, 0)),
                pl.BlockSpec((tile_c, 1), lambda ci, ni: (ci, 0)),
                pl.BlockSpec((tile_c, 1), lambda ci, ni: (ci, 0)),
            ],
            out_specs=[
                pl.BlockSpec((tile_c, 1), lambda ci, ni: (ci, 0)),
                pl.BlockSpec((tile_c, 1), lambda ci, ni: (ci, 0)),
            ],
            scratch_shapes=[pltpu.VMEM((tile_c, 1), jnp.float32),
                            pltpu.VMEM((tile_c, 1), jnp.float32)],
        ),
        compiler_params=pltpu.CompilerParams(
            dimension_semantics=("parallel", "arbitrary")),
    )(x3, g2, b2)

    # ---- Pass 2: elementwise normalize (y = x*scale + shift) ----
    out3 = pl.pallas_call(
        _bn_apply_kernel,
        out_shape=jax.ShapeDtypeStruct((n, cp, hw), x_nchw.dtype),
        grid_spec=pltpu.PrefetchScalarGridSpec(
            num_scalar_prefetch=0,
            grid=(num_ct, n),
            in_specs=[
                pl.BlockSpec((1, tile_c, hw), lambda ci, ni: (ni, ci, 0)),
                pl.BlockSpec((tile_c, 1), lambda ci, ni: (ci, 0)),
                pl.BlockSpec((tile_c, 1), lambda ci, ni: (ci, 0)),
            ],
            out_specs=pl.BlockSpec((1, tile_c, hw), lambda ci, ni: (ni, ci, 0)),
        ),
        compiler_params=pltpu.CompilerParams(
            dimension_semantics=("parallel", "parallel")),
    )(x3, scale, shift)

    if pad:
        out3 = out3[:, :c, :]
    return out3.reshape(n, c, h, w)


def _reference_bn_train(x_nchw, gamma, beta, eps):
    mean = jnp.mean(x_nchw, axis=(0, 2, 3), keepdims=True)
    var = jnp.mean((x_nchw - mean) ** 2, axis=(0, 2, 3), keepdims=True)
    g = gamma.reshape(1, -1, 1, 1)
    b = beta.reshape(1, -1, 1, 1)
    return (x_nchw - mean) * jax.lax.rsqrt(var + eps) * g + b


if __name__ == "__main__":
    # Shapes from the module's forward: x669 is (1, 3456, 7, 7), eps=0.001.
    N, C, H, W = 1, 3456, 7, 7
    EPS = 1e-3

    key = jax.random.PRNGKey(0)
    kx, kg, kb = jax.random.split(key, 3)
    x = jax.random.normal(kx, (N, C, H, W), dtype=jnp.float32)
    gamma = 1.0 + 0.1 * jax.random.normal(kg, (C,), dtype=jnp.float32)
    beta = 0.1 * jax.random.normal(kb, (C,), dtype=jnp.float32)

    out = batchnorm2d_train(x, gamma, beta, eps=EPS)
    out = jax.block_until_ready(out)

    ref = _reference_bn_train(x, gamma, beta, EPS)
    assert out.shape == (N, C, H, W)
    assert jnp.allclose(out, ref, atol=1e-4, rtol=1e-4), "mismatch vs reference"

    print("KERNEL_OK")
</pallas_src>

<mosaic_0001>
module attributes {stable_mosaic.version = 11 : i64} {
  func.func @_bn_stats_kernel(%arg0: i32, %arg1: i32, %arg2: memref<1x864x49xf32, #tpu.memory_space<vmem>>, %arg3: memref<864x1xf32, #tpu.memory_space<vmem>>, %arg4: memref<864x1xf32, #tpu.memory_space<vmem>>, %arg5: memref<864x1xf32, #tpu.memory_space<vmem>>, %arg6: memref<864x1xf32, #tpu.memory_space<vmem>>, %arg7: memref<864x1xf32, #tpu.memory_space<vmem>>, %arg8: memref<864x1xf32, #tpu.memory_space<vmem>>) attributes {dimension_semantics = [#tpu.dimension_semantics<parallel>, #tpu.dimension_semantics<arbitrary>], iteration_bounds = array<i64: 4, 1>, scalar_prefetch = 0 : i64, scratch_operands = 2 : i64, tpu.core_type = #tpu.core_type<tc>, window_params = [{transform_indices = @transform_0, window_bounds = array<i64: 1, 864, 49>}, {transform_indices = @transform_1, window_bounds = array<i64: 864, 1>}, {transform_indices = @transform_2, window_bounds = array<i64: 864, 1>}, {transform_indices = @transform_3, window_bounds = array<i64: 864, 1>}, {transform_indices = @transform_4, window_bounds = array<i64: 864, 1>}]} {
    %c0_i32 = arith.constant 0 : i32
    %0 = arith.cmpi eq, %arg1, %c0_i32 : i32
    %1 = arith.extui %0 : i1 to i32
    %c0_i32_0 = arith.constant 0 : i32
    %2 = arith.cmpi ne, %1, %c0_i32_0 : i32
    scf.if %2 {
      %cst_14 = arith.constant 0.000000e+00 : f32
      %20 = vector.broadcast %cst_14 : f32 to vector<864x1xf32>
      %c0_15 = arith.constant 0 : index
      %c0_16 = arith.constant 0 : index
      %21 = vector.load %arg7[%c0_15, %c0_16] : memref<864x1xf32, #tpu.memory_space<vmem>>, vector<864x1xf32>
      tpu.vector_store %arg7[%c0_15, %c0_16], %20 {strides = array<i32>} : memref<864x1xf32, #tpu.memory_space<vmem>>, vector<864x1xf32>,
      %cst_17 = arith.constant 0.000000e+00 : f32
      %22 = vector.broadcast %cst_17 : f32 to vector<864x1xf32>
      %c0_18 = arith.constant 0 : index
      %c0_19 = arith.constant 0 : index
      %23 = vector.load %arg8[%c0_18, %c0_19] : memref<864x1xf32, #tpu.memory_space<vmem>>, vector<864x1xf32>
      tpu.vector_store %arg8[%c0_18, %c0_19], %22 {strides = array<i32>} : memref<864x1xf32, #tpu.memory_space<vmem>>, vector<864x1xf32>,
    } else {
    }
    %c0 = arith.constant 0 : index
    %c0_1 = arith.constant 0 : index
    %c0_2 = arith.constant 0 : index
    %3 = vector.load %arg2[%c0, %c0_1, %c0_2] : memref<1x864x49xf32, #tpu.memory_space<vmem>>, vector<1x864x49xf32>
    %c0_3 = arith.constant 0 : index
    %c0_4 = arith.constant 0 : index
    %4 = vector.load %arg7[%c0_3, %c0_4] : memref<864x1xf32, #tpu.memory_space<vmem>>, vector<864x1xf32>
    %cst = arith.constant dense<0.000000e+00> : vector<864xf32>
    %5 = vector.multi_reduction <add>, %3, %cst [0, 2] : vector<1x864x49xf32> to vector<864xf32>
    %6 = vector.shape_cast %5 : vector<864xf32> to vector<1x864x1xf32>
    %7 = vector.shape_cast %6 : vector<1x864x1xf32> to vector<864x1xf32>
    %8 = arith.addf %4, %7 : vector<864x1xf32>
    %c0_5 = arith.constant 0 : index
    %c0_6 = arith.constant 0 : index
    %9 = vector.load %arg7[%c0_5, %c0_6] : memref<864x1xf32, #tpu.memory_space<vmem>>, vector<864x1xf32>
    tpu.vector_store %arg7[%c0_5, %c0_6], %8 {strides = array<i32>} : memref<864x1xf32, #tpu.memory_space<vmem>>, vector<864x1xf32>,
    %c0_7 = arith.constant 0 : index
    %c0_8 = arith.constant 0 : index
    %10 = vector.load %arg8[%c0_7, %c0_8] : memref<864x1xf32, #tpu.memory_space<vmem>>, vector<864x1xf32>
    %11 = arith.mulf %3, %3 : vector<1x864x49xf32>
    %cst_9 = arith.constant dense<0.000000e+00> : vector<864xf32>
    %12 = vector.multi_reduction <add>, %11, %cst_9 [0, 2] : vector<1x864x49xf32> to vector<864xf32>
    %13 = vector.shape_cast %12 : vector<864xf32> to vector<1x864x1xf32>
    %14 = vector.shape_cast %13 : vector<1x864x1xf32> to vector<864x1xf32>
    %15 = arith.addf %10, %14 : vector<864x1xf32>
    %c0_10 = arith.constant 0 : index
    %c0_11 = arith.constant 0 : index
    %16 = vector.load %arg8[%c0_10, %c0_11] : memref<864x1xf32, #tpu.memory_space<vmem>>, vector<864x1xf32>
    tpu.vector_store %arg8[%c0_10, %c0_11], %15 {strides = array<i32>} : memref<864x1xf32, #tpu.memory_space<vmem>>, vector<864x1xf32>,
    %c0_i32_12 = arith.constant 0 : i32
    %17 = arith.cmpi eq, %arg1, %c0_i32_12 : i32
    %18 = arith.extui %17 : i1 to i32
    %c0_i32_13 = arith.constant 0 : i32
    %19 = arith.cmpi ne, %18, %c0_i32_13 : i32
    scf.if %19 {
      %c0_14 = arith.constant 0 : index
      %c0_15 = arith.constant 0 : index
      %20 = vector.load %arg7[%c0_14, %c0_15] : memref<864x1xf32, #tpu.memory_space<vmem>>, vector<864x1xf32>
      %cst_16 = arith.constant 0.0204081628 : f32
      %21 = vector.broadcast %cst_16 : f32 to vector<864x1xf32>
      %22 = arith.mulf %20, %21 : vector<864x1xf32>
      %c0_17 = arith.constant 0 : index
      %c0_18 = arith.constant 0 : index
      %23 = vector.load %arg8[%c0_17, %c0_18] : memref<864x1xf32, #tpu.memory_space<vmem>>, vector<864x1xf32>
      %cst_19 = arith.constant 0.0204081628 : f32
      %24 = vector.broadcast %cst_19 : f32 to vector<864x1xf32>
      %25 = arith.mulf %23, %24 : vector<864x1xf32>
      %26 = arith.mulf %22, %22 : vector<864x1xf32>
      %27 = arith.subf %25, %26 : vector<864x1xf32>
      %cst_20 = arith.constant 0.000000e+00 : f32
      %28 = vector.broadcast %cst_20 : f32 to vector<864x1xf32>
      %29 = arith.maximumf %27, %28 : vector<864x1xf32>
      %c0_21 = arith.constant 0 : index
      %c0_22 = arith.constant 0 : index
      %30 = vector.load %arg3[%c0_21, %c0_22] : memref<864x1xf32, #tpu.memory_space<vmem>>, vector<864x1xf32>
      %cst_23 = arith.constant 1.000000e-03 : f32
      %31 = vector.broadcast %cst_23 : f32 to vector<864x1xf32>
      %32 = arith.addf %29, %31 : vector<864x1xf32>
      %33 = math.rsqrt %32 : vector<864x1xf32>
      %34 = arith.mulf %30, %33 : vector<864x1xf32>
      %c0_24 = arith.constant 0 : index
      %c0_25 = arith.constant 0 : index
      %35 = vector.load %arg5[%c0_24, %c0_25] : memref<864x1xf32, #tpu.memory_space<vmem>>, vector<864x1xf32>
      tpu.vector_store %arg5[%c0_24, %c0_25], %34 {strides = array<i32>} : memref<864x1xf32, #tpu.memory_space<vmem>>, vector<864x1xf32>,
      %c0_26 = arith.constant 0 : index
      %c0_27 = arith.constant 0 : index
      %36 = vector.load %arg4[%c0_26, %c0_27] : memref<864x1xf32, #tpu.memory_space<vmem>>, vector<864x1xf32>
      %37 = arith.mulf %22, %34 : vector<864x1xf32>
      %38 = arith.subf %36, %37 : vector<864x1xf32>
      %c0_28 = arith.constant 0 : index
      %c0_29 = arith.constant 0 : index
      %39 = vector.load %arg6[%c0_28, %c0_29] : memref<864x1xf32, #tpu.memory_space<vmem>>, vector<864x1xf32>
      tpu.vector_store %arg6[%c0_28, %c0_29], %38 {strides = array<i32>} : memref<864x1xf32, #tpu.memory_space<vmem>>, vector<864x1xf32>,
    } else {
    }
    return
  }
  func.func @transform_0(%arg0: i32, %arg1: i32) -> (i32, i32, i32) {
    %c0_i32 = arith.constant 0 : i32
    %c0_i32_0 = arith.constant 0 : i32
    return %arg1, %arg0, %c0_i32 : i32, i32, i32
  }
  func.func @transform_1(%arg0: i32, %arg1: i32) -> (i32, i32) {
    %c0_i32 = arith.constant 0 : i32
    %c0_i32_0 = arith.constant 0 : i32
    return %arg0, %c0_i32 : i32, i32
  }
  func.func @transform_2(%arg0: i32, %arg1: i32) -> (i32, i32) {
    %c0_i32 = arith.constant 0 : i32
    %c0_i32_0 = arith.constant 0 : i32
    return %arg0, %c0_i32 : i32, i32
  }
  func.func @transform_3(%arg0: i32, %arg1: i32) -> (i32, i32) {
    %c0_i32 = arith.constant 0 : i32
    %c0_i32_0 = arith.constant 0 : i32
    return %arg0, %c0_i32 : i32, i32
  }
  func.func @transform_4(%arg0: i32, %arg1: i32) -> (i32, i32) {
    %c0_i32 = arith.constant 0 : i32
    %c0_i32_0 = arith.constant 0 : i32
    return %arg0, %c0_i32 : i32, i32
  }
}

</mosaic_0001>

<llo_original>
// kernel: tpu_custom_call.1
$region0: #{tpu_custom_call.1}
  #allocation0 [shape = 'u32[]', space=smem, size = 0x4, offset = 0x4, fixed_abs, tag = 'smem constant byte address 0x4 - core index']
  #allocation1 [shape = 'u32[72,128]{1,0:T(1,128)}', space=vmem, size = 0x9000, scoped, tag = 'internal scratch']
  #allocation2 [shape = 'f32[864,1]{1,0:T(8,128)}', space=vmem, size = 0x6c000, scoped, tag = 'scratch operand']
  #allocation3 [shape = 'f32[864,1]{1,0:T(8,128)}', space=vmem, size = 0x6c000, scoped, tag = 'scratch operand']
  %s0 = inlined_call_operand.vmem [shape: f32[1,3456,49], index: 0, kind: input, shape index: {}]
  %s1 = inlined_call_operand.vmem [shape: f32[3456,1], index: 1, kind: input, shape index: {}]
  %s2 = inlined_call_operand.vmem [shape: f32[3456,1], index: 2, kind: input, shape index: {}]
  %s3 = inlined_call_operand.vmem [shape: f32[3456,1], index: 3, kind: output, shape index: {0}]
  %s4 = inlined_call_operand.vmem [shape: f32[3456,1], index: 4, kind: output, shape index: {1}]
  %5 = xla_tuple %s3, %s4
  %s6 = sld [smem:[#allocation0]]
  $region61: #{tpu_custom_call.1} parent=0
    _
  %s8 = ssub.s32 1, %s6
  %s9 = scalar_select 0, %s8, %s6
  loop: start=0, step=1, limit=6
  $region2: #{tpu_custom_call.1} parent=0 // loop_pre_header
    _
  $region3: #{tpu_custom_call.1} parent=0 // loop_header
    %s11 = sphi 0, %s15
    %p12 = scmp.ge.s32.totalorder %s11, 6
    %s18 = sphi 0, %s30
    %s19 = sphi 0, %s26
    %s20 = sphi 0, %s18
    %s21 = sphi 0, %s19
    %s22 = sphi 0, %s20
    %s23 = sphi 0, %s21
    %s35 = sphi 0, %s37
    %s38 = sphi 0, %s35
    %s39 = sphi 0, %s38
    %s55 = sphi 0, %s39
    %s61 = sphi 0, %s63
    %s64 = sphi 0, %s61
    %s65 = sphi 0, %s64
    %s81 = sphi 0, %s65
    %s87 = sphi 0, %s89
    %s90 = sphi 0, %s87
    %s91 = sphi 0, %s90
    %s107 = sphi 0, %s91
    %s113 = sphi 0, %s115
    %s116 = sphi 0, %s113
    %s117 = sphi 0, %s116
    %s133 = sphi 0, %s117
    %s139 = sphi 0, %s141
    %s142 = sphi 0, %s139
    %s143 = sphi 0, %s142
    %s159 = sphi 0, %s143
  $region4: #{tpu_custom_call.1} parent=0 // loop_header_branch
    %14 = sbr.rel (%p12) target = $region8
  $region5: #{tpu_custom_call.1} parent=0 // loop_body
    %s16 = ssub.s32 %s11, 1
    %s17 = ssub.s32 %s11, 2
    %s24 = sadd.s32 1, %s19
    %p25 = scmp.ge.s32.totalorder %s24, 1
    %s26 = scalar_select %p25, 0, %s24
    %s27 = sadd.s32 1, %s18
    %s28 = scalar_select %p25, %s27, %s18
    %p29 = scmp.ge.s32.totalorder %s28, 4
    %s30 = scalar_select %p29, 0, %s28
    %s31 = ssub.s32 %s19, %s26
    %s32 = ssub.s32 %s18, %s30
    %s33 = sor.u32 %s31, %s32
    %p34 = scmp.eq.s32.totalorder %s33, 0
    %s36 = sadd.s32 %s35, 1
    %s37 = scalar_select %p34, %s35, %s36
    %p40 = pneg %p34
    %p41 = scmp.eq.s32.totalorder %s11, 3
    %p42 = por %p40, %p41
    %p43 = scmp.ne.s32.totalorder %s35, %s38
    %p44 = scmp.eq.s32.totalorder %s11, 0
    %p45 = por %p43, %p44
    %p46 = scmp.ne.s32.totalorder %s35, %s38
    %p47 = scmp.eq.s32.totalorder %s16, 3
    %p48 = por %p46, %p47
    %p49 = scmp.ne.s32.totalorder %s38, %s39
    %p50 = scmp.eq.s32.totalorder %s16, 0
    %p51 = por %p49, %p50
    %p52 = scmp.ne.s32.totalorder %s38, %s39
    %p53 = scmp.eq.s32.totalorder %s17, 3
    %p54 = por %p52, %p53
    %p56 = scmp.ne.s32.totalorder %s39, %s55
    %p57 = scmp.eq.s32.totalorder %s17, 0
    %p58 = por %p56, %p57
    %s59 = ssub.s32 %s18, %s30
    %p60 = scmp.eq.s32.totalorder %s59, 0
    %s62 = sadd.s32 %s61, 1
    %s63 = scalar_select %p60, %s61, %s62
    %p66 = pneg %p60
    %p67 = scmp.eq.s32.totalorder %s11, 3
    %p68 = por %p66, %p67
    %p69 = scmp.ne.s32.totalorder %s61, %s64
    %p70 = scmp.eq.s32.totalorder %s11, 0
    %p71 = por %p69, %p70
    %p72 = scmp.ne.s32.totalorder %s61, %s64
    %p73 = scmp.eq.s32.totalorder %s16, 3
    %p74 = por %p72, %p73
    %p75 = scmp.ne.s32.totalorder %s64, %s65
    %p76 = scmp.eq.s32.totalorder %s16, 0
    %p77 = por %p75, %p76
    %p78 = scmp.ne.s32.totalorder %s64, %s65
    %p79 = scmp.eq.s32.totalorder %s17, 3
    %p80 = por %p78, %p79
    %p82 = scmp.ne.s32.totalorder %s65, %s81
    %p83 = scmp.eq.s32.totalorder %s17, 0
    %p84 = por %p82, %p83
    %s85 = ssub.s32 %s18, %s30
    %p86 = scmp.eq.s32.totalorder %s85, 0
    %s88 = sadd.s32 %s87, 1
    %s89 = scalar_select %p86, %s87, %s88
    %p92 = pneg %p86
    %p93 = scmp.eq.s32.totalorder %s11, 3
    %p94 = por %p92, %p93
    %p95 = scmp.ne.s32.totalorder %s87, %s90
    %p96 = scmp.eq.s32.totalorder %s11, 0
    %p97 = por %p95, %p96
    %p98 = scmp.ne.s32.totalorder %s87, %s90
    %p99 = scmp.eq.s32.totalorder %s16, 3
    %p100 = por %p98, %p99
    %p101 = scmp.ne.s32.totalorder %s90, %s91
    %p102 = scmp.eq.s32.totalorder %s16, 0
    %p103 = por %p101, %p102
    %p104 = scmp.ne.s32.totalorder %s90, %s91
    %p105 = scmp.eq.s32.totalorder %s17, 3
    %p106 = por %p104, %p105
    %p108 = scmp.ne.s32.totalorder %s91, %s107
    %p109 = scmp.eq.s32.totalorder %s17, 0
    %p110 = por %p108, %p109
    %s111 = ssub.s32 %s18, %s30
    %p112 = scmp.eq.s32.totalorder %s111, 0
    %s114 = sadd.s32 %s113, 1
    %s115 = scalar_select %p112, %s113, %s114
    %p118 = pneg %p112
    %p119 = scmp.eq.s32.totalorder %s11, 3
    %p120 = por %p118, %p119
    %p121 = scmp.ne.s32.totalorder %s113, %s116
    %p122 = scmp.eq.s32.totalorder %s11, 0
    %p123 = por %p121, %p122
    %p124 = scmp.ne.s32.totalorder %s113, %s116
    %p125 = scmp.eq.s32.totalorder %s16, 3
    %p126 = por %p124, %p125
    %p127 = scmp.ne.s32.totalorder %s116, %s117
    %p128 = scmp.eq.s32.totalorder %s16, 0
    %p129 = por %p127, %p128
    %p130 = scmp.ne.s32.totalorder %s116, %s117
    %p131 = scmp.eq.s32.totalorder %s17, 3
    %p132 = por %p130, %p131
    %p134 = scmp.ne.s32.totalorder %s117, %s133
    %p135 = scmp.eq.s32.totalorder %s17, 0
    %p136 = por %p134, %p135
    %s137 = ssub.s32 %s18, %s30
    %p138 = scmp.eq.s32.totalorder %s137, 0
    %s140 = sadd.s32 %s139, 1
    %s141 = scalar_select %p138, %s139, %s140
    %p144 = pneg %p138
    %p145 = scmp.eq.s32.totalorder %s11, 3
    %p146 = por %p144, %p145
    %p147 = scmp.ne.s32.totalorder %s139, %s142
    %p148 = scmp.eq.s32.totalorder %s11, 0
    %p149 = por %p147, %p148
    %p150 = scmp.ne.s32.totalorder %s139, %s142
    %p151 = scmp.eq.s32.totalorder %s16, 3
    %p152 = por %p150, %p151
    %p153 = scmp.ne.s32.totalorder %s142, %s143
    %p154 = scmp.eq.s32.totalorder %s16, 0
    %p155 = por %p153, %p154
    %p156 = scmp.ne.s32.totalorder %s142, %s143
    %p157 = scmp.eq.s32.totalorder %s17, 3
    %p158 = por %p156, %p157
    %p160 = scmp.ne.s32.totalorder %s143, %s159
    %p161 = scmp.eq.s32.totalorder %s17, 0
    %p162 = por %p160, %p161
    %p163 = scmp.le.s32.totalorder 1, %s11
    %p164 = scmp.lt.s32.totalorder %s11, 5
    %p165 = pnand %p163, %p164
    %p166 = pneg %p165
    // Predicated region
    $region9: #{tpu_custom_call.1} parent=5 // pred_check
      _
    $region10: #{tpu_custom_call.1} parent=5 // pred_check_branch
      %168 = sbr.rel (%p165) target = $region12
    $region11: #{tpu_custom_call.1} parent=5 // pred_region
      %s169 = ssub.s32 %s11, 1
    $region12: #{tpu_custom_call.1} parent=5 // pred_fallthru
      _
    %p170 = scmp.lt.s32.totalorder %s11, 4
    // Predicated region
    $region13: #{tpu_custom_call.1} parent=5 // pred_check
      %p171 = pneg %p170
    $region14: #{tpu_custom_call.1} parent=5 // pred_check_branch
      %173 = sbr.rel (%p171) target = $region16
    $region15: #{tpu_custom_call.1} parent=5 // pred_region
      // Predicated region
      $region17: #{tpu_custom_call.1} parent=15 // pred_check
        %p174 = pneg %p45
      $region18: #{tpu_custom_call.1} parent=15 // pred_check_branch
        %176 = sbr.rel (%p174) target = $region20
      $region19: #{tpu_custom_call.1} parent=15 // pred_region
        %s177 = smul.u32 108, %s18
        %p178 = scmp.lt.s32.totalorder %s19, 0
        %s179 = scalar_select %p178, %s19, 0
        %p180 = scmp.lt.s32.totalorder %s177, 431
        %s181 = scalar_select %p180, %s177, 431
        %s182 = smul.addr %s179, 432
        %s183 = sadd.s32 %s181, %s182
        %s184 = smul.addr %s183, 8
        %s185 = scalar_lea.vmem %s0, %s184
        %s186 = smul.u32 108, %s18
      $region20: #{tpu_custom_call.1} parent=15 // pred_fallthru
        _
      // Predicated region
      $region21: #{tpu_custom_call.1} parent=15 // pred_check
        %p187 = pneg %p71
      $region22: #{tpu_custom_call.1} parent=15 // pred_check_branch
        %189 = sbr.rel (%p187) target = $region24
      $region23: #{tpu_custom_call.1} parent=15 // pred_region
        %s190 = smul.u32 108, %s18
        %p191 = scmp.lt.s32.totalorder %s190, 431
        %s192 = scalar_select %p191, %s190, 431
        %s193 = smul.addr %s192, 8
        %s194 = scalar_lea.vmem %s1, %s193
        %s195 = smul.u32 108, %s18
      $region24: #{tpu_custom_call.1} parent=15 // pred_fallthru
        _
      // Predicated region
      $region25: #{tpu_custom_call.1} parent=15 // pred_check
        %p196 = pneg %p97
      $region26: #{tpu_custom_call.1} parent=15 // pred_check_branch
        %198 = sbr.rel (%p196) target = $region28
      $region27: #{tpu_custom_call.1} parent=15 // pred_region
        %s199 = smul.u32 108, %s18
        %p200 = scmp.lt.s32.totalorder %s199, 431
        %s201 = scalar_select %p200, %s199, 431
        %s202 = smul.addr %s201, 8
        %s203 = scalar_lea.vmem %s2, %s202
        %s204 = smul.u32 108, %s18
      $region28: #{tpu_custom_call.1} parent=15 // pred_fallthru
        _
    $region16: #{tpu_custom_call.1} parent=5 // pred_fallthru
      _
    %p205 = scmp.le.s32.totalorder 1, %s11
    %p206 = scmp.lt.s32.totalorder %s11, 5
    %p207 = pnand %p205, %p206
    %p208 = pneg %p207
    // Predicated region
    $region29: #{tpu_custom_call.1} parent=5 // pred_check
      _
    $region30: #{tpu_custom_call.1} parent=5 // pred_check_branch
      %210 = sbr.rel (%p207) target = $region32
    $region31: #{tpu_custom_call.1} parent=5 // pred_region
      %s211 = ssub.s32 %s11, 1
      %s212 = smul.u32 108, %s20
      %p213 = scmp.lt.s32.totalorder %s21, 0
      %s214 = scalar_select %p213, %s21, 0
      %p215 = scmp.lt.s32.totalorder %s212, 431
      %s216 = scalar_select %p215, %s212, 431
      %s217 = smul.addr %s214, 432
      %s218 = sadd.s32 %s216, %s217
      %s219 = smul.addr %s218, 8
      %s220 = scalar_lea.vmem %s0, %s219
      %p221 = pneg %p51
      %p222 = pneg %p48
      %s223 = smul.u32 108, %s20
      %p224 = scmp.lt.s32.totalorder %s223, 431
      %s225 = scalar_select %p224, %s223, 431
      %s226 = smul.addr %s225, 8
      %s227 = scalar_lea.vmem %s1, %s226
      %p228 = pneg %p77
      %p229 = pneg %p74
      %s230 = smul.u32 108, %s20
      %p231 = scmp.lt.s32.totalorder %s230, 431
      %s232 = scalar_select %p231, %s230, 431
      %s233 = smul.addr %s232, 8
      %s234 = scalar_lea.vmem %s2, %s233
      %p235 = pneg %p103
      %p236 = pneg %p100
      %p237 = pneg %p129
      %p238 = pneg %p126
      %s239 = smul.u32 108, %s20
      %p240 = scmp.lt.s32.totalorder %s239, 431
      %s241 = scalar_select %p240, %s239, 431
      %s242 = smul.addr %s241, 8
      %s243 = scalar_lea.vmem %s3, %s242
      %p244 = pneg %p155
      %p245 = pneg %p152
      %s246 = smul.u32 108, %s20
      %p247 = scmp.lt.s32.totalorder %s246, 431
      %s248 = scalar_select %p247, %s246, 431
      %s249 = smul.addr %s248, 8
      %s250 = scalar_lea.vmem %s4, %s249
      %s251 = smul.u32 108, %s20
      %p252 = scmp.lt.s32.totalorder %s21, 0
      %s253 = scalar_select %p252, %s21, 0
      %p254 = scmp.lt.s32.totalorder %s251, 431
      %s255 = scalar_select %p254, %s251, 431
      %s256 = smul.addr %s253, 432
      %s257 = sadd.s32 %s255, %s256
      %s258 = smul.addr %s257, 8
      %s259 = scalar_lea.vmem %s0, %s258
      %s260 = smul.u32 108, %s20
      %s261 = smul.u32 108, %s20
      %p262 = scmp.lt.s32.totalorder %s261, 431
      %s263 = scalar_select %p262, %s261, 431
      %s264 = smul.addr %s263, 8
      %s265 = scalar_lea.vmem %s1, %s264
      %s266 = smul.u32 108, %s20
      %s267 = smul.u32 108, %s20
      %p268 = scmp.lt.s32.totalorder %s267, 431
      %s269 = scalar_select %p268, %s267, 431
      %s270 = smul.addr %s269, 8
      %s271 = scalar_lea.vmem %s2, %s270
      %s272 = smul.u32 108, %s20
      %s273 = smul.u32 108, %s20
      %p274 = scmp.lt.s32.totalorder %s273, 431
      %s275 = scalar_select %p274, %s273, 431
      %s276 = smul.addr %s275, 8
      %s277 = scalar_lea.vmem %s3, %s276
      %s278 = smul.u32 108, %s20
      %s279 = smul.u32 108, %s20
      %p280 = scmp.lt.s32.totalorder %s279, 431
      %s281 = scalar_select %p280, %s279, 431
      %s282 = smul.addr %s281, 8
      %s283 = scalar_lea.vmem %s4, %s282
      %s284 = smul.u32 108, %s20
      %p285 = scmp.eq.s32.totalorder %s21, 0
      // Predicated region
      $region33: #{tpu_custom_call.1} parent=31 // pred_check
        %p286 = pneg %p285
      $region34: #{tpu_custom_call.1} parent=31 // pred_check_branch
        %288 = sbr.rel (%p286) target = $region36
      $region35: #{tpu_custom_call.1} parent=31 // pred_region
        %vm289 = vcmask 7168
        %290 = vst.msk [vmem:[#allocation2] sm:$0xff] %vm289, 0.0
        %291 = vst.msk [vmem:[#allocation2 + $0x8] sm:$0xff] %vm289, 0.0
        %292 = vst.msk [vmem:[#allocation2 + $0x10] sm:$0xff] %vm289, 0.0
        %293 = vst.msk [vmem:[#allocation2 + $0x18] sm:$0xff] %vm289, 0.0
        %294 = vst.msk [vmem:[#allocation2 + $0x20] sm:$0xff] %vm289, 0.0
        %295 = vst.msk [vmem:[#allocation2 + $0x28] sm:$0xff] %vm289, 0.0
        %296 = vst.msk [vmem:[#allocation2 + $0x30] sm:$0xff] %vm289, 0.0
        %297 = vst.msk [vmem:[#allocation2 + $0x38] sm:$0xff] %vm289, 0.0
        %298 = vst.msk [vmem:[#allocation2 + $0x40] sm:$0xff] %vm289, 0.0
        %299 = vst.msk [vmem:[#allocation2 + $0x48] sm:$0xff] %vm289, 0.0
        %300 = vst.msk [vmem:[#allocation2 + $0x50] sm:$0xff] %vm289, 0.0
        %301 = vst.msk [vmem:[#allocation2 + $0x58] sm:$0xff] %vm289, 0.0
        %302 = vst.msk [vmem:[#allocation2 + $0x60] sm:$0xff] %vm289, 0.0
        %303 = vst.msk [vmem:[#allocation2 + $0x68] sm:$0xff] %vm289, 0.0
        %304 = vst.msk [vmem:[#allocation2 + $0x70] sm:$0xff] %vm289, 0.0
        %305 = vst.msk [vmem:[#allocation2 + $0x78] sm:$0xff] %vm289, 0.0
        %306 = vst.msk [vmem:[#allocation2 + $0x80] sm:$0xff] %vm289, 0.0
        %307 = vst.msk [vmem:[#allocation2 + $0x88] sm:$0xff] %vm289, 0.0
        %308 = vst.msk [vmem:[#allocation2 + $0x90] sm:$0xff] %vm289, 0.0
        %309 = vst.msk [vmem:[#allocation2 + $0x98] sm:$0xff] %vm289, 0.0
        %310 = vst.msk [vmem:[#allocation2 + $0xa0] sm:$0xff] %vm289, 0.0
        %311 = vst.msk [vmem:[#allocation2 + $0xa8] sm:$0xff] %vm289, 0.0
        %312 = vst.msk [vmem:[#allocation2 + $0xb0] sm:$0xff] %vm289, 0.0
        %313 = vst.msk [vmem:[#allocation2 + $0xb8] sm:$0xff] %vm289, 0.0
        %314 = vst.msk [vmem:[#allocation2 + $0xc0] sm:$0xff] %vm289, 0.0
        %315 = vst.msk [vmem:[#allocation2 + $0xc8] sm:$0xff] %vm289, 0.0
        %316 = vst.msk [vmem:[#allocation2 + $0xd0] sm:$0xff] %vm289, 0.0
        %317 = vst.msk [vmem:[#allocation2 + $0xd8] sm:$0xff] %vm289, 0.0
        %318 = vst.msk [vmem:[#allocation2 + $0xe0] sm:$0xff] %vm289, 0.0
        %319 = vst.msk [vmem:[#allocation2 + $0xe8] sm:$0xff] %vm289, 0.0
        %320 = vst.msk [vmem:[#allocation2 + $0xf0] sm:$0xff] %vm289, 0.0
        %321 = vst.msk [vmem:[#allocation2 + $0xf8] sm:$0xff] %vm289, 0.0
        %322 = vst.msk [vmem:[#allocation2 + $0x100] sm:$0xff] %vm289, 0.0
        %323 = vst.msk [vmem:[#allocation2 + $0x108] sm:$0xff] %vm289, 0.0
        %324 = vst.msk [vmem:[#allocation2 + $0x110] sm:$0xff] %vm289, 0.0
        %325 = vst.msk [vmem:[#allocation2 + $0x118] sm:$0xff] %vm289, 0.0
        %326 = vst.msk [vmem:[#allocation2 + $0x120] sm:$0xff] %vm289, 0.0
        %327 = vst.msk [vmem:[#allocation2 + $0x128] sm:$0xff] %vm289, 0.0
        %328 = vst.msk [vmem:[#allocation2 + $0x130] sm:$0xff] %vm289, 0.0
        %329 = vst.msk [vmem:[#allocation2 + $0x138] sm:$0xff] %vm289, 0.0
        %330 = vst.msk [vmem:[#allocation2 + $0x140] sm:$0xff] %vm289, 0.0
        %331 = vst.msk [vmem:[#allocation2 + $0x148] sm:$0xff] %vm289, 0.0
        %332 = vst.msk [vmem:[#allocation2 + $0x150] sm:$0xff] %vm289, 0.0
        %333 = vst.msk [vmem:[#allocation2 + $0x158] sm:$0xff] %vm289, 0.0
        %334 = vst.msk [vmem:[#allocation2 + $0x160] sm:$0xff] %vm289, 0.0
        %335 = vst.msk [vmem:[#allocation2 + $0x168] sm:$0xff] %vm289, 0.0
        %336 = vst.msk [vmem:[#allocation2 + $0x170] sm:$0xff] %vm289, 0.0
        %337 = vst.msk [vmem:[#allocation2 + $0x178] sm:$0xff] %vm289, 0.0
        %338 = vst.msk [vmem:[#allocation2 + $0x180] sm:$0xff] %vm289, 0.0
        %339 = vst.msk [vmem:[#allocation2 + $0x188] sm:$0xff] %vm289, 0.0
        %340 = vst.msk [vmem:[#allocation2 + $0x190] sm:$0xff] %vm289, 0.0
        %341 = vst.msk [vmem:[#allocation2 + $0x198] sm:$0xff] %vm289, 0.0
        %342 = vst.msk [vmem:[#allocation2 + $0x1a0] sm:$0xff] %vm289, 0.0
        %343 = vst.msk [vmem:[#allocation2 + $0x1a8] sm:$0xff] %vm289, 0.0
        %344 = vst.msk [vmem:[#allocation2 + $0x1b0] sm:$0xff] %vm289, 0.0
        %345 = vst.msk [vmem:[#allocation2 + $0x1b8] sm:$0xff] %vm289, 0.0
        %346 = vst.msk [vmem:[#allocation2 + $0x1c0] sm:$0xff] %vm289, 0.0
        %347 = vst.msk [vmem:[#allocation2 + $0x1c8] sm:$0xff] %vm289, 0.0
        %348 = vst.msk [vmem:[#allocation2 + $0x1d0] sm:$0xff] %vm289, 0.0
        %349 = vst.msk [vmem:[#allocation2 + $0x1d8] sm:$0xff] %vm289, 0.0
        %350 = vst.msk [vmem:[#allocation2 + $0x1e0] sm:$0xff] %vm289, 0.0
        %351 = vst.msk [vmem:[#allocation2 + $0x1e8] sm:$0xff] %vm289, 0.0
        %352 = vst.msk [vmem:[#allocation2 + $0x1f0] sm:$0xff] %vm289, 0.0
        %353 = vst.msk [vmem:[#allocation2 + $0x1f8] sm:$0xff] %vm289, 0.0
        %354 = vst.msk [vmem:[#allocation2 + $0x200] sm:$0xff] %vm289, 0.0
        %355 = vst.msk [vmem:[#allocation2 + $0x208] sm:$0xff] %vm289, 0.0
        %356 = vst.msk [vmem:[#allocation2 + $0x210] sm:$0xff] %vm289, 0.0
        %357 = vst.msk [vmem:[#allocation2 + $0x218] sm:$0xff] %vm289, 0.0
        %358 = vst.msk [vmem:[#allocation2 + $0x220] sm:$0xff] %vm289, 0.0
        %359 = vst.msk [vmem:[#allocation2 + $0x228] sm:$0xff] %vm289, 0.0
        %360 = vst.msk [vmem:[#allocation2 + $0x230] sm:$0xff] %vm289, 0.0
        %361 = vst.msk [vmem:[#allocation2 + $0x238] sm:$0xff] %vm289, 0.0
        %362 = vst.msk [vmem:[#allocation2 + $0x240] sm:$0xff] %vm289, 0.0
        %363 = vst.msk [vmem:[#allocation2 + $0x248] sm:$0xff] %vm289, 0.0
        %364 = vst.msk [vmem:[#allocation2 + $0x250] sm:$0xff] %vm289, 0.0
        %365 = vst.msk [vmem:[#allocation2 + $0x258] sm:$0xff] %vm289, 0.0
        %366 = vst.msk [vmem:[#allocation2 + $0x260] sm:$0xff] %vm289, 0.0
        %367 = vst.msk [vmem:[#allocation2 + $0x268] sm:$0xff] %vm289, 0.0
        %368 = vst.msk [vmem:[#allocation2 + $0x270] sm:$0xff] %vm289, 0.0
        %369 = vst.msk [vmem:[#allocation2 + $0x278] sm:$0xff] %vm289, 0.0
        %370 = vst.msk [vmem:[#allocation2 + $0x280] sm:$0xff] %vm289, 0.0
        %371 = vst.msk [vmem:[#allocation2 + $0x288] sm:$0xff] %vm289, 0.0
        %372 = vst.msk [vmem:[#allocation2 + $0x290] sm:$0xff] %vm289, 0.0
        %373 = vst.msk [vmem:[#allocation2 + $0x298] sm:$0xff] %vm289, 0.0
        %374 = vst.msk [vmem:[#allocation2 + $0x2a0] sm:$0xff] %vm289, 0.0
        %375 = vst.msk [vmem:[#allocation2 + $0x2a8] sm:$0xff] %vm289, 0.0
        %376 = vst.msk [vmem:[#allocation2 + $0x2b0] sm:$0xff] %vm289, 0.0
        %377 = vst.msk [vmem:[#allocation2 + $0x2b8] sm:$0xff] %vm289, 0.0
        %378 = vst.msk [vmem:[#allocation2 + $0x2c0] sm:$0xff] %vm289, 0.0
        %379 = vst.msk [vmem:[#allocation2 + $0x2c8] sm:$0xff] %vm289, 0.0
        %380 = vst.msk [vmem:[#allocation2 + $0x2d0] sm:$0xff] %vm289, 0.0
        %381 = vst.msk [vmem:[#allocation2 + $0x2d8] sm:$0xff] %vm289, 0.0
        %382 = vst.msk [vmem:[#allocation2 + $0x2e0] sm:$0xff] %vm289, 0.0
        %383 = vst.msk [vmem:[#allocation2 + $0x2e8] sm:$0xff] %vm289, 0.0
        %384 = vst.msk [vmem:[#allocation2 + $0x2f0] sm:$0xff] %vm289, 0.0
        %385 = vst.msk [vmem:[#allocation2 + $0x2f8] sm:$0xff] %vm289, 0.0
        %386 = vst.msk [vmem:[#allocation2 + $0x300] sm:$0xff] %vm289, 0.0
        %387 = vst.msk [vmem:[#allocation2 + $0x308] sm:$0xff] %vm289, 0.0
        %388 = vst.msk [vmem:[#allocation2 + $0x310] sm:$0xff] %vm289, 0.0
        %389 = vst.msk [vmem:[#allocation2 + $0x318] sm:$0xff] %vm289, 0.0
        %390 = vst.msk [vmem:[#allocation2 + $0x320] sm:$0xff] %vm289, 0.0
        %391 = vst.msk [vmem:[#allocation2 + $0x328] sm:$0xff] %vm289, 0.0
        %392 = vst.msk [vmem:[#allocation2 + $0x330] sm:$0xff] %vm289, 0.0
        %393 = vst.msk [vmem:[#allocation2 + $0x338] sm:$0xff] %vm289, 0.0
        %394 = vst.msk [vmem:[#allocation2 + $0x340] sm:$0xff] %vm289, 0.0
        %395 = vst.msk [vmem:[#allocation2 + $0x348] sm:$0xff] %vm289, 0.0
        %396 = vst.msk [vmem:[#allocation2 + $0x350] sm:$0xff] %vm289, 0.0
        %397 = vst.msk [vmem:[#allocation2 + $0x358] sm:$0xff] %vm289, 0.0
        %398 = vst.msk [vmem:[#allocation3] sm:$0xff] %vm289, 0.0
        %399 = vst.msk [vmem:[#allocation3 + $0x8] sm:$0xff] %vm289, 0.0
        %400 = vst.msk [vmem:[#allocation3 + $0x10] sm:$0xff] %vm289, 0.0
        %401 = vst.msk [vmem:[#allocation3 + $0x18] sm:$0xff] %vm289, 0.0
        %402 = vst.msk [vmem:[#allocation3 + $0x20] sm:$0xff] %vm289, 0.0
        %403 = vst.msk [vmem:[#allocation3 + $0x28] sm:$0xff] %vm289, 0.0
        %404 = vst.msk [vmem:[#allocation3 + $0x30] sm:$0xff] %vm289, 0.0
        %405 = vst.msk [vmem:[#allocation3 + $0x38] sm:$0xff] %vm289, 0.0
        %406 = vst.msk [vmem:[#allocation3 + $0x40] sm:$0xff] %vm289, 0.0
        %407 = vst.msk [vmem:[#allocation3 + $0x48] sm:$0xff] %vm289, 0.0
        %408 = vst.msk [vmem:[#allocation3 + $0x50] sm:$0xff] %vm289, 0.0
        %409 = vst.msk [vmem:[#allocation3 + $0x58] sm:$0xff] %vm289, 0.0
        %410 = vst.msk [vmem:[#allocation3 + $0x60] sm:$0xff] %vm289, 0.0
        %411 = vst.msk [vmem:[#allocation3 + $0x68] sm:$0xff] %vm289, 0.0
        %412 = vst.msk [vmem:[#allocation3 + $0x70] sm:$0xff] %vm289, 0.0
        %413 = vst.msk [vmem:[#allocation3 + $0x78] sm:$0xff] %vm289, 0.0
        %414 = vst.msk [vmem:[#allocation3 + $0x80] sm:$0xff] %vm289, 0.0
        %415 = vst.msk [vmem:[#allocation3 + $0x88] sm:$0xff] %vm289, 0.0
        %416 = vst.msk [vmem:[#allocation3 + $0x90] sm:$0xff] %vm289, 0.0
        %417 = vst.msk [vmem:[#allocation3 + $0x98] sm:$0xff] %vm289, 0.0
        %418 = vst.msk [vmem:[#allocation3 + $0xa0] sm:$0xff] %vm289, 0.0
        %419 = vst.msk [vmem:[#allocation3 + $0xa8] sm:$0xff] %vm289, 0.0
        %420 = vst.msk [vmem:[#allocation3 + $0xb0] sm:$0xff] %vm289, 0.0
        %421 = vst.msk [vmem:[#allocation3 + $0xb8] sm:$0xff] %vm289, 0.0
        %422 = vst.msk [vmem:[#allocation3 + $0xc0] sm:$0xff] %vm289, 0.0
        %423 = vst.msk [vmem:[#allocation3 + $0xc8] sm:$0xff] %vm289, 0.0
        %424 = vst.msk [vmem:[#allocation3 + $0xd0] sm:$0xff] %vm289, 0.0
        %425 = vst.msk [vmem:[#allocation3 + $0xd8] sm:$0xff] %vm289, 0.0
        %426 = vst.msk [vmem:[#allocation3 + $0xe0] sm:$0xff] %vm289, 0.0
        %427 = vst.msk [vmem:[#allocation3 + $0xe8] sm:$0xff] %vm289, 0.0
        %428 = vst.msk [vmem:[#allocation3 + $0xf0] sm:$0xff] %vm289, 0.0
        %429 = vst.msk [vmem:[#allocation3 + $0xf8] sm:$0xff] %vm289, 0.0
        %430 = vst.msk [vmem:[#allocation3 + $0x100] sm:$0xff] %vm289, 0.0
        %431 = vst.msk [vmem:[#allocation3 + $0x108] sm:$0xff] %vm289, 0.0
        %432 = vst.msk [vmem:[#allocation3 + $0x110] sm:$0xff] %vm289, 0.0
        %433 = vst.msk [vmem:[#allocation3 + $0x118] sm:$0xff] %vm289, 0.0
        %434 = vst.msk [vmem:[#allocation3 + $0x120] sm:$0xff] %vm289, 0.0
        %435 = vst.msk [vmem:[#allocation3 + $0x128] sm:$0xff] %vm289, 0.0
        %436 = vst.msk [vmem:[#allocation3 + $0x130] sm:$0xff] %vm289, 0.0
        %437 = vst.msk [vmem:[#allocation3 + $0x138] sm:$0xff] %vm289, 0.0
        %438 = vst.msk [vmem:[#allocation3 + $0x140] sm:$0xff] %vm289, 0.0
        %439 = vst.msk [vmem:[#allocation3 + $0x148] sm:$0xff] %vm289, 0.0
        %440 = vst.msk [vmem:[#allocation3 + $0x150] sm:$0xff] %vm289, 0.0
        %441 = vst.msk [vmem:[#allocation3 + $0x158] sm:$0xff] %vm289, 0.0
        %442 = vst.msk [vmem:[#allocation3 + $0x160] sm:$0xff] %vm289, 0.0
        %443 = vst.msk [vmem:[#allocation3 + $0x168] sm:$0xff] %vm289, 0.0
        %444 = vst.msk [vmem:[#allocation3 + $0x170] sm:$0xff] %vm289, 0.0
        %445 = vst.msk [vmem:[#allocation3 + $0x178] sm:$0xff] %vm289, 0.0
        %446 = vst.msk [vmem:[#allocation3 + $0x180] sm:$0xff] %vm289, 0.0
        %447 = vst.msk [vmem:[#allocation3 + $0x188] sm:$0xff] %vm289, 0.0
        %448 = vst.msk [vmem:[#allocation3 + $0x190] sm:$0xff] %vm289, 0.0
        %449 = vst.msk [vmem:[#allocation3 + $0x198] sm:$0xff] %vm289, 0.0
        %450 = vst.msk [vmem:[#allocation3 + $0x1a0] sm:$0xff] %vm289, 0.0
        %451 = vst.msk [vmem:[#allocation3 + $0x1a8] sm:$0xff] %vm289, 0.0
        %452 = vst.msk [vmem:[#allocation3 + $0x1b0] sm:$0xff] %vm289, 0.0
        %453 = vst.msk [vmem:[#allocation3 + $0x1b8] sm:$0xff] %vm289, 0.0
        %454 = vst.msk [vmem:[#allocation3 + $0x1c0] sm:$0xff] %vm289, 0.0
        %455 = vst.msk [vmem:[#allocation3 + $0x1c8] sm:$0xff] %vm289, 0.0
        %456 = vst.msk [vmem:[#allocation3 + $0x1d0] sm:$0xff] %vm289, 0.0
        %457 = vst.msk [vmem:[#allocation3 + $0x1d8] sm:$0xff] %vm289, 0.0
        %458 = vst.msk [vmem:[#allocation3 + $0x1e0] sm:$0xff] %vm289, 0.0
        %459 = vst.msk [vmem:[#allocation3 + $0x1e8] sm:$0xff] %vm289, 0.0
        %460 = vst.msk [vmem:[#allocation3 + $0x1f0] sm:$0xff] %vm289, 0.0
        %461 = vst.msk [vmem:[#allocation3 + $0x1f8] sm:$0xff] %vm289, 0.0
        %462 = vst.msk [vmem:[#allocation3 + $0x200] sm:$0xff] %vm289, 0.0
        %463 = vst.msk [vmem:[#allocation3 + $0x208] sm:$0xff] %vm289, 0.0
        %464 = vst.msk [vmem:[#allocation3 + $0x210] sm:$0xff] %vm289, 0.0
        %465 = vst.msk [vmem:[#allocation3 + $0x218] sm:$0xff] %vm289, 0.0
        %466 = vst.msk [vmem:[#allocation3 + $0x220] sm:$0xff] %vm289, 0.0
        %467 = vst.msk [vmem:[#allocation3 + $0x228] sm:$0xff] %vm289, 0.0
        %468 = vst.msk [vmem:[#allocation3 + $0x230] sm:$0xff] %vm289, 0.0
        %469 = vst.msk [vmem:[#allocation3 + $0x238] sm:$0xff] %vm289, 0.0
        %470 = vst.msk [vmem:[#allocation3 + $0x240] sm:$0xff] %vm289, 0.0
        %471 = vst.msk [vmem:[#allocation3 + $0x248] sm:$0xff] %vm289, 0.0
        %472 = vst.msk [vmem:[#allocation3 + $0x250] sm:$0xff] %vm289, 0.0
        %473 = vst.msk [vmem:[#allocation3 + $0x258] sm:$0xff] %vm289, 0.0
        %474 = vst.msk [vmem:[#allocation3 + $0x260] sm:$0xff] %vm289, 0.0
        %475 = vst.msk [vmem:[#allocation3 + $0x268] sm:$0xff] %vm289, 0.0
        %476 = vst.msk [vmem:[#allocation3 + $0x270] sm:$0xff] %vm289, 0.0
        %477 = vst.msk [vmem:[#allocation3 + $0x278] sm:$0xff] %vm289, 0.0
        %478 = vst.msk [vmem:[#allocation3 + $0x280] sm:$0xff] %vm289, 0.0
        %479 = vst.msk [vmem:[#allocation3 + $0x288] sm:$0xff] %vm289, 0.0
        %480 = vst.msk [vmem:[#allocation3 + $0x290] sm:$0xff] %vm289, 0.0
        %481 = vst.msk [vmem:[#allocation3 + $0x298] sm:$0xff] %vm289, 0.0
        %482 = vst.msk [vmem:[#allocation3 + $0x2a0] sm:$0xff] %vm289, 0.0
        %483 = vst.msk [vmem:[#allocation3 + $0x2a8] sm:$0xff] %vm289, 0.0
        %484 = vst.msk [vmem:[#allocation3 + $0x2b0] sm:$0xff] %vm289, 0.0
        %485 = vst.msk [vmem:[#allocation3 + $0x2b8] sm:$0xff] %vm289, 0.0
        %486 = vst.msk [vmem:[#allocation3 + $0x2c0] sm:$0xff] %vm289, 0.0
        %487 = vst.msk [vmem:[#allocation3 + $0x2c8] sm:$0xff] %vm289, 0.0
        %488 = vst.msk [vmem:[#allocation3 + $0x2d0] sm:$0xff] %vm289, 0.0
        %489 = vst.msk [vmem:[#allocation3 + $0x2d8] sm:$0xff] %vm289, 0.0
        %490 = vst.msk [vmem:[#allocation3 + $0x2e0] sm:$0xff] %vm289, 0.0
        %491 = vst.msk [vmem:[#allocation3 + $0x2e8] sm:$0xff] %vm289, 0.0
        %492 = vst.msk [vmem:[#allocation3 + $0x2f0] sm:$0xff] %vm289, 0.0
        %493 = vst.msk [vmem:[#allocation3 + $0x2f8] sm:$0xff] %vm289, 0.0
        %494 = vst.msk [vmem:[#allocation3 + $0x300] sm:$0xff] %vm289, 0.0
        %495 = vst.msk [vmem:[#allocation3 + $0x308] sm:$0xff] %vm289, 0.0
        %496 = vst.msk [vmem:[#allocation3 + $0x310] sm:$0xff] %vm289, 0.0
        %497 = vst.msk [vmem:[#allocation3 + $0x318] sm:$0xff] %vm289, 0.0
        %498 = vst.msk [vmem:[#allocation3 + $0x320] sm:$0xff] %vm289, 0.0
        %499 = vst.msk [vmem:[#allocation3 + $0x328] sm:$0xff] %vm289, 0.0
        %500 = vst.msk [vmem:[#allocation3 + $0x330] sm:$0xff] %vm289, 0.0
        %501 = vst.msk [vmem:[#allocation3 + $0x338] sm:$0xff] %vm289, 0.0
        %502 = vst.msk [vmem:[#allocation3 + $0x340] sm:$0xff] %vm289, 0.0
        %503 = vst.msk [vmem:[#allocation3 + $0x348] sm:$0xff] %vm289, 0.0
        %504 = vst.msk [vmem:[#allocation3 + $0x350] sm:$0xff] %vm289, 0.0
        %505 = vst.msk [vmem:[#allocation3 + $0x358] sm:$0xff] %vm289, 0.0
      $region36: #{tpu_custom_call.1} parent=31 // pred_fallthru
        _
      %v506 = vld [vmem:[%s259] sm:$0xff]
      %v507 = vld [vmem:[%s259 + $0x8] sm:$0xff]
      %v508 = vld [vmem:[%s259 + $0x10] sm:$0xff]
      %v509 = vld [vmem:[%s259 + $0x18] sm:$0xff]
      %v510 = vld [vmem:[%s259 + $0x20] sm:$0xff]
      %v511 = vld [vmem:[%s259 + $0x28] sm:$0xff]
      %v512 = vld [vmem:[%s259 + $0x30] sm:$0xff]
      %v513 = vld [vmem:[%s259 + $0x38] sm:$0xff]
      %v514 = vld [vmem:[%s259 + $0x40] sm:$0xff]
      %v515 = vld [vmem:[%s259 + $0x48] sm:$0xff]
      %v516 = vld [vmem:[%s259 + $0x50] sm:$0xff]
      %v517 = vld [vmem:[%s259 + $0x58] sm:$0xff]
      %v518 = vld [vmem:[%s259 + $0x60] sm:$0xff]
      %v519 = vld [vmem:[%s259 + $0x68] sm:$0xff]
      %v520 = vld [vmem:[%s259 + $0x70] sm:$0xff]
      %v521 = vld [vmem:[%s259 + $0x78] sm:$0xff]
      %v522 = vld [vmem:[%s259 + $0x80] sm:$0xff]
      %v523 = vld [vmem:[%s259 + $0x88] sm:$0xff]
      %v524 = vld [vmem:[%s259 + $0x90] sm:$0xff]
      %v525 = vld [vmem:[%s259 + $0x98] sm:$0xff]
      %v526 = vld [vmem:[%s259 + $0xa0] sm:$0xff]
      %v527 = vld [vmem:[%s259 + $0xa8] sm:$0xff]
      %v528 = vld [vmem:[%s259 + $0xb0] sm:$0xff]
      %v529 = vld [vmem:[%s259 + $0xb8] sm:$0xff]
      %v530 = vld [vmem:[%s259 + $0xc0] sm:$0xff]
      %v531 = vld [vmem:[%s259 + $0xc8] sm:$0xff]
      %v532 = vld [vmem:[%s259 + $0xd0] sm:$0xff]
      %v533 = vld [vmem:[%s259 + $0xd8] sm:$0xff]
      %v534 = vld [vmem:[%s259 + $0xe0] sm:$0xff]
      %v535 = vld [vmem:[%s259 + $0xe8] sm:$0xff]
      %v536 = vld [vmem:[%s259 + $0xf0] sm:$0xff]
      %v537 = vld [vmem:[%s259 + $0xf8] sm:$0xff]
      %v538 = vld [vmem:[%s259 + $0x100] sm:$0xff]
      %v539 = vld [vmem:[%s259 + $0x108] sm:$0xff]
      %v540 = vld [vmem:[%s259 + $0x110] sm:$0xff]
      %v541 = vld [vmem:[%s259 + $0x118] sm:$0xff]
      %v542 = vld [vmem:[%s259 + $0x120] sm:$0xff]
      %v543 = vld [vmem:[%s259 + $0x128] sm:$0xff]
      %v544 = vld [vmem:[%s259 + $0x130] sm:$0xff]
      %v545 = vld [vmem:[%s259 + $0x138] sm:$0xff]
      %v546 = vld [vmem:[%s259 + $0x140] sm:$0xff]
      %v547 = vld [vmem:[%s259 + $0x148] sm:$0xff]
      %v548 = vld [vmem:[%s259 + $0x150] sm:$0xff]
      %v549 = vld [vmem:[%s259 + $0x158] sm:$0xff]
      %v550 = vld [vmem:[%s259 + $0x160] sm:$0xff]
      %v551 = vld [vmem:[%s259 + $0x168] sm:$0xff]
      %v552 = vld [vmem:[%s259 + $0x170] sm:$0xff]
      %v553 = vld [vmem:[%s259 + $0x178] sm:$0xff]
      %v554 = vld [vmem:[%s259 + $0x180] sm:$0xff]
      %v555 = vld [vmem:[%s259 + $0x188] sm:$0xff]
      %v556 = vld [vmem:[%s259 + $0x190] sm:$0xff]
      %v557 = vld [vmem:[%s259 + $0x198] sm:$0xff]
      %v558 = vld [vmem:[%s259 + $0x1a0] sm:$0xff]
      %v559 = vld [vmem:[%s259 + $0x1a8] sm:$0xff]
      %v560 = vld [vmem:[%s259 + $0x1b0] sm:$0xff]
      %v561 = vld [vmem:[%s259 + $0x1b8] sm:$0xff]
      %v562 = vld [vmem:[%s259 + $0x1c0] sm:$0xff]
      %v563 = vld [vmem:[%s259 + $0x1c8] sm:$0xff]
      %v564 = vld [vmem:[%s259 + $0x1d0] sm:$0xff]
      %v565 = vld [vmem:[%s259 + $0x1d8] sm:$0xff]
      %v566 = vld [vmem:[%s259 + $0x1e0] sm:$0xff]
      %v567 = vld [vmem:[%s259 + $0x1e8] sm:$0xff]
      %v568 = vld [vmem:[%s259 + $0x1f0] sm:$0xff]
      %v569 = vld [vmem:[%s259 + $0x1f8] sm:$0xff]
      %v570 = vld [vmem:[%s259 + $0x200] sm:$0xff]
      %v571 = vld [vmem:[%s259 + $0x208] sm:$0xff]
      %v572 = vld [vmem:[%s259 + $0x210] sm:$0xff]
      %v573 = vld [vmem:[%s259 + $0x218] sm:$0xff]
      %v574 = vld [vmem:[%s259 + $0x220] sm:$0xff]
      %v575 = vld [vmem:[%s259 + $0x228] sm:$0xff]
      %v576 = vld [vmem:[%s259 + $0x230] sm:$0xff]
      %v577 = vld [vmem:[%s259 + $0x238] sm:$0xff]
      %v578 = vld [vmem:[%s259 + $0x240] sm:$0xff]
      %v579 = vld [vmem:[%s259 + $0x248] sm:$0xff]
      %v580 = vld [vmem:[%s259 + $0x250] sm:$0xff]
      %v581 = vld [vmem:[%s259 + $0x258] sm:$0xff]
      %v582 = vld [vmem:[%s259 + $0x260] sm:$0xff]
      %v583 = vld [vmem:[%s259 + $0x268] sm:$0xff]
      %v584 = vld [vmem:[%s259 + $0x270] sm:$0xff]
      %v585 = vld [vmem:[%s259 + $0x278] sm:$0xff]
      %v586 = vld [vmem:[%s259 + $0x280] sm:$0xff]
      %v587 = vld [vmem:[%s259 + $0x288] sm:$0xff]
      %v588 = vld [vmem:[%s259 + $0x290] sm:$0xff]
      %v589 = vld [vmem:[%s259 + $0x298] sm:$0xff]
      %v590 = vld [vmem:[%s259 + $0x2a0] sm:$0xff]
      %v591 = vld [vmem:[%s259 + $0x2a8] sm:$0xff]
      %v592 = vld [vmem:[%s259 + $0x2b0] sm:$0xff]
      %v593 = vld [vmem:[%s259 + $0x2b8] sm:$0xff]
      %v594 = vld [vmem:[%s259 + $0x2c0] sm:$0xff]
      %v595 = vld [vmem:[%s259 + $0x2c8] sm:$0xff]
      %v596 = vld [vmem:[%s259 + $0x2d0] sm:$0xff]
      %v597 = vld [vmem:[%s259 + $0x2d8] sm:$0xff]
      %v598 = vld [vmem:[%s259 + $0x2e0] sm:$0xff]
      %v599 = vld [vmem:[%s259 + $0x2e8] sm:$0xff]
      %v600 = vld [vmem:[%s259 + $0x2f0] sm:$0xff]
      %v601 = vld [vmem:[%s259 + $0x2f8] sm:$0xff]
      %v602 = vld [vmem:[%s259 + $0x300] sm:$0xff]
      %v603 = vld [vmem:[%s259 + $0x308] sm:$0xff]
      %v604 = vld [vmem:[%s259 + $0x310] sm:$0xff]
      %v605 = vld [vmem:[%s259 + $0x318] sm:$0xff]
      %v606 = vld [vmem:[%s259 + $0x320] sm:$0xff]
      %v607 = vld [vmem:[%s259 + $0x328] sm:$0xff]
      %v608 = vld [vmem:[%s259 + $0x330] sm:$0xff]
      %v609 = vld [vmem:[%s259 + $0x338] sm:$0xff]
      %v610 = vld [vmem:[%s259 + $0x340] sm:$0xff]
      %v611 = vld [vmem:[%s259 + $0x348] sm:$0xff]
      %v612 = vld [vmem:[%s259 + $0x350] sm:$0xff]
      %v613 = vld [vmem:[%s259 + $0x358] sm:$0xff]
      %v614 = vld [vmem:[#allocation2] sm:$0xff]
      %v615 = vld [vmem:[#allocation2 + $0x8] sm:$0xff]
      %v616 = vld [vmem:[#allocation2 + $0x10] sm:$0xff]
      %v617 = vld [vmem:[#allocation2 + $0x18] sm:$0xff]
      %v618 = vld [vmem:[#allocation2 + $0x20] sm:$0xff]
      %v619 = vld [vmem:[#allocation2 + $0x28] sm:$0xff]
      %v620 = vld [vmem:[#allocation2 + $0x30] sm:$0xff]
      %v621 = vld [vmem:[#allocation2 + $0x38] sm:$0xff]
      %v622 = vld [vmem:[#allocation2 + $0x40] sm:$0xff]
      %v623 = vld [vmem:[#allocation2 + $0x48] sm:$0xff]
      %v624 = vld [vmem:[#allocation2 + $0x50] sm:$0xff]
      %v625 = vld [vmem:[#allocation2 + $0x58] sm:$0xff]
      %v626 = vld [vmem:[#allocation2 + $0x60] sm:$0xff]
      %v627 = vld [vmem:[#allocation2 + $0x68] sm:$0xff]
      %v628 = vld [vmem:[#allocation2 + $0x70] sm:$0xff]
      %v629 = vld [vmem:[#allocation2 + $0x78] sm:$0xff]
      %v630 = vld [vmem:[#allocation2 + $0x80] sm:$0xff]
      %v631 = vld [vmem:[#allocation2 + $0x88] sm:$0xff]
      %v632 = vld [vmem:[#allocation2 + $0x90] sm:$0xff]
      %v633 = vld [vmem:[#allocation2 + $0x98] sm:$0xff]
      %v634 = vld [vmem:[#allocation2 + $0xa0] sm:$0xff]
      %v635 = vld [vmem:[#allocation2 + $0xa8] sm:$0xff]
      %v636 = vld [vmem:[#allocation2 + $0xb0] sm:$0xff]
      %v637 = vld [vmem:[#allocation2 + $0xb8] sm:$0xff]
      %v638 = vld [vmem:[#allocation2 + $0xc0] sm:$0xff]
      %v639 = vld [vmem:[#allocation2 + $0xc8] sm:$0xff]
      %v640 = vld [vmem:[#allocation2 + $0xd0] sm:$0xff]
      %v641 = vld [vmem:[#allocation2 + $0xd8] sm:$0xff]
      %v642 = vld [vmem:[#allocation2 + $0xe0] sm:$0xff]
      %v643 = vld [vmem:[#allocation2 + $0xe8] sm:$0xff]
      %v644 = vld [vmem:[#allocation2 + $0xf0] sm:$0xff]
      %v645 = vld [vmem:[#allocation2 + $0xf8] sm:$0xff]
      %v646 = vld [vmem:[#allocation2 + $0x100] sm:$0xff]
      %v647 = vld [vmem:[#allocation2 + $0x108] sm:$0xff]
      %v648 = vld [vmem:[#allocation2 + $0x110] sm:$0xff]
      %v649 = vld [vmem:[#allocation2 + $0x118] sm:$0xff]
      %v650 = vld [vmem:[#allocation2 + $0x120] sm:$0xff]
      %v651 = vld [vmem:[#allocation2 + $0x128] sm:$0xff]
      %v652 = vld [vmem:[#allocation2 + $0x130] sm:$0xff]
      %v653 = vld [vmem:[#allocation2 + $0x138] sm:$0xff]
      %v654 = vld [vmem:[#allocation2 + $0x140] sm:$0xff]
      %v655 = vld [vmem:[#allocation2 + $0x148] sm:$0xff]
      %v656 = vld [vmem:[#allocation2 + $0x150] sm:$0xff]
      %v657 = vld [vmem:[#allocation2 + $0x158] sm:$0xff]
      %v658 = vld [vmem:[#allocation2 + $0x160] sm:$0xff]
      %v659 = vld [vmem:[#allocation2 + $0x168] sm:$0xff]
      %v660 = vld [vmem:[#allocation2 + $0x170] sm:$0xff]
      %v661 = vld [vmem:[#allocation2 + $0x178] sm:$0xff]
      %v662 = vld [vmem:[#allocation2 + $0x180] sm:$0xff]
      %v663 = vld [vmem:[#allocation2 + $0x188] sm:$0xff]
      %v664 = vld [vmem:[#allocation2 + $0x190] sm:$0xff]
      %v665 = vld [vmem:[#allocation2 + $0x198] sm:$0xff]
      %v666 = vld [vmem:[#allocation2 + $0x1a0] sm:$0xff]
      %v667 = vld [vmem:[#allocation2 + $0x1a8] sm:$0xff]
      %v668 = vld [vmem:[#allocation2 + $0x1b0] sm:$0xff]
      %v669 = vld [vmem:[#allocation2 + $0x1b8] sm:$0xff]
      %v670 = vld [vmem:[#allocation2 + $0x1c0] sm:$0xff]
      %v671 = vld [vmem:[#allocation2 + $0x1c8] sm:$0xff]
      %v672 = vld [vmem:[#allocation2 + $0x1d0] sm:$0xff]
      %v673 = vld [vmem:[#allocation2 + $0x1d8] sm:$0xff]
      %v674 = vld [vmem:[#allocation2 + $0x1e0] sm:$0xff]
      %v675 = vld [vmem:[#allocation2 + $0x1e8] sm:$0xff]
      %v676 = vld [vmem:[#allocation2 + $0x1f0] sm:$0xff]
      %v677 = vld [vmem:[#allocation2 + $0x1f8] sm:$0xff]
      %v678 = vld [vmem:[#allocation2 + $0x200] sm:$0xff]
      %v679 = vld [vmem:[#allocation2 + $0x208] sm:$0xff]
      %v680 = vld [vmem:[#allocation2 + $0x210] sm:$0xff]
      %v681 = vld [vmem:[#allocation2 + $0x218] sm:$0xff]
      %v682 = vld [vmem:[#allocation2 + $0x220] sm:$0xff]
      %v683 = vld [vmem:[#allocation2 + $0x228] sm:$0xff]
      %v684 = vld [vmem:[#allocation2 + $0x230] sm:$0xff]
      %v685 = vld [vmem:[#allocation2 + $0x238] sm:$0xff]
      %v686 = vld [vmem:[#allocation2 + $0x240] sm:$0xff]
      %v687 = vld [vmem:[#allocation2 + $0x248] sm:$0xff]
      %v688 = vld [vmem:[#allocation2 + $0x250] sm:$0xff]
      %v689 = vld [vmem:[#allocation2 + $0x258] sm:$0xff]
      %v690 = vld [vmem:[#allocation2 + $0x260] sm:$0xff]
      %v691 = vld [vmem:[#allocation2 + $0x268] sm:$0xff]
      %v692 = vld [vmem:[#allocation2 + $0x270] sm:$0xff]
      %v693 = vld [vmem:[#allocation2 + $0x278] sm:$0xff]
      %v694 = vld [vmem:[#allocation2 + $0x280] sm:$0xff]
      %v695 = vld [vmem:[#allocation2 + $0x288] sm:$0xff]
      %v696 = vld [vmem:[#allocation2 + $0x290] sm:$0xff]
      %v697 = vld [vmem:[#allocation2 + $0x298] sm:$0xff]
      %v698 = vld [vmem:[#allocation2 + $0x2a0] sm:$0xff]
      %v699 = vld [vmem:[#allocation2 + $0x2a8] sm:$0xff]
      %v700 = vld [vmem:[#allocation2 + $0x2b0] sm:$0xff]
      %v701 = vld [vmem:[#allocation2 + $0x2b8] sm:$0xff]
      %v702 = vld [vmem:[#allocation2 + $0x2c0] sm:$0xff]
      %v703 = vld [vmem:[#allocation2 + $0x2c8] sm:$0xff]
      %v704 = vld [vmem:[#allocation2 + $0x2d0] sm:$0xff]
      %v705 = vld [vmem:[#allocation2 + $0x2d8] sm:$0xff]
      %v706 = vld [vmem:[#allocation2 + $0x2e0] sm:$0xff]
      %v707 = vld [vmem:[#allocation2 + $0x2e8] sm:$0xff]
      %v708 = vld [vmem:[#allocation2 + $0x2f0] sm:$0xff]
      %v709 = vld [vmem:[#allocation2 + $0x2f8] sm:$0xff]
      %v710 = vld [vmem:[#allocation2 + $0x300] sm:$0xff]
      %v711 = vld [vmem:[#allocation2 + $0x308] sm:$0xff]
      %v712 = vld [vmem:[#allocation2 + $0x310] sm:$0xff]
      %v713 = vld [vmem:[#allocation2 + $0x318] sm:$0xff]
      %v714 = vld [vmem:[#allocation2 + $0x320] sm:$0xff]
      %v715 = vld [vmem:[#allocation2 + $0x328] sm:$0xff]
      %v716 = vld [vmem:[#allocation2 + $0x330] sm:$0xff]
      %v717 = vld [vmem:[#allocation2 + $0x338] sm:$0xff]
      %v718 = vld [vmem:[#allocation2 + $0x340] sm:$0xff]
      %v719 = vld [vmem:[#allocation2 + $0x348] sm:$0xff]
      %v720 = vld [vmem:[#allocation2 + $0x350] sm:$0xff]
      %v721 = vld [vmem:[#allocation2 + $0x358] sm:$0xff]
      %vm722 = vcmask 400384
      %v723 = vsel %vm722, %v506, 0.0
      %724 = vadd.xlane.f32.xlu0 %v723
      %v725 = vpop.xlane.xlu0 %724
      %v726 = vsel %vm722, %v507, 0.0
      %727 = vadd.xlane.f32.xlu0 %v726
      %v728 = vpop.xlane.xlu0 %727
      %v729 = vsel %vm722, %v508, 0.0
      %730 = vadd.xlane.f32.xlu0 %v729
      %v731 = vpop.xlane.xlu0 %730
      %v732 = vsel %vm722, %v509, 0.0
      %733 = vadd.xlane.f32.xlu0 %v732
      %v734 = vpop.xlane.xlu0 %733
      %v735 = vsel %vm722, %v510, 0.0
      %736 = vadd.xlane.f32.xlu0 %v735
      %v737 = vpop.xlane.xlu0 %736
      %v738 = vsel %vm722, %v511, 0.0
      %739 = vadd.xlane.f32.xlu0 %v738
      %v740 = vpop.xlane.xlu0 %739
      %v741 = vsel %vm722, %v512, 0.0
      %742 = vadd.xlane.f32.xlu0 %v741
      %v743 = vpop.xlane.xlu0 %742
      %v744 = vsel %vm722, %v513, 0.0
      %745 = vadd.xlane.f32.xlu0 %v744
      %v746 = vpop.xlane.xlu0 %745
      %v747 = vsel %vm722, %v514, 0.0
      %748 = vadd.xlane.f32.xlu0 %v747
      %v749 = vpop.xlane.xlu0 %748
      %v750 = vsel %vm722, %v515, 0.0
      %751 = vadd.xlane.f32.xlu0 %v750
      %v752 = vpop.xlane.xlu0 %751
      %v753 = vsel %vm722, %v516, 0.0
      %754 = vadd.xlane.f32.xlu0 %v753
      %v755 = vpop.xlane.xlu0 %754
      %v756 = vsel %vm722, %v517, 0.0
      %757 = vadd.xlane.f32.xlu0 %v756
      %v758 = vpop.xlane.xlu0 %757
      %v759 = vsel %vm722, %v518, 0.0
      %760 = vadd.xlane.f32.xlu0 %v759
      %v761 = vpop.xlane.xlu0 %760
      %v762 = vsel %vm722, %v519, 0.0
      %763 = vadd.xlane.f32.xlu0 %v762
      %v764 = vpop.xlane.xlu0 %763
      %v765 = vsel %vm722, %v520, 0.0
      %766 = vadd.xlane.f32.xlu0 %v765
      %v767 = vpop.xlane.xlu0 %766
      %v768 = vsel %vm722, %v521, 0.0
      %769 = vadd.xlane.f32.xlu0 %v768
      %v770 = vpop.xlane.xlu0 %769
      %v771 = vsel %vm722, %v522, 0.0
      %772 = vadd.xlane.f32.xlu0 %v771
      %v773 = vpop.xlane.xlu0 %772
      %v774 = vsel %vm722, %v523, 0.0
      %775 = vadd.xlane.f32.xlu0 %v774
      %v776 = vpop.xlane.xlu0 %775
      %v777 = vsel %vm722, %v524, 0.0
      %778 = vadd.xlane.f32.xlu0 %v777
      %v779 = vpop.xlane.xlu0 %778
      %v780 = vsel %vm722, %v525, 0.0
      %781 = vadd.xlane.f32.xlu0 %v780
      %v782 = vpop.xlane.xlu0 %781
      %v783 = vsel %vm722, %v526, 0.0
      %784 = vadd.xlane.f32.xlu0 %v783
      %v785 = vpop.xlane.xlu0 %784
      %v786 = vsel %vm722, %v527, 0.0
      %787 = vadd.xlane.f32.xlu0 %v786
      %v788 = vpop.xlane.xlu0 %787
      %v789 = vsel %vm722, %v528, 0.0
      %790 = vadd.xlane.f32.xlu0 %v789
      %v791 = vpop.xlane.xlu0 %790
      %v792 = vsel %vm722, %v529, 0.0
      %793 = vadd.xlane.f32.xlu0 %v792
      %v794 = vpop.xlane.xlu0 %793
      %v795 = vsel %vm722, %v530, 0.0
      %796 = vadd.xlane.f32.xlu0 %v795
      %v797 = vpop.xlane.xlu0 %796
      %v798 = vsel %vm722, %v531, 0.0
      %799 = vadd.xlane.f32.xlu0 %v798
      %v800 = vpop.xlane.xlu0 %799
      %v801 = vsel %vm722, %v532, 0.0
      %802 = vadd.xlane.f32.xlu0 %v801
      %v803 = vpop.xlane.xlu0 %802
      %v804 = vsel %vm722, %v533, 0.0
      %805 = vadd.xlane.f32.xlu0 %v804
      %v806 = vpop.xlane.xlu0 %805
      %v807 = vsel %vm722, %v534, 0.0
      %808 = vadd.xlane.f32.xlu0 %v807
      %v809 = vpop.xlane.xlu0 %808
      %v810 = vsel %vm722, %v535, 0.0
      %811 = vadd.xlane.f32.xlu0 %v810
      %v812 = vpop.xlane.xlu0 %811
      %v813 = vsel %vm722, %v536, 0.0
      %814 = vadd.xlane.f32.xlu0 %v813
      %v815 = vpop.xlane.xlu0 %814
      %v816 = vsel %vm722, %v537, 0.0
      %817 = vadd.xlane.f32.xlu0 %v816
      %v818 = vpop.xlane.xlu0 %817
      %v819 = vsel %vm722, %v538, 0.0
      %820 = vadd.xlane.f32.xlu0 %v819
      %v821 = vpop.xlane.xlu0 %820
      %v822 = vsel %vm722, %v539, 0.0
      %823 = vadd.xlane.f32.xlu0 %v822
      %v824 = vpop.xlane.xlu0 %823
      %v825 = vsel %vm722, %v540, 0.0
      %826 = vadd.xlane.f32.xlu0 %v825
      %v827 = vpop.xlane.xlu0 %826
      %v828 = vsel %vm722, %v541, 0.0
      %829 = vadd.xlane.f32.xlu0 %v828
      %v830 = vpop.xlane.xlu0 %829
      %v831 = vsel %vm722, %v542, 0.0
      %832 = vadd.xlane.f32.xlu0 %v831
      %v833 = vpop.xlane.xlu0 %832
      %v834 = vsel %vm722, %v543, 0.0
      %835 = vadd.xlane.f32.xlu0 %v834
      %v836 = vpop.xlane.xlu0 %835
      %v837 = vsel %vm722, %v544, 0.0
      %838 = vadd.xlane.f32.xlu0 %v837
      %v839 = vpop.xlane.xlu0 %838
      %v840 = vsel %vm722, %v545, 0.0
      %841 = vadd.xlane.f32.xlu0 %v840
      %v842 = vpop.xlane.xlu0 %841
      %v843 = vsel %vm722, %v546, 0.0
      %844 = vadd.xlane.f32.xlu0 %v843
      %v845 = vpop.xlane.xlu0 %844
      %v846 = vsel %vm722, %v547, 0.0
      %847 = vadd.xlane.f32.xlu0 %v846
      %v848 = vpop.xlane.xlu0 %847
      %v849 = vsel %vm722, %v548, 0.0
      %850 = vadd.xlane.f32.xlu0 %v849
      %v851 = vpop.xlane.xlu0 %850
      %v852 = vsel %vm722, %v549, 0.0
      %853 = vadd.xlane.f32.xlu0 %v852
      %v854 = vpop.xlane.xlu0 %853
      %v855 = vsel %vm722, %v550, 0.0
      %856 = vadd.xlane.f32.xlu0 %v855
      %v857 = vpop.xlane.xlu0 %856
      %v858 = vsel %vm722, %v551, 0.0
      %859 = vadd.xlane.f32.xlu0 %v858
      %v860 = vpop.xlane.xlu0 %859
      %v861 = vsel %vm722, %v552, 0.0
      %862 = vadd.xlane.f32.xlu0 %v861
      %v863 = vpop.xlane.xlu0 %862
      %v864 = vsel %vm722, %v553, 0.0
      %865 = vadd.xlane.f32.xlu0 %v864
      %v866 = vpop.xlane.xlu0 %865
      %v867 = vsel %vm722, %v554, 0.0
      %868 = vadd.xlane.f32.xlu0 %v867
      %v869 = vpop.xlane.xlu0 %868
      %v870 = vsel %vm722, %v555, 0.0
      %871 = vadd.xlane.f32.xlu0 %v870
      %v872 = vpop.xlane.xlu0 %871
      %v873 = vsel %vm722, %v556, 0.0
      %874 = vadd.xlane.f32.xlu0 %v873
      %v875 = vpop.xlane.xlu0 %874
      %v876 = vsel %vm722, %v557, 0.0
      %877 = vadd.xlane.f32.xlu0 %v876
      %v878 = vpop.xlane.xlu0 %877
      %v879 = vsel %vm722, %v558, 0.0
      %880 = vadd.xlane.f32.xlu0 %v879
      %v881 = vpop.xlane.xlu0 %880
      %v882 = vsel %vm722, %v559, 0.0
      %883 = vadd.xlane.f32.xlu0 %v882
      %v884 = vpop.xlane.xlu0 %883
      %v885 = vsel %vm722, %v560, 0.0
      %886 = vadd.xlane.f32.xlu0 %v885
      %v887 = vpop.xlane.xlu0 %886
      %v888 = vsel %vm722, %v561, 0.0
      %889 = vadd.xlane.f32.xlu0 %v888
      %v890 = vpop.xlane.xlu0 %889
      %v891 = vsel %vm722, %v562, 0.0
      %892 = vadd.xlane.f32.xlu0 %v891
      %v893 = vpop.xlane.xlu0 %892
      %v894 = vsel %vm722, %v563, 0.0
      %895 = vadd.xlane.f32.xlu0 %v894
      %v896 = vpop.xlane.xlu0 %895
      %v897 = vsel %vm722, %v564, 0.0
      %898 = vadd.xlane.f32.xlu0 %v897
      %v899 = vpop.xlane.xlu0 %898
      %v900 = vsel %vm722, %v565, 0.0
      %901 = vadd.xlane.f32.xlu0 %v900
      %v902 = vpop.xlane.xlu0 %901
      %v903 = vsel %vm722, %v566, 0.0
      %904 = vadd.xlane.f32.xlu0 %v903
      %v905 = vpop.xlane.xlu0 %904
      %v906 = vsel %vm722, %v567, 0.0
      %907 = vadd.xlane.f32.xlu0 %v906
      %v908 = vpop.xlane.xlu0 %907
      %v909 = vsel %vm722, %v568, 0.0
      %910 = vadd.xlane.f32.xlu0 %v909
      %v911 = vpop.xlane.xlu0 %910
      %v912 = vsel %vm722, %v569, 0.0
      %913 = vadd.xlane.f32.xlu0 %v912
      %v914 = vpop.xlane.xlu0 %913
      %v915 = vsel %vm722, %v570, 0.0
      %916 = vadd.xlane.f32.xlu0 %v915
      %v917 = vpop.xlane.xlu0 %916
      %v918 = vsel %vm722, %v571, 0.0
      %919 = vadd.xlane.f32.xlu0 %v918
      %v920 = vpop.xlane.xlu0 %919
      %v921 = vsel %vm722, %v572, 0.0
      %922 = vadd.xlane.f32.xlu0 %v921
      %v923 = vpop.xlane.xlu0 %922
      %v924 = vsel %vm722, %v573, 0.0
      %925 = vadd.xlane.f32.xlu0 %v924
      %v926 = vpop.xlane.xlu0 %925
      %v927 = vsel %vm722, %v574, 0.0
      %928 = vadd.xlane.f32.xlu0 %v927
      %v929 = vpop.xlane.xlu0 %928
      %v930 = vsel %vm722, %v575, 0.0
      %931 = vadd.xlane.f32.xlu0 %v930
      %v932 = vpop.xlane.xlu0 %931
      %v933 = vsel %vm722, %v576, 0.0
      %934 = vadd.xlane.f32.xlu0 %v933
      %v935 = vpop.xlane.xlu0 %934
      %v936 = vsel %vm722, %v577, 0.0
      %937 = vadd.xlane.f32.xlu0 %v936
      %v938 = vpop.xlane.xlu0 %937
      %v939 = vsel %vm722, %v578, 0.0
      %940 = vadd.xlane.f32.xlu0 %v939
      %v941 = vpop.xlane.xlu0 %940
      %v942 = vsel %vm722, %v579, 0.0
      %943 = vadd.xlane.f32.xlu0 %v942
      %v944 = vpop.xlane.xlu0 %943
      %v945 = vsel %vm722, %v580, 0.0
      %946 = vadd.xlane.f32.xlu0 %v945
      %v947 = vpop.xlane.xlu0 %946
      %v948 = vsel %vm722, %v581, 0.0
      %949 = vadd.xlane.f32.xlu0 %v948
      %v950 = vpop.xlane.xlu0 %949
      %v951 = vsel %vm722, %v582, 0.0
      %952 = vadd.xlane.f32.xlu0 %v951
      %v953 = vpop.xlane.xlu0 %952
      %v954 = vsel %vm722, %v583, 0.0
      %955 = vadd.xlane.f32.xlu0 %v954
      %v956 = vpop.xlane.xlu0 %955
      %v957 = vsel %vm722, %v584, 0.0
      %958 = vadd.xlane.f32.xlu0 %v957
      %v959 = vpop.xlane.xlu0 %958
      %v960 = vsel %vm722, %v585, 0.0
      %961 = vadd.xlane.f32.xlu0 %v960
      %v962 = vpop.xlane.xlu0 %961
      %v963 = vsel %vm722, %v586, 0.0
      %964 = vadd.xlane.f32.xlu0 %v963
      %v965 = vpop.xlane.xlu0 %964
      %v966 = vsel %vm722, %v587, 0.0
      %967 = vadd.xlane.f32.xlu0 %v966
      %v968 = vpop.xlane.xlu0 %967
      %v969 = vsel %vm722, %v588, 0.0
      %970 = vadd.xlane.f32.xlu0 %v969
      %v971 = vpop.xlane.xlu0 %970
      %v972 = vsel %vm722, %v589, 0.0
      %973 = vadd.xlane.f32.xlu0 %v972
      %v974 = vpop.xlane.xlu0 %973
      %v975 = vsel %vm722, %v590, 0.0
      %976 = vadd.xlane.f32.xlu0 %v975
      %v977 = vpop.xlane.xlu0 %976
      %v978 = vsel %vm722, %v591, 0.0
      %979 = vadd.xlane.f32.xlu0 %v978
      %v980 = vpop.xlane.xlu0 %979
      %v981 = vsel %vm722, %v592, 0.0
      %982 = vadd.xlane.f32.xlu0 %v981
      %v983 = vpop.xlane.xlu0 %982
      %v984 = vsel %vm722, %v593, 0.0
      %985 = vadd.xlane.f32.xlu0 %v984
      %v986 = vpop.xlane.xlu0 %985
      %v987 = vsel %vm722, %v594, 0.0
      %988 = vadd.xlane.f32.xlu0 %v987
      %v989 = vpop.xlane.xlu0 %988
      %v990 = vsel %vm722, %v595, 0.0
      %991 = vadd.xlane.f32.xlu0 %v990
      %v992 = vpop.xlane.xlu0 %991
      %v993 = vsel %vm722, %v596, 0.0
      %994 = vadd.xlane.f32.xlu0 %v993
      %v995 = vpop.xlane.xlu0 %994
      %v996 = vsel %vm722, %v597, 0.0
      %997 = vadd.xlane.f32.xlu0 %v996
      %v998 = vpop.xlane.xlu0 %997
      %v999 = vsel %vm722, %v598, 0.0
      %1000 = vadd.xlane.f32.xlu0 %v999
      %v1001 = vpop.xlane.xlu0 %1000
      %v1002 = vsel %vm722, %v599, 0.0
      %1003 = vadd.xlane.f32.xlu0 %v1002
      %v1004 = vpop.xlane.xlu0 %1003
      %v1005 = vsel %vm722, %v600, 0.0
      %1006 = vadd.xlane.f32.xlu0 %v1005
      %v1007 = vpop.xlane.xlu0 %1006
      %v1008 = vsel %vm722, %v601, 0.0
      %1009 = vadd.xlane.f32.xlu0 %v1008
      %v1010 = vpop.xlane.xlu0 %1009
      %v1011 = vsel %vm722, %v602, 0.0
      %1012 = vadd.xlane.f32.xlu0 %v1011
      %v1013 = vpop.xlane.xlu0 %1012
      %v1014 = vsel %vm722, %v603, 0.0
      %1015 = vadd.xlane.f32.xlu0 %v1014
      %v1016 = vpop.xlane.xlu0 %1015
      %v1017 = vsel %vm722, %v604, 0.0
      %1018 = vadd.xlane.f32.xlu0 %v1017
      %v1019 = vpop.xlane.xlu0 %1018
      %v1020 = vsel %vm722, %v605, 0.0
      %1021 = vadd.xlane.f32.xlu0 %v1020
      %v1022 = vpop.xlane.xlu0 %1021
      %v1023 = vsel %vm722, %v606, 0.0
      %1024 = vadd.xlane.f32.xlu0 %v1023
      %v1025 = vpop.xlane.xlu0 %1024
      %v1026 = vsel %vm722, %v607, 0.0
      %1027 = vadd.xlane.f32.xlu0 %v1026
      %v1028 = vpop.xlane.xlu0 %1027
      %v1029 = vsel %vm722, %v608, 0.0
      %1030 = vadd.xlane.f32.xlu0 %v1029
      %v1031 = vpop.xlane.xlu0 %1030
      %v1032 = vsel %vm722, %v609, 0.0
      %1033 = vadd.xlane.f32.xlu0 %v1032
      %v1034 = vpop.xlane.xlu0 %1033
      %v1035 = vsel %vm722, %v610, 0.0
      %1036 = vadd.xlane.f32.xlu0 %v1035
      %v1037 = vpop.xlane.xlu0 %1036
      %v1038 = vsel %vm722, %v611, 0.0
      %1039 = vadd.xlane.f32.xlu0 %v1038
      %v1040 = vpop.xlane.xlu0 %1039
      %v1041 = vsel %vm722, %v612, 0.0
      %1042 = vadd.xlane.f32.xlu0 %v1041
      %v1043 = vpop.xlane.xlu0 %1042
      %v1044 = vsel %vm722, %v613, 0.0
      %1045 = vadd.xlane.f32.xlu0 %v1044
      %v1046 = vpop.xlane.xlu0 %1045
      %v1047 = vadd.f32 %v614, %v725
      %v1048 = vadd.f32 %v615, %v728
      %v1049 = vadd.f32 %v616, %v731
      %v1050 = vadd.f32 %v617, %v734
      %v1051 = vadd.f32 %v618, %v737
      %v1052 = vadd.f32 %v619, %v740
      %v1053 = vadd.f32 %v620, %v743
      %v1054 = vadd.f32 %v621, %v746
      %v1055 = vadd.f32 %v622, %v749
      %v1056 = vadd.f32 %v623, %v752
      %v1057 = vadd.f32 %v624, %v755
      %v1058 = vadd.f32 %v625, %v758
      %v1059 = vadd.f32 %v626, %v761
      %v1060 = vadd.f32 %v627, %v764
      %v1061 = vadd.f32 %v628, %v767
      %v1062 = vadd.f32 %v629, %v770
      %v1063 = vadd.f32 %v630, %v773
      %v1064 = vadd.f32 %v631, %v776
      %v1065 = vadd.f32 %v632, %v779
      %v1066 = vadd.f32 %v633, %v782
      %v1067 = vadd.f32 %v634, %v785
      %v1068 = vadd.f32 %v635, %v788
      %v1069 = vadd.f32 %v636, %v791
      %v1070 = vadd.f32 %v637, %v794
      %v1071 = vadd.f32 %v638, %v797
      %v1072 = vadd.f32 %v639, %v800
      %v1073 = vadd.f32 %v640, %v803
      %v1074 = vadd.f32 %v641, %v806
      %v1075 = vadd.f32 %v642, %v809
      %v1076 = vadd.f32 %v643, %v812
      %v1077 = vadd.f32 %v644, %v815
      %v1078 = vadd.f32 %v645, %v818
      %v1079 = vadd.f32 %v646, %v821
      %v1080 = vadd.f32 %v647, %v824
      %v1081 = vadd.f32 %v648, %v827
      %v1082 = vadd.f32 %v649, %v830
      %v1083 = vadd.f32 %v650, %v833
      %v1084 = vadd.f32 %v651, %v836
      %v1085 = vadd.f32 %v652, %v839
      %v1086 = vadd.f32 %v653, %v842
      %v1087 = vadd.f32 %v654, %v845
      %v1088 = vadd.f32 %v655, %v848
      %v1089 = vadd.f32 %v656, %v851
      %v1090 = vadd.f32 %v657, %v854
      %v1091 = vadd.f32 %v658, %v857
      %v1092 = vadd.f32 %v659, %v860
      %v1093 = vadd.f32 %v660, %v863
      %v1094 = vadd.f32 %v661, %v866
      %v1095 = vadd.f32 %v662, %v869
      %v1096 = vadd.f32 %v663, %v872
      %v1097 = vadd.f32 %v664, %v875
      %v1098 = vadd.f32 %v665, %v878
      %v1099 = vadd.f32 %v666, %v881
      %v1100 = vadd.f32 %v667, %v884
      %v1101 = vadd.f32 %v668, %v887
      %v1102 = vadd.f32 %v669, %v890
      %v1103 = vadd.f32 %v670, %v893
      %v1104 = vadd.f32 %v671, %v896
      %v1105 = vadd.f32 %v672, %v899
      %v1106 = vadd.f32 %v673, %v902
      %v1107 = vadd.f32 %v674, %v905
      %v1108 = vadd.f32 %v675, %v908
      %v1109 = vadd.f32 %v676, %v911
      %v1110 = vadd.f32 %v677, %v914
      %v1111 = vadd.f32 %v678, %v917
      %v1112 = vadd.f32 %v679, %v920
      %v1113 = vadd.f32 %v680, %v923
      %v1114 = vadd.f32 %v681, %v926
      %v1115 = vadd.f32 %v682, %v929
      %v1116 = vadd.f32 %v683, %v932
      %v1117 = vadd.f32 %v684, %v935
      %v1118 = vadd.f32 %v685, %v938
      %v1119 = vadd.f32 %v686, %v941
      %v1120 = vadd.f32 %v687, %v944
      %v1121 = vadd.f32 %v688, %v947
      %v1122 = vadd.f32 %v689, %v950
      %v1123 = vadd.f32 %v690, %v953
      %v1124 = vadd.f32 %v691, %v956
      %v1125 = vadd.f32 %v692, %v959
      %v1126 = vadd.f32 %v693, %v962
      %v1127 = vadd.f32 %v694, %v965
      %v1128 = vadd.f32 %v695, %v968
      %v1129 = vadd.f32 %v696, %v971
      %v1130 = vadd.f32 %v697, %v974
      %v1131 = vadd.f32 %v698, %v977
      %v1132 = vadd.f32 %v699, %v980
      %v1133 = vadd.f32 %v700, %v983
      %v1134 = vadd.f32 %v701, %v986
      %v1135 = vadd.f32 %v702, %v989
      %v1136 = vadd.f32 %v703, %v992
      %v1137 = vadd.f32 %v704, %v995
      %v1138 = vadd.f32 %v705, %v998
      %v1139 = vadd.f32 %v706, %v1001
      %v1140 = vadd.f32 %v707, %v1004
      %v1141 = vadd.f32 %v708, %v1007
      %v1142 = vadd.f32 %v709, %v1010
      %v1143 = vadd.f32 %v710, %v1013
      %v1144 = vadd.f32 %v711, %v1016
      %v1145 = vadd.f32 %v712, %v1019
      %v1146 = vadd.f32 %v713, %v1022
      %v1147 = vadd.f32 %v714, %v1025
      %v1148 = vadd.f32 %v715, %v1028
      %v1149 = vadd.f32 %v716, %v1031
      %v1150 = vadd.f32 %v717, %v1034
      %v1151 = vadd.f32 %v718, %v1037
      %v1152 = vadd.f32 %v719, %v1040
      %v1153 = vadd.f32 %v720, %v1043
      %v1154 = vadd.f32 %v721, %v1046
      %vm1155 = vcmask 7168
      %1156 = vst.msk [vmem:[#allocation2] sm:$0xff] %vm1155, %v1047
      %1157 = vst.msk [vmem:[#allocation2 + $0x8] sm:$0xff] %vm1155, %v1048
      %1158 = vst.msk [vmem:[#allocation2 + $0x10] sm:$0xff] %vm1155, %v1049
      %1159 = vst.msk [vmem:[#allocation2 + $0x18] sm:$0xff] %vm1155, %v1050
      %1160 = vst.msk [vmem:[#allocation2 + $0x20] sm:$0xff] %vm1155, %v1051
      %1161 = vst.msk [vmem:[#allocation2 + $0x28] sm:$0xff] %vm1155, %v1052
      %1162 = vst.msk [vmem:[#allocation2 + $0x30] sm:$0xff] %vm1155, %v1053
      %1163 = vst.msk [vmem:[#allocation2 + $0x38] sm:$0xff] %vm1155, %v1054
      %1164 = vst.msk [vmem:[#allocation2 + $0x40] sm:$0xff] %vm1155, %v1055
      %1165 = vst.msk [vmem:[#allocation2 + $0x48] sm:$0xff] %vm1155, %v1056
      %1166 = vst.msk [vmem:[#allocation2 + $0x50] sm:$0xff] %vm1155, %v1057
      %1167 = vst.msk [vmem:[#allocation2 + $0x58] sm:$0xff] %vm1155, %v1058
      %1168 = vst.msk [vmem:[#allocation2 + $0x60] sm:$0xff] %vm1155, %v1059
      %1169 = vst.msk [vmem:[#allocation2 + $0x68] sm:$0xff] %vm1155, %v1060
      %1170 = vst.msk [vmem:[#allocation2 + $0x70] sm:$0xff] %vm1155, %v1061
      %1171 = vst.msk [vmem:[#allocation2 + $0x78] sm:$0xff] %vm1155, %v1062
      %1172 = vst.msk [vmem:[#allocation2 + $0x80] sm:$0xff] %vm1155, %v1063
      %1173 = vst.msk [vmem:[#allocation2 + $0x88] sm:$0xff] %vm1155, %v1064
      %1174 = vst.msk [vmem:[#allocation2 + $0x90] sm:$0xff] %vm1155, %v1065
      %1175 = vst.msk [vmem:[#allocation2 + $0x98] sm:$0xff] %vm1155, %v1066
      %1176 = vst.msk [vmem:[#allocation2 + $0xa0] sm:$0xff] %vm1155, %v1067
      %1177 = vst.msk [vmem:[#allocation2 + $0xa8] sm:$0xff] %vm1155, %v1068
      %1178 = vst.msk [vmem:[#allocation2 + $0xb0] sm:$0xff] %vm1155, %v1069
      %1179 = vst.msk [vmem:[#allocation2 + $0xb8] sm:$0xff] %vm1155, %v1070
      %1180 = vst.msk [vmem:[#allocation2 + $0xc0] sm:$0xff] %vm1155, %v1071
      %1181 = vst.msk [vmem:[#allocation2 + $0xc8] sm:$0xff] %vm1155, %v1072
      %1182 = vst.msk [vmem:[#allocation2 + $0xd0] sm:$0xff] %vm1155, %v1073
      %1183 = vst.msk [vmem:[#allocation2 + $0xd8] sm:$0xff] %vm1155, %v1074
      %1184 = vst.msk [vmem:[#allocation2 + $0xe0] sm:$0xff] %vm1155, %v1075
      %1185 = vst.msk [vmem:[#allocation2 + $0xe8] sm:$0xff] %vm1155, %v1076
      %1186 = vst.msk [vmem:[#allocation2 + $0xf0] sm:$0xff] %vm1155, %v1077
      %1187 = vst.msk [vmem:[#allocation2 + $0xf8] sm:$0xff] %vm1155, %v1078
      %1188 = vst.msk [vmem:[#allocation2 + $0x100] sm:$0xff] %vm1155, %v1079
      %1189 = vst.msk [vmem:[#allocation2 + $0x108] sm:$0xff] %vm1155, %v1080
      %1190 = vst.msk [vmem:[#allocation2 + $0x110] sm:$0xff] %vm1155, %v1081
      %1191 = vst.msk [vmem:[#allocation2 + $0x118] sm:$0xff] %vm1155, %v1082
      %1192 = vst.msk [vmem:[#allocation2 + $0x120] sm:$0xff] %vm1155, %v1083
      %1193 = vst.msk [vmem:[#allocation2 + $0x128] sm:$0xff] %vm1155, %v1084
      %1194 = vst.msk [vmem:[#allocation2 + $0x130] sm:$0xff] %vm1155, %v1085
      %1195 = vst.msk [vmem:[#allocation2 + $0x138] sm:$0xff] %vm1155, %v1086
      %1196 = vst.msk [vmem:[#allocation2 + $0x140] sm:$0xff] %vm1155, %v1087
      %1197 = vst.msk [vmem:[#allocation2 + $0x148] sm:$0xff] %vm1155, %v1088
      %1198 = vst.msk [vmem:[#allocation2 + $0x150] sm:$0xff] %vm1155, %v1089
      %1199 = vst.msk [vmem:[#allocation2 + $0x158] sm:$0xff] %vm1155, %v1090
      %1200 = vst.msk [vmem:[#allocation2 + $0x160] sm:$0xff] %vm1155, %v1091
      %1201 = vst.msk [vmem:[#allocation2 + $0x168] sm:$0xff] %vm1155, %v1092
      %1202 = vst.msk [vmem:[#allocation2 + $0x170] sm:$0xff] %vm1155, %v1093
      %1203 = vst.msk [vmem:[#allocation2 + $0x178] sm:$0xff] %vm1155, %v1094
      %1204 = vst.msk [vmem:[#allocation2 + $0x180] sm:$0xff] %vm1155, %v1095
      %1205 = vst.msk [vmem:[#allocation2 + $0x188] sm:$0xff] %vm1155, %v1096
      %1206 = vst.msk [vmem:[#allocation2 + $0x190] sm:$0xff] %vm1155, %v1097
      %1207 = vst.msk [vmem:[#allocation2 + $0x198] sm:$0xff] %vm1155, %v1098
      %1208 = vst.msk [vmem:[#allocation2 + $0x1a0] sm:$0xff] %vm1155, %v1099
      %1209 = vst.msk [vmem:[#allocation2 + $0x1a8] sm:$0xff] %vm1155, %v1100
      %1210 = vst.msk [vmem:[#allocation2 + $0x1b0] sm:$0xff] %vm1155, %v1101
      %1211 = vst.msk [vmem:[#allocation2 + $0x1b8] sm:$0xff] %vm1155, %v1102
      %1212 = vst.msk [vmem:[#allocation2 + $0x1c0] sm:$0xff] %vm1155, %v1103
      %1213 = vst.msk [vmem:[#allocation2 + $0x1c8] sm:$0xff] %vm1155, %v1104
      %1214 = vst.msk [vmem:[#allocation2 + $0x1d0] sm:$0xff] %vm1155, %v1105
      %1215 = vst.msk [vmem:[#allocation2 + $0x1d8] sm:$0xff] %vm1155, %v1106
      %1216 = vst.msk [vmem:[#allocation2 + $0x1e0] sm:$0xff] %vm1155, %v1107
      %1217 = vst.msk [vmem:[#allocation2 + $0x1e8] sm:$0xff] %vm1155, %v1108
      %1218 = vst.msk [vmem:[#allocation2 + $0x1f0] sm:$0xff] %vm1155, %v1109
      %1219 = vst.msk [vmem:[#allocation2 + $0x1f8] sm:$0xff] %vm1155, %v1110
      %1220 = vst.msk [vmem:[#allocation2 + $0x200] sm:$0xff] %vm1155, %v1111
      %1221 = vst.msk [vmem:[#allocation2 + $0x208] sm:$0xff] %vm1155, %v1112
      %1222 = vst.msk [vmem:[#allocation2 + $0x210] sm:$0xff] %vm1155, %v1113
      %1223 = vst.msk [vmem:[#allocation2 + $0x218] sm:$0xff] %vm1155, %v1114
      %1224 = vst.msk [vmem:[#allocation2 + $0x220] sm:$0xff] %vm1155, %v1115
      %1225 = vst.msk [vmem:[#allocation2 + $0x228] sm:$0xff] %vm1155, %v1116
      %1226 = vst.msk [vmem:[#allocation2 + $0x230] sm:$0xff] %vm1155, %v1117
      %1227 = vst.msk [vmem:[#allocation2 + $0x238] sm:$0xff] %vm1155, %v1118
      %1228 = vst.msk [vmem:[#allocation2 + $0x240] sm:$0xff] %vm1155, %v1119
      %1229 = vst.msk [vmem:[#allocation2 + $0x248] sm:$0xff] %vm1155, %v1120
      %1230 = vst.msk [vmem:[#allocation2 + $0x250] sm:$0xff] %vm1155, %v1121
      %1231 = vst.msk [vmem:[#allocation2 + $0x258] sm:$0xff] %vm1155, %v1122
      %1232 = vst.msk [vmem:[#allocation2 + $0x260] sm:$0xff] %vm1155, %v1123
      %1233 = vst.msk [vmem:[#allocation2 + $0x268] sm:$0xff] %vm1155, %v1124
      %1234 = vst.msk [vmem:[#allocation2 + $0x270] sm:$0xff] %vm1155, %v1125
      %1235 = vst.msk [vmem:[#allocation2 + $0x278] sm:$0xff] %vm1155, %v1126
      %1236 = vst.msk [vmem:[#allocation2 + $0x280] sm:$0xff] %vm1155, %v1127
      %1237 = vst.msk [vmem:[#allocation2 + $0x288] sm:$0xff] %vm1155, %v1128
      %1238 = vst.msk [vmem:[#allocation2 + $0x290] sm:$0xff] %vm1155, %v1129
      %1239 = vst.msk [vmem:[#allocation2 + $0x298] sm:$0xff] %vm1155, %v1130
      %1240 = vst.msk [vmem:[#allocation2 + $0x2a0] sm:$0xff] %vm1155, %v1131
      %1241 = vst.msk [vmem:[#allocation2 + $0x2a8] sm:$0xff] %vm1155, %v1132
      %1242 = vst.msk [vmem:[#allocation2 + $0x2b0] sm:$0xff] %vm1155, %v1133
      %1243 = vst.msk [vmem:[#allocation2 + $0x2b8] sm:$0xff] %vm1155, %v1134
      %1244 = vst.msk [vmem:[#allocation2 + $0x2c0] sm:$0xff] %vm1155, %v1135
      %1245 = vst.msk [vmem:[#allocation2 + $0x2c8] sm:$0xff] %vm1155, %v1136
      %1246 = vst.msk [vmem:[#allocation2 + $0x2d0] sm:$0xff] %vm1155, %v1137
      %1247 = vst.msk [vmem:[#allocation2 + $0x2d8] sm:$0xff] %vm1155, %v1138
      %1248 = vst.msk [vmem:[#allocation2 + $0x2e0] sm:$0xff] %vm1155, %v1139
      %1249 = vst.msk [vmem:[#allocation2 + $0x2e8] sm:$0xff] %vm1155, %v1140
      %1250 = vst.msk [vmem:[#allocation2 + $0x2f0] sm:$0xff] %vm1155, %v1141
      %1251 = vst.msk [vmem:[#allocation2 + $0x2f8] sm:$0xff] %vm1155, %v1142
      %1252 = vst.msk [vmem:[#allocation2 + $0x300] sm:$0xff] %vm1155, %v1143
      %1253 = vst.msk [vmem:[#allocation2 + $0x308] sm:$0xff] %vm1155, %v1144
      %1254 = vst.msk [vmem:[#allocation2 + $0x310] sm:$0xff] %vm1155, %v1145
      %1255 = vst.msk [vmem:[#allocation2 + $0x318] sm:$0xff] %vm1155, %v1146
      %1256 = vst.msk [vmem:[#allocation2 + $0x320] sm:$0xff] %vm1155, %v1147
      %1257 = vst.msk [vmem:[#allocation2 + $0x328] sm:$0xff] %vm1155, %v1148
      %1258 = vst.msk [vmem:[#allocation2 + $0x330] sm:$0xff] %vm1155, %v1149
      %1259 = vst.msk [vmem:[#allocation2 + $0x338] sm:$0xff] %vm1155, %v1150
      %1260 = vst.msk [vmem:[#allocation2 + $0x340] sm:$0xff] %vm1155, %v1151
      %1261 = vst.msk [vmem:[#allocation2 + $0x348] sm:$0xff] %vm1155, %v1152
      %1262 = vst.msk [vmem:[#allocation2 + $0x350] sm:$0xff] %vm1155, %v1153
      %1263 = vst.msk [vmem:[#allocation2 + $0x358] sm:$0xff] %vm1155, %v1154
      %v1264 = vld [vmem:[#allocation3] sm:$0xff]
      %v1265 = vld [vmem:[#allocation3 + $0x8] sm:$0xff]
      %v1266 = vld [vmem:[#allocation3 + $0x10] sm:$0xff]
      %v1267 = vld [vmem:[#allocation3 + $0x18] sm:$0xff]
      %v1268 = vld [vmem:[#allocation3 + $0x20] sm:$0xff]
      %v1269 = vld [vmem:[#allocation3 + $0x28] sm:$0xff]
      %v1270 = vld [vmem:[#allocation3 + $0x30] sm:$0xff]
      %v1271 = vld [vmem:[#allocation3 + $0x38] sm:$0xff]
      %v1272 = vld [vmem:[#allocation3 + $0x40] sm:$0xff]
      %v1273 = vld [vmem:[#allocation3 + $0x48] sm:$0xff]
      %v1274 = vld [vmem:[#allocation3 + $0x50] sm:$0xff]
      %v1275 = vld [vmem:[#allocation3 + $0x58] sm:$0xff]
      %v1276 = vld [vmem:[#allocation3 + $0x60] sm:$0xff]
      %v1277 = vld [vmem:[#allocation3 + $0x68] sm:$0xff]
      %v1278 = vld [vmem:[#allocation3 + $0x70] sm:$0xff]
      %v1279 = vld [vmem:[#allocation3 + $0x78] sm:$0xff]
      %v1280 = vld [vmem:[#allocation3 + $0x80] sm:$0xff]
      %v1281 = vld [vmem:[#allocation3 + $0x88] sm:$0xff]
      %v1282 = vld [vmem:[#allocation3 + $0x90] sm:$0xff]
      %v1283 = vld [vmem:[#allocation3 + $0x98] sm:$0xff]
      %v1284 = vld [vmem:[#allocation3 + $0xa0] sm:$0xff]
      %v1285 = vld [vmem:[#allocation3 + $0xa8] sm:$0xff]
      %v1286 = vld [vmem:[#allocation3 + $0xb0] sm:$0xff]
      %v1287 = vld [vmem:[#allocation3 + $0xb8] sm:$0xff]
      %v1288 = vld [vmem:[#allocation3 + $0xc0] sm:$0xff]
      %v1289 = vld [vmem:[#allocation3 + $0xc8] sm:$0xff]
      %v1290 = vld [vmem:[#allocation3 + $0xd0] sm:$0xff]
      %v1291 = vld [vmem:[#allocation3 + $0xd8] sm:$0xff]
      %v1292 = vld [vmem:[#allocation3 + $0xe0] sm:$0xff]
      %v1293 = vld [vmem:[#allocation3 + $0xe8] sm:$0xff]
      %v1294 = vld [vmem:[#allocation3 + $0xf0] sm:$0xff]
      %v1295 = vld [vmem:[#allocation3 + $0xf8] sm:$0xff]
      %v1296 = vld [vmem:[#allocation3 + $0x100] sm:$0xff]
      %v1297 = vld [vmem:[#allocation3 + $0x108] sm:$0xff]
      %v1298 = vld [vmem:[#allocation3 + $0x110] sm:$0xff]
      %v1299 = vld [vmem:[#allocation3 + $0x118] sm:$0xff]
      %v1300 = vld [vmem:[#allocation3 + $0x120] sm:$0xff]
      %v1301 = vld [vmem:[#allocation3 + $0x128] sm:$0xff]
      %v1302 = vld [vmem:[#allocation3 + $0x130] sm:$0xff]
      %v1303 = vld [vmem:[#allocation3 + $0x138] sm:$0xff]
      %v1304 = vld [vmem:[#allocation3 + $0x140] sm:$0xff]
      %v1305 = vld [vmem:[#allocation3 + $0x148] sm:$0xff]
      %v1306 = vld [vmem:[#allocation3 + $0x150] sm:$0xff]
      %v1307 = vld [vmem:[#allocation3 + $0x158] sm:$0xff]
      %v1308 = vld [vmem:[#allocation3 + $0x160] sm:$0xff]
      %v1309 = vld [vmem:[#allocation3 + $0x168] sm:$0xff]
      %v1310 = vld [vmem:[#allocation3 + $0x170] sm:$0xff]
      %v1311 = vld [vmem:[#allocation3 + $0x178] sm:$0xff]
      %v1312 = vld [vmem:[#allocation3 + $0x180] sm:$0xff]
      %v1313 = vld [vmem:[#allocation3 + $0x188] sm:$0xff]
      %v1314 = vld [vmem:[#allocation3 + $0x190] sm:$0xff]
      %v1315 = vld [vmem:[#allocation3 + $0x198] sm:$0xff]
      %v1316 = vld [vmem:[#allocation3 + $0x1a0] sm:$0xff]
      %v1317 = vld [vmem:[#allocation3 + $0x1a8] sm:$0xff]
      %v1318 = vld [vmem:[#allocation3 + $0x1b0] sm:$0xff]
      %v1319 = vld [vmem:[#allocation3 + $0x1b8] sm:$0xff]
      %v1320 = vld [vmem:[#allocation3 + $0x1c0] sm:$0xff]
      %v1321 = vld [vmem:[#allocation3 + $0x1c8] sm:$0xff]
      %v1322 = vld [vmem:[#allocation3 + $0x1d0] sm:$0xff]
      %v1323 = vld [vmem:[#allocation3 + $0x1d8] sm:$0xff]
      %v1324 = vld [vmem:[#allocation3 + $0x1e0] sm:$0xff]
      %v1325 = vld [vmem:[#allocation3 + $0x1e8] sm:$0xff]
      %v1326 = vld [vmem:[#allocation3 + $0x1f0] sm:$0xff]
      %v1327 = vld [vmem:[#allocation3 + $0x1f8] sm:$0xff]
      %v1328 = vld [vmem:[#allocation3 + $0x200] sm:$0xff]
      %v1329 = vld [vmem:[#allocation3 + $0x208] sm:$0xff]
      %v1330 = vld [vmem:[#allocation3 + $0x210] sm:$0xff]
      %v1331 = vld [vmem:[#allocation3 + $0x218] sm:$0xff]
      %v1332 = vld [vmem:[#allocation3 + $0x220] sm:$0xff]
      %v1333 = vld [vmem:[#allocation3 + $0x228] sm:$0xff]
      %v1334 = vld [vmem:[#allocation3 + $0x230] sm:$0xff]
      %v1335 = vld [vmem:[#allocation3 + $0x238] sm:$0xff]
      %v1336 = vld [vmem:[#allocation3 + $0x240] sm:$0xff]
      %v1337 = vld [vmem:[#allocation3 + $0x248] sm:$0xff]
      %v1338 = vld [vmem:[#allocation3 + $0x250] sm:$0xff]
      %v1339 = vld [vmem:[#allocation3 + $0x258] sm:$0xff]
      %v1340 = vld [vmem:[#allocation3 + $0x260] sm:$0xff]
      %v1341 = vld [vmem:[#allocation3 + $0x268] sm:$0xff]
      %v1342 = vld [vmem:[#allocation3 + $0x270] sm:$0xff]
      %v1343 = vld [vmem:[#allocation3 + $0x278] sm:$0xff]
      %v1344 = vld [vmem:[#allocation3 + $0x280] sm:$0xff]
      %v1345 = vld [vmem:[#allocation3 + $0x288] sm:$0xff]
      %v1346 = vld [vmem:[#allocation3 + $0x290] sm:$0xff]
      %v1347 = vld [vmem:[#allocation3 + $0x298] sm:$0xff]
      %v1348 = vld [vmem:[#allocation3 + $0x2a0] sm:$0xff]
      %v1349 = vld [vmem:[#allocation3 + $0x2a8] sm:$0xff]
      %v1350 = vld [vmem:[#allocation3 + $0x2b0] sm:$0xff]
      %v1351 = vld [vmem:[#allocation3 + $0x2b8] sm:$0xff]
      %v1352 = vld [vmem:[#allocation3 + $0x2c0] sm:$0xff]
      %v1353 = vld [vmem:[#allocation3 + $0x2c8] sm:$0xff]
      %v1354 = vld [vmem:[#allocation3 + $0x2d0] sm:$0xff]
      %v1355 = vld [vmem:[#allocation3 + $0x2d8] sm:$0xff]
      %v1356 = vld [vmem:[#allocation3 + $0x2e0] sm:$0xff]
      %v1357 = vld [vmem:[#allocation3 + $0x2e8] sm:$0xff]
      %v1358 = vld [vmem:[#allocation3 + $0x2f0] sm:$0xff]
      %v1359 = vld [vmem:[#allocation3 + $0x2f8] sm:$0xff]
      %v1360 = vld [vmem:[#allocation3 + $0x300] sm:$0xff]
      %v1361 = vld [vmem:[#allocation3 + $0x308] sm:$0xff]
      %v1362 = vld [vmem:[#allocation3 + $0x310] sm:$0xff]
      %v1363 = vld [vmem:[#allocation3 + $0x318] sm:$0xff]
      %v1364 = vld [vmem:[#allocation3 + $0x320] sm:$0xff]
      %v1365 = vld [vmem:[#allocation3 + $0x328] sm:$0xff]
      %v1366 = vld [vmem:[#allocation3 + $0x330] sm:$0xff]
      %v1367 = vld [vmem:[#allocation3 + $0x338] sm:$0xff]
      %v1368 = vld [vmem:[#allocation3 + $0x340] sm:$0xff]
      %v1369 = vld [vmem:[#allocation3 + $0x348] sm:$0xff]
      %v1370 = vld [vmem:[#allocation3 + $0x350] sm:$0xff]
      %v1371 = vld [vmem:[#allocation3 + $0x358] sm:$0xff]
      %v1372 = vmul.f32 %v506, %v506
      %v1373 = vmul.f32 %v507, %v507
      %v1374 = vmul.f32 %v508, %v508
      %v1375 = vmul.f32 %v509, %v509
      %v1376 = vmul.f32 %v510, %v510
      %v1377 = vmul.f32 %v511, %v511
      %v1378 = vmul.f32 %v512, %v512
      %v1379 = vmul.f32 %v513, %v513
      %v1380 = vmul.f32 %v514, %v514
      %v1381 = vmul.f32 %v515, %v515
      %v1382 = vmul.f32 %v516, %v516
      %v1383 = vmul.f32 %v517, %v517
      %v1384 = vmul.f32 %v518, %v518
      %v1385 = vmul.f32 %v519, %v519
      %v1386 = vmul.f32 %v520, %v520
      %v1387 = vmul.f32 %v521, %v521
      %v1388 = vmul.f32 %v522, %v522
      %v1389 = vmul.f32 %v523, %v523
      %v1390 = vmul.f32 %v524, %v524
      %v1391 = vmul.f32 %v525, %v525
      %v1392 = vmul.f32 %v526, %v526
      %v1393 = vmul.f32 %v527, %v527
      %v1394 = vmul.f32 %v528, %v528
      %v1395 = vmul.f32 %v529, %v529
      %v1396 = vmul.f32 %v530, %v530
      %v1397 = vmul.f32 %v531, %v531
      %v1398 = vmul.f32 %v532, %v532
      %v1399 = vmul.f32 %v533, %v533
      %v1400 = vmul.f32 %v534, %v534
      %v1401 = vmul.f32 %v535, %v535
      %v1402 = vmul.f32 %v536, %v536
      %v1403 = vmul.f32 %v537, %v537
      %v1404 = vmul.f32 %v538, %v538
      %v1405 = vmul.f32 %v539, %v539
      %v1406 = vmul.f32 %v540, %v540
      %v1407 = vmul.f32 %v541, %v541
      %v1408 = vmul.f32 %v542, %v542
      %v1409 = vmul.f32 %v543, %v543
      %v1410 = vmul.f32 %v544, %v544
      %v1411 = vmul.f32 %v545, %v545
      %v1412 = vmul.f32 %v546, %v546
      %v1413 = vmul.f32 %v547, %v547
      %v1414 = vmul.f32 %v548, %v548
      %v1415 = vmul.f32 %v549, %v549
      %v1416 = vmul.f32 %v550, %v550
      %v1417 = vmul.f32 %v551, %v551
      %v1418 = vmul.f32 %v552, %v552
      %v1419 = vmul.f32 %v553, %v553
      %v1420 = vmul.f32 %v554, %v554
      %v1421 = vmul.f32 %v555, %v555
      %v1422 = vmul.f32 %v556, %v556
      %v1423 = vmul.f32 %v557, %v557
      %v1424 = vmul.f32 %v558, %v558
      %v1425 = vmul.f32 %v559, %v559
      %v1426 = vmul.f32 %v560, %v560
      %v1427 = vmul.f32 %v561, %v561
      %v1428 = vmul.f32 %v562, %v562
      %v1429 = vmul.f32 %v563, %v563
      %v1430 = vmul.f32 %v564, %v564
      %v1431 = vmul.f32 %v565, %v565
      %v1432 = vmul.f32 %v566, %v566
      %v1433 = vmul.f32 %v567, %v567
      %v1434 = vmul.f32 %v568, %v568
      %v1435 = vmul.f32 %v569, %v569
      %v1436 = vmul.f32 %v570, %v570
      %v1437 = vmul.f32 %v571, %v571
      %v1438 = vmul.f32 %v572, %v572
      %v1439 = vmul.f32 %v573, %v573
      %v1440 = vmul.f32 %v574, %v574
      %v1441 = vmul.f32 %v575, %v575
      %v1442 = vmul.f32 %v576, %v576
      %v1443 = vmul.f32 %v577, %v577
      %v1444 = vmul.f32 %v578, %v578
      %v1445 = vmul.f32 %v579, %v579
      %v1446 = vmul.f32 %v580, %v580
      %v1447 = vmul.f32 %v581, %v581
      %v1448 = vmul.f32 %v582, %v582
      %v1449 = vmul.f32 %v583, %v583
      %v1450 = vmul.f32 %v584, %v584
      %v1451 = vmul.f32 %v585, %v585
      %v1452 = vmul.f32 %v586, %v586
      %v1453 = vmul.f32 %v587, %v587
      %v1454 = vmul.f32 %v588, %v588
      %v1455 = vmul.f32 %v589, %v589
      %v1456 = vmul.f32 %v590, %v590
      %v1457 = vmul.f32 %v591, %v591
      %v1458 = vmul.f32 %v592, %v592
      %v1459 = vmul.f32 %v593, %v593
      %v1460 = vmul.f32 %v594, %v594
      %v1461 = vmul.f32 %v595, %v595
      %v1462 = vmul.f32 %v596, %v596
      %v1463 = vmul.f32 %v597, %v597
      %v1464 = vmul.f32 %v598, %v598
      %v1465 = vmul.f32 %v599, %v599
      %v1466 = vmul.f32 %v600, %v600
      %v1467 = vmul.f32 %v601, %v601
      %v1468 = vmul.f32 %v602, %v602
      %v1469 = vmul.f32 %v603, %v603
      %v1470 = vmul.f32 %v604, %v604
      %v1471 = vmul.f32 %v605, %v605
      %v1472 = vmul.f32 %v606, %v606
      %v1473 = vmul.f32 %v607, %v607
      %v1474 = vmul.f32 %v608, %v608
      %v1475 = vmul.f32 %v609, %v609
      %v1476 = vmul.f32 %v610, %v610
      %v1477 = vmul.f32 %v611, %v611
      %v1478 = vmul.f32 %v612, %v612
      %v1479 = vmul.f32 %v613, %v613
      %v1480 = vsel %vm722, %v1372, 0.0
      %1481 = vadd.xlane.f32.xlu0 %v1480
      %v1482 = vpop.xlane.xlu0 %1481
      %v1483 = vsel %vm722, %v1373, 0.0
      %1484 = vadd.xlane.f32.xlu0 %v1483
      %v1485 = vpop.xlane.xlu0 %1484
      %v1486 = vsel %vm722, %v1374, 0.0
      %1487 = vadd.xlane.f32.xlu0 %v1486
      %v1488 = vpop.xlane.xlu0 %1487
      %v1489 = vsel %vm722, %v1375, 0.0
      %1490 = vadd.xlane.f32.xlu0 %v1489
      %v1491 = vpop.xlane.xlu0 %1490
      %v1492 = vsel %vm722, %v1376, 0.0
      %1493 = vadd.xlane.f32.xlu0 %v1492
      %v1494 = vpop.xlane.xlu0 %1493
      %v1495 = vsel %vm722, %v1377, 0.0
      %1496 = vadd.xlane.f32.xlu0 %v1495
      %v1497 = vpop.xlane.xlu0 %1496
      %v1498 = vsel %vm722, %v1378, 0.0
      %1499 = vadd.xlane.f32.xlu0 %v1498
      %v1500 = vpop.xlane.xlu0 %1499
      %v1501 = vsel %vm722, %v1379, 0.0
      %1502 = vadd.xlane.f32.xlu0 %v1501
      %v1503 = vpop.xlane.xlu0 %1502
      %v1504 = vsel %vm722, %v1380, 0.0
      %1505 = vadd.xlane.f32.xlu0 %v1504
      %v1506 = vpop.xlane.xlu0 %1505
      %v1507 = vsel %vm722, %v1381, 0.0
      %1508 = vadd.xlane.f32.xlu0 %v1507
      %v1509 = vpop.xlane.xlu0 %1508
      %v1510 = vsel %vm722, %v1382, 0.0
      %1511 = vadd.xlane.f32.xlu0 %v1510
      %v1512 = vpop.xlane.xlu0 %1511
      %v1513 = vsel %vm722, %v1383, 0.0
      %1514 = vadd.xlane.f32.xlu0 %v1513
      %v1515 = vpop.xlane.xlu0 %1514
      %v1516 = vsel %vm722, %v1384, 0.0
      %1517 = vadd.xlane.f32.xlu0 %v1516
      %v1518 = vpop.xlane.xlu0 %1517
      %v1519 = vsel %vm722, %v1385, 0.0
      %1520 = vadd.xlane.f32.xlu0 %v1519
      %v1521 = vpop.xlane.xlu0 %1520
      %v1522 = vsel %vm722, %v1386, 0.0
      %1523 = vadd.xlane.f32.xlu0 %v1522
      %v1524 = vpop.xlane.xlu0 %1523
      %v1525 = vsel %vm722, %v1387, 0.0
      %1526 = vadd.xlane.f32.xlu0 %v1525
      %v1527 = vpop.xlane.xlu0 %1526
      %v1528 = vsel %vm722, %v1388, 0.0
      %1529 = vadd.xlane.f32.xlu0 %v1528
      %v1530 = vpop.xlane.xlu0 %1529
      %v1531 = vsel %vm722, %v1389, 0.0
      %1532 = vadd.xlane.f32.xlu0 %v1531
      %v1533 = vpop.xlane.xlu0 %1532
      %v1534 = vsel %vm722, %v1390, 0.0
      %1535 = vadd.xlane.f32.xlu0 %v1534
      %v1536 = vpop.xlane.xlu0 %1535
      %v1537 = vsel %vm722, %v1391, 0.0
      %1538 = vadd.xlane.f32.xlu0 %v1537
      %v1539 = vpop.xlane.xlu0 %1538
      %v1540 = vsel %vm722, %v1392, 0.0
      %1541 = vadd.xlane.f32.xlu0 %v1540
      %v1542 = vpop.xlane.xlu0 %1541
      %v1543 = vsel %vm722, %v1393, 0.0
      %1544 = vadd.xlane.f32.xlu0 %v1543
      %v1545 = vpop.xlane.xlu0 %1544
      %v1546 = vsel %vm722, %v1394, 0.0
      %1547 = vadd.xlane.f32.xlu0 %v1546
      %v1548 = vpop.xlane.xlu0 %1547
      %v1549 = vsel %vm722, %v1395, 0.0
      %1550 = vadd.xlane.f32.xlu0 %v1549
      %v1551 = vpop.xlane.xlu0 %1550
      %v1552 = vsel %vm722, %v1396, 0.0
      %1553 = vadd.xlane.f32.xlu0 %v1552
      %v1554 = vpop.xlane.xlu0 %1553
      %v1555 = vsel %vm722, %v1397, 0.0
      %1556 = vadd.xlane.f32.xlu0 %v1555
      %v1557 = vpop.xlane.xlu0 %1556
      %v1558 = vsel %vm722, %v1398, 0.0
      %1559 = vadd.xlane.f32.xlu0 %v1558
      %v1560 = vpop.xlane.xlu0 %1559
      %v1561 = vsel %vm722, %v1399, 0.0
      %1562 = vadd.xlane.f32.xlu0 %v1561
      %v1563 = vpop.xlane.xlu0 %1562
      %v1564 = vsel %vm722, %v1400, 0.0
      %1565 = vadd.xlane.f32.xlu0 %v1564
      %v1566 = vpop.xlane.xlu0 %1565
      %v1567 = vsel %vm722, %v1401, 0.0
      %1568 = vadd.xlane.f32.xlu0 %v1567
      %v1569 = vpop.xlane.xlu0 %1568
      %v1570 = vsel %vm722, %v1402, 0.0
      %1571 = vadd.xlane.f32.xlu0 %v1570
      %v1572 = vpop.xlane.xlu0 %1571
      %v1573 = vsel %vm722, %v1403, 0.0
      %1574 = vadd.xlane.f32.xlu0 %v1573
      %v1575 = vpop.xlane.xlu0 %1574
      %v1576 = vsel %vm722, %v1404, 0.0
      %1577 = vadd.xlane.f32.xlu0 %v1576
      %v1578 = vpop.xlane.xlu0 %1577
      %v1579 = vsel %vm722, %v1405, 0.0
      %1580 = vadd.xlane.f32.xlu0 %v1579
      %v1581 = vpop.xlane.xlu0 %1580
      %v1582 = vsel %vm722, %v1406, 0.0
      %1583 = vadd.xlane.f32.xlu0 %v1582
      %v1584 = vpop.xlane.xlu0 %1583
      %v1585 = vsel %vm722, %v1407, 0.0
      %1586 = vadd.xlane.f32.xlu0 %v1585
      %v1587 = vpop.xlane.xlu0 %1586
      %v1588 = vsel %vm722, %v1408, 0.0
      %1589 = vadd.xlane.f32.xlu0 %v1588
      %v1590 = vpop.xlane.xlu0 %1589
      %v1591 = vsel %vm722, %v1409, 0.0
      %1592 = vadd.xlane.f32.xlu0 %v1591
      %v1593 = vpop.xlane.xlu0 %1592
      %v1594 = vsel %vm722, %v1410, 0.0
      %1595 = vadd.xlane.f32.xlu0 %v1594
      %v1596 = vpop.xlane.xlu0 %1595
      %v1597 = vsel %vm722, %v1411, 0.0
      %1598 = vadd.xlane.f32.xlu0 %v1597
      %v1599 = vpop.xlane.xlu0 %1598
      %v1600 = vsel %vm722, %v1412, 0.0
      %1601 = vadd.xlane.f32.xlu0 %v1600
      %v1602 = vpop.xlane.xlu0 %1601
      %v1603 = vsel %vm722, %v1413, 0.0
      %1604 = vadd.xlane.f32.xlu0 %v1603
      %v1605 = vpop.xlane.xlu0 %1604
      %v1606 = vsel %vm722, %v1414, 0.0
      %1607 = vadd.xlane.f32.xlu0 %v1606
      %v1608 = vpop.xlane.xlu0 %1607
      %v1609 = vsel %vm722, %v1415, 0.0
      %1610 = vadd.xlane.f32.xlu0 %v1609
      %v1611 = vpop.xlane.xlu0 %1610
      %v1612 = vsel %vm722, %v1416, 0.0
      %1613 = vadd.xlane.f32.xlu0 %v1612
      %v1614 = vpop.xlane.xlu0 %1613
      %v1615 = vsel %vm722, %v1417, 0.0
      %1616 = vadd.xlane.f32.xlu0 %v1615
      %v1617 = vpop.xlane.xlu0 %1616
      %v1618 = vsel %vm722, %v1418, 0.0
      %1619 = vadd.xlane.f32.xlu0 %v1618
      %v1620 = vpop.xlane.xlu0 %1619
      %v1621 = vsel %vm722, %v1419, 0.0
      %1622 = vadd.xlane.f32.xlu0 %v1621
      %v1623 = vpop.xlane.xlu0 %1622
      %v1624 = vsel %vm722, %v1420, 0.0
      %1625 = vadd.xlane.f32.xlu0 %v1624
      %v1626 = vpop.xlane.xlu0 %1625
      %v1627 = vsel %vm722, %v1421, 0.0
      %1628 = vadd.xlane.f32.xlu0 %v1627
      %v1629 = vpop.xlane.xlu0 %1628
      %v1630 = vsel %vm722, %v1422, 0.0
      %1631 = vadd.xlane.f32.xlu0 %v1630
      %v1632 = vpop.xlane.xlu0 %1631
      %v1633 = vsel %vm722, %v1423, 0.0
      %1634 = vadd.xlane.f32.xlu0 %v1633
      %v1635 = vpop.xlane.xlu0 %1634
      %v1636 = vsel %vm722, %v1424, 0.0
      %1637 = vadd.xlane.f32.xlu0 %v1636
      %v1638 = vpop.xlane.xlu0 %1637
      %v1639 = vsel %vm722, %v1425, 0.0
      %1640 = vadd.xlane.f32.xlu0 %v1639
      %v1641 = vpop.xlane.xlu0 %1640
      %v1642 = vsel %vm722, %v1426, 0.0
      %1643 = vadd.xlane.f32.xlu0 %v1642
      %v1644 = vpop.xlane.xlu0 %1643
      %v1645 = vsel %vm722, %v1427, 0.0
      %1646 = vadd.xlane.f32.xlu0 %v1645
      %v1647 = vpop.xlane.xlu0 %1646
      %v1648 = vsel %vm722, %v1428, 0.0
      %1649 = vadd.xlane.f32.xlu0 %v1648
      %v1650 = vpop.xlane.xlu0 %1649
      %v1651 = vsel %vm722, %v1429, 0.0
      %1652 = vadd.xlane.f32.xlu0 %v1651
      %v1653 = vpop.xlane.xlu0 %1652
      %v1654 = vsel %vm722, %v1430, 0.0
      %1655 = vadd.xlane.f32.xlu0 %v1654
      %v1656 = vpop.xlane.xlu0 %1655
      %v1657 = vsel %vm722, %v1431, 0.0
      %1658 = vadd.xlane.f32.xlu0 %v1657
      %v1659 = vpop.xlane.xlu0 %1658
      %v1660 = vsel %vm722, %v1432, 0.0
      %1661 = vadd.xlane.f32.xlu0 %v1660
      %v1662 = vpop.xlane.xlu0 %1661
      %v1663 = vsel %vm722, %v1433, 0.0
      %1664 = vadd.xlane.f32.xlu0 %v1663
      %v1665 = vpop.xlane.xlu0 %1664
      %v1666 = vsel %vm722, %v1434, 0.0
      %1667 = vadd.xlane.f32.xlu0 %v1666
      %v1668 = vpop.xlane.xlu0 %1667
      %v1669 = vsel %vm722, %v1435, 0.0
      %1670 = vadd.xlane.f32.xlu0 %v1669
      %v1671 = vpop.xlane.xlu0 %1670
      %v1672 = vsel %vm722, %v1436, 0.0
      %1673 = vadd.xlane.f32.xlu0 %v1672
      %v1674 = vpop.xlane.xlu0 %1673
      %v1675 = vsel %vm722, %v1437, 0.0
      %1676 = vadd.xlane.f32.xlu0 %v1675
      %v1677 = vpop.xlane.xlu0 %1676
      %v1678 = vsel %vm722, %v1438, 0.0
      %1679 = vadd.xlane.f32.xlu0 %v1678
      %v1680 = vpop.xlane.xlu0 %1679
      %v1681 = vsel %vm722, %v1439, 0.0
      %1682 = vadd.xlane.f32.xlu0 %v1681
      %v1683 = vpop.xlane.xlu0 %1682
      %v1684 = vsel %vm722, %v1440, 0.0
      %1685 = vadd.xlane.f32.xlu0 %v1684
      %v1686 = vpop.xlane.xlu0 %1685
      %v1687 = vsel %vm722, %v1441, 0.0
      %1688 = vadd.xlane.f32.xlu0 %v1687
      %v1689 = vpop.xlane.xlu0 %1688
      %v1690 = vsel %vm722, %v1442, 0.0
      %1691 = vadd.xlane.f32.xlu0 %v1690
      %v1692 = vpop.xlane.xlu0 %1691
      %v1693 = vsel %vm722, %v1443, 0.0
      %1694 = vadd.xlane.f32.xlu0 %v1693
      %v1695 = vpop.xlane.xlu0 %1694
      %v1696 = vsel %vm722, %v1444, 0.0
      %1697 = vadd.xlane.f32.xlu0 %v1696
      %v1698 = vpop.xlane.xlu0 %1697
      %v1699 = vsel %vm722, %v1445, 0.0
      %1700 = vadd.xlane.f32.xlu0 %v1699
      %v1701 = vpop.xlane.xlu0 %1700
      %v1702 = vsel %vm722, %v1446, 0.0
      %1703 = vadd.xlane.f32.xlu0 %v1702
      %v1704 = vpop.xlane.xlu0 %1703
      %v1705 = vsel %vm722, %v1447, 0.0
      %1706 = vadd.xlane.f32.xlu0 %v1705
      %v1707 = vpop.xlane.xlu0 %1706
      %v1708 = vsel %vm722, %v1448, 0.0
      %1709 = vadd.xlane.f32.xlu0 %v1708
      %v1710 = vpop.xlane.xlu0 %1709
      %v1711 = vsel %vm722, %v1449, 0.0
      %1712 = vadd.xlane.f32.xlu0 %v1711
      %v1713 = vpop.xlane.xlu0 %1712
      %v1714 = vsel %vm722, %v1450, 0.0
      %1715 = vadd.xlane.f32.xlu0 %v1714
      %v1716 = vpop.xlane.xlu0 %1715
      %v1717 = vsel %vm722, %v1451, 0.0
      %1718 = vadd.xlane.f32.xlu0 %v1717
      %v1719 = vpop.xlane.xlu0 %1718
      %v1720 = vsel %vm722, %v1452, 0.0
      %1721 = vadd.xlane.f32.xlu0 %v1720
      %v1722 = vpop.xlane.xlu0 %1721
      %v1723 = vsel %vm722, %v1453, 0.0
      %1724 = vadd.xlane.f32.xlu0 %v1723
      %v1725 = vpop.xlane.xlu0 %1724
      %v1726 = vsel %vm722, %v1454, 0.0
      %1727 = vadd.xlane.f32.xlu0 %v1726
      %v1728 = vpop.xlane.xlu0 %1727
      %v1729 = vsel %vm722, %v1455, 0.0
      %1730 = vadd.xlane.f32.xlu0 %v1729
      %v1731 = vpop.xlane.xlu0 %1730
      %v1732 = vsel %vm722, %v1456, 0.0
      %1733 = vadd.xlane.f32.xlu0 %v1732
      %v1734 = vpop.xlane.xlu0 %1733
      %v1735 = vsel %vm722, %v1457, 0.0
      %1736 = vadd.xlane.f32.xlu0 %v1735
      %v1737 = vpop.xlane.xlu0 %1736
      %v1738 = vsel %vm722, %v1458, 0.0
      %1739 = vadd.xlane.f32.xlu0 %v1738
      %v1740 = vpop.xlane.xlu0 %1739
      %v1741 = vsel %vm722, %v1459, 0.0
      %1742 = vadd.xlane.f32.xlu0 %v1741
      %v1743 = vpop.xlane.xlu0 %1742
      %v1744 = vsel %vm722, %v1460, 0.0
      %1745 = vadd.xlane.f32.xlu0 %v1744
      %v1746 = vpop.xlane.xlu0 %1745
      %v1747 = vsel %vm722, %v1461, 0.0
      %1748 = vadd.xlane.f32.xlu0 %v1747
      %v1749 = vpop.xlane.xlu0 %1748
      %v1750 = vsel %vm722, %v1462, 0.0
      %1751 = vadd.xlane.f32.xlu0 %v1750
      %v1752 = vpop.xlane.xlu0 %1751
      %v1753 = vsel %vm722, %v1463, 0.0
      %1754 = vadd.xlane.f32.xlu0 %v1753
      %v1755 = vpop.xlane.xlu0 %1754
      %v1756 = vsel %vm722, %v1464, 0.0
      %1757 = vadd.xlane.f32.xlu0 %v1756
      %v1758 = vpop.xlane.xlu0 %1757
      %v1759 = vsel %vm722, %v1465, 0.0
      %1760 = vadd.xlane.f32.xlu0 %v1759
      %v1761 = vpop.xlane.xlu0 %1760
      %v1762 = vsel %vm722, %v1466, 0.0
      %1763 = vadd.xlane.f32.xlu0 %v1762
      %v1764 = vpop.xlane.xlu0 %1763
      %v1765 = vsel %vm722, %v1467, 0.0
      %1766 = vadd.xlane.f32.xlu0 %v1765
      %v1767 = vpop.xlane.xlu0 %1766
      %v1768 = vsel %vm722, %v1468, 0.0
      %1769 = vadd.xlane.f32.xlu0 %v1768
      %v1770 = vpop.xlane.xlu0 %1769
      %v1771 = vsel %vm722, %v1469, 0.0
      %1772 = vadd.xlane.f32.xlu0 %v1771
      %v1773 = vpop.xlane.xlu0 %1772
      %v1774 = vsel %vm722, %v1470, 0.0
      %1775 = vadd.xlane.f32.xlu0 %v1774
      %v1776 = vpop.xlane.xlu0 %1775
      %v1777 = vsel %vm722, %v1471, 0.0
      %1778 = vadd.xlane.f32.xlu0 %v1777
      %v1779 = vpop.xlane.xlu0 %1778
      %v1780 = vsel %vm722, %v1472, 0.0
      %1781 = vadd.xlane.f32.xlu0 %v1780
      %v1782 = vpop.xlane.xlu0 %1781
      %v1783 = vsel %vm722, %v1473, 0.0
      %1784 = vadd.xlane.f32.xlu0 %v1783
      %v1785 = vpop.xlane.xlu0 %1784
      %v1786 = vsel %vm722, %v1474, 0.0
      %1787 = vadd.xlane.f32.xlu0 %v1786
      %v1788 = vpop.xlane.xlu0 %1787
      %v1789 = vsel %vm722, %v1475, 0.0
      %1790 = vadd.xlane.f32.xlu0 %v1789
      %v1791 = vpop.xlane.xlu0 %1790
      %v1792 = vsel %vm722, %v1476, 0.0
      %1793 = vadd.xlane.f32.xlu0 %v1792
      %v1794 = vpop.xlane.xlu0 %1793
      %v1795 = vsel %vm722, %v1477, 0.0
      %1796 = vadd.xlane.f32.xlu0 %v1795
      %v1797 = vpop.xlane.xlu0 %1796
      %v1798 = vsel %vm722, %v1478, 0.0
      %1799 = vadd.xlane.f32.xlu0 %v1798
      %v1800 = vpop.xlane.xlu0 %1799
      %v1801 = vsel %vm722, %v1479, 0.0
      %1802 = vadd.xlane.f32.xlu0 %v1801
      %v1803 = vpop.xlane.xlu0 %1802
      %v1804 = vadd.f32 %v1264, %v1482
      %v1805 = vadd.f32 %v1265, %v1485
      %v1806 = vadd.f32 %v1266, %v1488
      %v1807 = vadd.f32 %v1267, %v1491
      %v1808 = vadd.f32 %v1268, %v1494
      %v1809 = vadd.f32 %v1269, %v1497
      %v1810 = vadd.f32 %v1270, %v1500
      %v1811 = vadd.f32 %v1271, %v1503
      %v1812 = vadd.f32 %v1272, %v1506
      %v1813 = vadd.f32 %v1273, %v1509
      %v1814 = vadd.f32 %v1274, %v1512
      %v1815 = vadd.f32 %v1275, %v1515
      %v1816 = vadd.f32 %v1276, %v1518
      %v1817 = vadd.f32 %v1277, %v1521
      %v1818 = vadd.f32 %v1278, %v1524
      %v1819 = vadd.f32 %v1279, %v1527
      %v1820 = vadd.f32 %v1280, %v1530
      %v1821 = vadd.f32 %v1281, %v1533
      %v1822 = vadd.f32 %v1282, %v1536
      %v1823 = vadd.f32 %v1283, %v1539
      %v1824 = vadd.f32 %v1284, %v1542
      %v1825 = vadd.f32 %v1285, %v1545
      %v1826 = vadd.f32 %v1286, %v1548
      %v1827 = vadd.f32 %v1287, %v1551
      %v1828 = vadd.f32 %v1288, %v1554
      %v1829 = vadd.f32 %v1289, %v1557
      %v1830 = vadd.f32 %v1290, %v1560
      %v1831 = vadd.f32 %v1291, %v1563
      %v1832 = vadd.f32 %v1292, %v1566
      %v1833 = vadd.f32 %v1293, %v1569
      %v1834 = vadd.f32 %v1294, %v1572
      %v1835 = vadd.f32 %v1295, %v1575
      %v1836 = vadd.f32 %v1296, %v1578
      %v1837 = vadd.f32 %v1297, %v1581
      %v1838 = vadd.f32 %v1298, %v1584
      %v1839 = vadd.f32 %v1299, %v1587
      %v1840 = vadd.f32 %v1300, %v1590
      %v1841 = vadd.f32 %v1301, %v1593
      %v1842 = vadd.f32 %v1302, %v1596
      %v1843 = vadd.f32 %v1303, %v1599
      %v1844 = vadd.f32 %v1304, %v1602
      %v1845 = vadd.f32 %v1305, %v1605
      %v1846 = vadd.f32 %v1306, %v1608
      %v1847 = vadd.f32 %v1307, %v1611
      %v1848 = vadd.f32 %v1308, %v1614
      %v1849 = vadd.f32 %v1309, %v1617
      %v1850 = vadd.f32 %v1310, %v1620
      %v1851 = vadd.f32 %v1311, %v1623
      %v1852 = vadd.f32 %v1312, %v1626
      %v1853 = vadd.f32 %v1313, %v1629
      %v1854 = vadd.f32 %v1314, %v1632
      %v1855 = vadd.f32 %v1315, %v1635
      %v1856 = vadd.f32 %v1316, %v1638
      %v1857 = vadd.f32 %v1317, %v1641
      %v1858 = vadd.f32 %v1318, %v1644
      %v1859 = vadd.f32 %v1319, %v1647
      %v1860 = vadd.f32 %v1320, %v1650
      %v1861 = vadd.f32 %v1321, %v1653
      %v1862 = vadd.f32 %v1322, %v1656
      %v1863 = vadd.f32 %v1323, %v1659
      %v1864 = vadd.f32 %v1324, %v1662
      %v1865 = vadd.f32 %v1325, %v1665
      %v1866 = vadd.f32 %v1326, %v1668
      %v1867 = vadd.f32 %v1327, %v1671
      %v1868 = vadd.f32 %v1328, %v1674
      %v1869 = vadd.f32 %v1329, %v1677
      %v1870 = vadd.f32 %v1330, %v1680
      %v1871 = vadd.f32 %v1331, %v1683
      %v1872 = vadd.f32 %v1332, %v1686
      %v1873 = vadd.f32 %v1333, %v1689
      %v1874 = vadd.f32 %v1334, %v1692
      %v1875 = vadd.f32 %v1335, %v1695
      %v1876 = vadd.f32 %v1336, %v1698
      %v1877 = vadd.f32 %v1337, %v1701
      %v1878 = vadd.f32 %v1338, %v1704
      %v1879 = vadd.f32 %v1339, %v1707
      %v1880 = vadd.f32 %v1340, %v1710
      %v1881 = vadd.f32 %v1341, %v1713
      %v1882 = vadd.f32 %v1342, %v1716
      %v1883 = vadd.f32 %v1343, %v1719
      %v1884 = vadd.f32 %v1344, %v1722
      %v1885 = vadd.f32 %v1345, %v1725
      %v1886 = vadd.f32 %v1346, %v1728
      %v1887 = vadd.f32 %v1347, %v1731
      %v1888 = vadd.f32 %v1348, %v1734
      %v1889 = vadd.f32 %v1349, %v1737
      %v1890 = vadd.f32 %v1350, %v1740
      %v1891 = vadd.f32 %v1351, %v1743
      %v1892 = vadd.f32 %v1352, %v1746
      %v1893 = vadd.f32 %v1353, %v1749
      %v1894 = vadd.f32 %v1354, %v1752
      %v1895 = vadd.f32 %v1355, %v1755
      %v1896 = vadd.f32 %v1356, %v1758
      %v1897 = vadd.f32 %v1357, %v1761
      %v1898 = vadd.f32 %v1358, %v1764
      %v1899 = vadd.f32 %v1359, %v1767
      %v1900 = vadd.f32 %v1360, %v1770
      %v1901 = vadd.f32 %v1361, %v1773
      %v1902 = vadd.f32 %v1362, %v1776
      %v1903 = vadd.f32 %v1363, %v1779
      %v1904 = vadd.f32 %v1364, %v1782
      %v1905 = vadd.f32 %v1365, %v1785
      %v1906 = vadd.f32 %v1366, %v1788
      %v1907 = vadd.f32 %v1367, %v1791
      %v1908 = vadd.f32 %v1368, %v1794
      %v1909 = vadd.f32 %v1369, %v1797
      %v1910 = vadd.f32 %v1370, %v1800
      %v1911 = vadd.f32 %v1371, %v1803
      %1912 = vst.msk [vmem:[#allocation3] sm:$0xff] %vm1155, %v1804
      %1913 = vst.msk [vmem:[#allocation3 + $0x8] sm:$0xff] %vm1155, %v1805
      %1914 = vst.msk [vmem:[#allocation3 + $0x10] sm:$0xff] %vm1155, %v1806
      %1915 = vst.msk [vmem:[#allocation3 + $0x18] sm:$0xff] %vm1155, %v1807
      %1916 = vst.msk [vmem:[#allocation3 + $0x20] sm:$0xff] %vm1155, %v1808
      %1917 = vst.msk [vmem:[#allocation3 + $0x28] sm:$0xff] %vm1155, %v1809
      %1918 = vst.msk [vmem:[#allocation3 + $0x30] sm:$0xff] %vm1155, %v1810
      %1919 = vst.msk [vmem:[#allocation3 + $0x38] sm:$0xff] %vm1155, %v1811
      %1920 = vst.msk [vmem:[#allocation3 + $0x40] sm:$0xff] %vm1155, %v1812
      %1921 = vst.msk [vmem:[#allocation3 + $0x48] sm:$0xff] %vm1155, %v1813
      %1922 = vst.msk [vmem:[#allocation3 + $0x50] sm:$0xff] %vm1155, %v1814
      %1923 = vst.msk [vmem:[#allocation3 + $0x58] sm:$0xff] %vm1155, %v1815
      %1924 = vst.msk [vmem:[#allocation3 + $0x60] sm:$0xff] %vm1155, %v1816
      %1925 = vst.msk [vmem:[#allocation3 + $0x68] sm:$0xff] %vm1155, %v1817
      %1926 = vst.msk [vmem:[#allocation3 + $0x70] sm:$0xff] %vm1155, %v1818
      %1927 = vst.msk [vmem:[#allocation3 + $0x78] sm:$0xff] %vm1155, %v1819
      %1928 = vst.msk [vmem:[#allocation3 + $0x80] sm:$0xff] %vm1155, %v1820
      %1929 = vst.msk [vmem:[#allocation3 + $0x88] sm:$0xff] %vm1155, %v1821
      %1930 = vst.msk [vmem:[#allocation3 + $0x90] sm:$0xff] %vm1155, %v1822
      %1931 = vst.msk [vmem:[#allocation3 + $0x98] sm:$0xff] %vm1155, %v1823
      %1932 = vst.msk [vmem:[#allocation3 + $0xa0] sm:$0xff] %vm1155, %v1824
      %1933 = vst.msk [vmem:[#allocation3 + $0xa8] sm:$0xff] %vm1155, %v1825
      %1934 = vst.msk [vmem:[#allocation3 + $0xb0] sm:$0xff] %vm1155, %v1826
      %1935 = vst.msk [vmem:[#allocation3 + $0xb8] sm:$0xff] %vm1155, %v1827
      %1936 = vst.msk [vmem:[#allocation3 + $0xc0] sm:$0xff] %vm1155, %v1828
      %1937 = vst.msk [vmem:[#allocation3 + $0xc8] sm:$0xff] %vm1155, %v1829
      %1938 = vst.msk [vmem:[#allocation3 + $0xd0] sm:$0xff] %vm1155, %v1830
      %1939 = vst.msk [vmem:[#allocation3 + $0xd8] sm:$0xff] %vm1155, %v1831
      %1940 = vst.msk [vmem:[#allocation3 + $0xe0] sm:$0xff] %vm1155, %v1832
      %1941 = vst.msk [vmem:[#allocation3 + $0xe8] sm:$0xff] %vm1155, %v1833
      %1942 = vst.msk [vmem:[#allocation3 + $0xf0] sm:$0xff] %vm1155, %v1834
      %1943 = vst.msk [vmem:[#allocation3 + $0xf8] sm:$0xff] %vm1155, %v1835
      %1944 = vst.msk [vmem:[#allocation3 + $0x100] sm:$0xff] %vm1155, %v1836
      %1945 = vst.msk [vmem:[#allocation3 + $0x108] sm:$0xff] %vm1155, %v1837
      %1946 = vst.msk [vmem:[#allocation3 + $0x110] sm:$0xff] %vm1155, %v1838
      %1947 = vst.msk [vmem:[#allocation3 + $0x118] sm:$0xff] %vm1155, %v1839
      %1948 = vst.msk [vmem:[#allocation3 + $0x120] sm:$0xff] %vm1155, %v1840
      %1949 = vst.msk [vmem:[#allocation3 + $0x128] sm:$0xff] %vm1155, %v1841
      %1950 = vst.msk [vmem:[#allocation3 + $0x130] sm:$0xff] %vm1155, %v1842
      %1951 = vst.msk [vmem:[#allocation3 + $0x138] sm:$0xff] %vm1155, %v1843
      %1952 = vst.msk [vmem:[#allocation3 + $0x140] sm:$0xff] %vm1155, %v1844
      %1953 = vst.msk [vmem:[#allocation3 + $0x148] sm:$0xff] %vm1155, %v1845
      %1954 = vst.msk [vmem:[#allocation3 + $0x150] sm:$0xff] %vm1155, %v1846
      %1955 = vst.msk [vmem:[#allocation3 + $0x158] sm:$0xff] %vm1155, %v1847
      %1956 = vst.msk [vmem:[#allocation3 + $0x160] sm:$0xff] %vm1155, %v1848
      %1957 = vst.msk [vmem:[#allocation3 + $0x168] sm:$0xff] %vm1155, %v1849
      %1958 = vst.msk [vmem:[#allocation3 + $0x170] sm:$0xff] %vm1155, %v1850
      %1959 = vst.msk [vmem:[#allocation3 + $0x178] sm:$0xff] %vm1155, %v1851
      %1960 = vst.msk [vmem:[#allocation3 + $0x180] sm:$0xff] %vm1155, %v1852
      %1961 = vst.msk [vmem:[#allocation3 + $0x188] sm:$0xff] %vm1155, %v1853
      %1962 = vst.msk [vmem:[#allocation3 + $0x190] sm:$0xff] %vm1155, %v1854
      %1963 = vst.msk [vmem:[#allocation3 + $0x198] sm:$0xff] %vm1155, %v1855
      %1964 = vst.msk [vmem:[#allocation3 + $0x1a0] sm:$0xff] %vm1155, %v1856
      %1965 = vst.msk [vmem:[#allocation3 + $0x1a8] sm:$0xff] %vm1155, %v1857
      %1966 = vst.msk [vmem:[#allocation3 + $0x1b0] sm:$0xff] %vm1155, %v1858
      %1967 = vst.msk [vmem:[#allocation3 + $0x1b8] sm:$0xff] %vm1155, %v1859
      %1968 = vst.msk [vmem:[#allocation3 + $0x1c0] sm:$0xff] %vm1155, %v1860
      %1969 = vst.msk [vmem:[#allocation3 + $0x1c8] sm:$0xff] %vm1155, %v1861
      %1970 = vst.msk [vmem:[#allocation3 + $0x1d0] sm:$0xff] %vm1155, %v1862
      %1971 = vst.msk [vmem:[#allocation3 + $0x1d8] sm:$0xff] %vm1155, %v1863
      %1972 = vst.msk [vmem:[#allocation3 + $0x1e0] sm:$0xff] %vm1155, %v1864
      %1973 = vst.msk [vmem:[#allocation3 + $0x1e8] sm:$0xff] %vm1155, %v1865
      %1974 = vst.msk [vmem:[#allocation3 + $0x1f0] sm:$0xff] %vm1155, %v1866
      %1975 = vst.msk [vmem:[#allocation3 + $0x1f8] sm:$0xff] %vm1155, %v1867
      %1976 = vst.msk [vmem:[#allocation3 + $0x200] sm:$0xff] %vm1155, %v1868
      %1977 = vst.msk [vmem:[#allocation3 + $0x208] sm:$0xff] %vm1155, %v1869
      %1978 = vst.msk [vmem:[#allocation3 + $0x210] sm:$0xff] %vm1155, %v1870
      %1979 = vst.msk [vmem:[#allocation3 + $0x218] sm:$0xff] %vm1155, %v1871
      %1980 = vst.msk [vmem:[#allocation3 + $0x220] sm:$0xff] %vm1155, %v1872
      %1981 = vst.msk [vmem:[#allocation3 + $0x228] sm:$0xff] %vm1155, %v1873
      %1982 = vst.msk [vmem:[#allocation3 + $0x230] sm:$0xff] %vm1155, %v1874
      %1983 = vst.msk [vmem:[#allocation3 + $0x238] sm:$0xff] %vm1155, %v1875
      %1984 = vst.msk [vmem:[#allocation3 + $0x240] sm:$0xff] %vm1155, %v1876
      %1985 = vst.msk [vmem:[#allocation3 + $0x248] sm:$0xff] %vm1155, %v1877
      %1986 = vst.msk [vmem:[#allocation3 + $0x250] sm:$0xff] %vm1155, %v1878
      %1987 = vst.msk [vmem:[#allocation3 + $0x258] sm:$0xff] %vm1155, %v1879
      %1988 = vst.msk [vmem:[#allocation3 + $0x260] sm:$0xff] %vm1155, %v1880
      %1989 = vst.msk [vmem:[#allocation3 + $0x268] sm:$0xff] %vm1155, %v1881
      %1990 = vst.msk [vmem:[#allocation3 + $0x270] sm:$0xff] %vm1155, %v1882
      %1991 = vst.msk [vmem:[#allocation3 + $0x278] sm:$0xff] %vm1155, %v1883
      %1992 = vst.msk [vmem:[#allocation3 + $0x280] sm:$0xff] %vm1155, %v1884
      %1993 = vst.msk [vmem:[#allocation3 + $0x288] sm:$0xff] %vm1155, %v1885
      %1994 = vst.msk [vmem:[#allocation3 + $0x290] sm:$0xff] %vm1155, %v1886
      %1995 = vst.msk [vmem:[#allocation3 + $0x298] sm:$0xff] %vm1155, %v1887
      %1996 = vst.msk [vmem:[#allocation3 + $0x2a0] sm:$0xff] %vm1155, %v1888
      %1997 = vst.msk [vmem:[#allocation3 + $0x2a8] sm:$0xff] %vm1155, %v1889
      %1998 = vst.msk [vmem:[#allocation3 + $0x2b0] sm:$0xff] %vm1155, %v1890
      %1999 = vst.msk [vmem:[#allocation3 + $0x2b8] sm:$0xff] %vm1155, %v1891
      %2000 = vst.msk [vmem:[#allocation3 + $0x2c0] sm:$0xff] %vm1155, %v1892
      %2001 = vst.msk [vmem:[#allocation3 + $0x2c8] sm:$0xff] %vm1155, %v1893
      %2002 = vst.msk [vmem:[#allocation3 + $0x2d0] sm:$0xff] %vm1155, %v1894
      %2003 = vst.msk [vmem:[#allocation3 + $0x2d8] sm:$0xff] %vm1155, %v1895
      %2004 = vst.msk [vmem:[#allocation3 + $0x2e0] sm:$0xff] %vm1155, %v1896
      %2005 = vst.msk [vmem:[#allocation3 + $0x2e8] sm:$0xff] %vm1155, %v1897
      %2006 = vst.msk [vmem:[#allocation3 + $0x2f0] sm:$0xff] %vm1155, %v1898
      %2007 = vst.msk [vmem:[#allocation3 + $0x2f8] sm:$0xff] %vm1155, %v1899
      %2008 = vst.msk [vmem:[#allocation3 + $0x300] sm:$0xff] %vm1155, %v1900
      %2009 = vst.msk [vmem:[#allocation3 + $0x308] sm:$0xff] %vm1155, %v1901
      %2010 = vst.msk [vmem:[#allocation3 + $0x310] sm:$0xff] %vm1155, %v1902
      %2011 = vst.msk [vmem:[#allocation3 + $0x318] sm:$0xff] %vm1155, %v1903
      %2012 = vst.msk [vmem:[#allocation3 + $0x320] sm:$0xff] %vm1155, %v1904
      %2013 = vst.msk [vmem:[#allocation3 + $0x328] sm:$0xff] %vm1155, %v1905
      %2014 = vst.msk [vmem:[#allocation3 + $0x330] sm:$0xff] %vm1155, %v1906
      %2015 = vst.msk [vmem:[#allocation3 + $0x338] sm:$0xff] %vm1155, %v1907
      %2016 = vst.msk [vmem:[#allocation3 + $0x340] sm:$0xff] %vm1155, %v1908
      %2017 = vst.msk [vmem:[#allocation3 + $0x348] sm:$0xff] %vm1155, %v1909
      %2018 = vst.msk [vmem:[#allocation3 + $0x350] sm:$0xff] %vm1155, %v1910
      %2019 = vst.msk [vmem:[#allocation3 + $0x358] sm:$0xff] %vm1155, %v1911
      // Predicated region
      $region37: #{tpu_custom_call.1} parent=31 // pred_check
        %p2020 = pneg %p285
      $region38: #{tpu_custom_call.1} parent=31 // pred_check_branch
        %2022 = sbr.rel (%p2020) target = $region40
      $region39: #{tpu_custom_call.1} parent=31 // pred_region
        %v2023 = vld [vmem:[#allocation2] sm:$0xff]
        %v2024 = vld [vmem:[#allocation2 + $0x8] sm:$0xff]
        %v2025 = vld [vmem:[#allocation2 + $0x10] sm:$0xff]
        %v2026 = vld [vmem:[#allocation2 + $0x18] sm:$0xff]
        %v2027 = vld [vmem:[#allocation2 + $0x20] sm:$0xff]
        %v2028 = vld [vmem:[#allocation2 + $0x28] sm:$0xff]
        %v2029 = vld [vmem:[#allocation2 + $0x30] sm:$0xff]
        %v2030 = vld [vmem:[#allocation2 + $0x38] sm:$0xff]
        %v2031 = vld [vmem:[#allocation2 + $0x40] sm:$0xff]
        %v2032 = vld [vmem:[#allocation2 + $0x48] sm:$0xff]
        %v2033 = vld [vmem:[#allocation2 + $0x50] sm:$0xff]
        %v2034 = vld [vmem:[#allocation2 + $0x58] sm:$0xff]
        %v2035 = vld [vmem:[#allocation2 + $0x60] sm:$0xff]
        %v2036 = vld [vmem:[#allocation2 + $0x68] sm:$0xff]
        %v2037 = vld [vmem:[#allocation2 + $0x70] sm:$0xff]
        %v2038 = vld [vmem:[#allocation2 + $0x78] sm:$0xff]
        %v2039 = vld [vmem:[#allocation2 + $0x80] sm:$0xff]
        %v2040 = vld [vmem:[#allocation2 + $0x88] sm:$0xff]
        %v2041 = vld [vmem:[#allocation2 + $0x90] sm:$0xff]
        %v2042 = vld [vmem:[#allocation2 + $0x98] sm:$0xff]
        %v2043 = vld [vmem:[#allocation2 + $0xa0] sm:$0xff]
        %v2044 = vld [vmem:[#allocation2 + $0xa8] sm:$0xff]
        %v2045 = vld [vmem:[#allocation2 + $0xb0] sm:$0xff]
        %v2046 = vld [vmem:[#allocation2 + $0xb8] sm:$0xff]
        %v2047 = vld [vmem:[#allocation2 + $0xc0] sm:$0xff]
        %v2048 = vld [vmem:[#allocation2 + $0xc8] sm:$0xff]
        %v2049 = vld [vmem:[#allocation2 + $0xd0] sm:$0xff]
        %v2050 = vld [vmem:[#allocation2 + $0xd8] sm:$0xff]
        %v2051 = vld [vmem:[#allocation2 + $0xe0] sm:$0xff]
        %v2052 = vld [vmem:[#allocation2 + $0xe8] sm:$0xff]
        %v2053 = vld [vmem:[#allocation2 + $0xf0] sm:$0xff]
        %v2054 = vld [vmem:[#allocation2 + $0xf8] sm:$0xff]
        %v2055 = vld [vmem:[#allocation2 + $0x100] sm:$0xff]
        %v2056 = vld [vmem:[#allocation2 + $0x108] sm:$0xff]
        %v2057 = vld [vmem:[#allocation2 + $0x110] sm:$0xff]
        %v2058 = vld [vmem:[#allocation2 + $0x118] sm:$0xff]
        %v2059 = vld [vmem:[#allocation2 + $0x120] sm:$0xff]
        %v2060 = vld [vmem:[#allocation2 + $0x128] sm:$0xff]
        %v2061 = vld [vmem:[#allocation2 + $0x130] sm:$0xff]
        %v2062 = vld [vmem:[#allocation2 + $0x138] sm:$0xff]
        %v2063 = vld [vmem:[#allocation2 + $0x140] sm:$0xff]
        %v2064 = vld [vmem:[#allocation2 + $0x148] sm:$0xff]
        %v2065 = vld [vmem:[#allocation2 + $0x150] sm:$0xff]
        %v2066 = vld [vmem:[#allocation2 + $0x158] sm:$0xff]
        %v2067 = vld [vmem:[#allocation2 + $0x160] sm:$0xff]
        %v2068 = vld [vmem:[#allocation2 + $0x168] sm:$0xff]
        %v2069 = vld [vmem:[#allocation2 + $0x170] sm:$0xff]
        %v2070 = vld [vmem:[#allocation2 + $0x178] sm:$0xff]
        %v2071 = vld [vmem:[#allocation2 + $0x180] sm:$0xff]
        %v2072 = vld [vmem:[#allocation2 + $0x188] sm:$0xff]
        %v2073 = vld [vmem:[#allocation2 + $0x190] sm:$0xff]
        %v2074 = vld [vmem:[#allocation2 + $0x198] sm:$0xff]
        %v2075 = vld [vmem:[#allocation2 + $0x1a0] sm:$0xff]
        %v2076 = vld [vmem:[#allocation2 + $0x1a8] sm:$0xff]
        %v2077 = vld [vmem:[#allocation2 + $0x1b0] sm:$0xff]
        %v2078 = vld [vmem:[#allocation2 + $0x1b8] sm:$0xff]
        %v2079 = vld [vmem:[#allocation2 + $0x1c0] sm:$0xff]
        %v2080 = vld [vmem:[#allocation2 + $0x1c8] sm:$0xff]
        %v2081 = vld [vmem:[#allocation2 + $0x1d0] sm:$0xff]
        %v2082 = vld [vmem:[#allocation2 + $0x1d8] sm:$0xff]
        %v2083 = vld [vmem:[#allocation2 + $0x1e0] sm:$0xff]
        %v2084 = vld [vmem:[#allocation2 + $0x1e8] sm:$0xff]
        %v2085 = vld [vmem:[#allocation2 + $0x1f0] sm:$0xff]
        %v2086 = vld [vmem:[#allocation2 + $0x1f8] sm:$0xff]
        %v2087 = vld [vmem:[#allocation2 + $0x200] sm:$0xff]
        %v2088 = vld [vmem:[#allocation2 + $0x208] sm:$0xff]
        %v2089 = vld [vmem:[#allocation2 + $0x210] sm:$0xff]
        %v2090 = vld [vmem:[#allocation2 + $0x218] sm:$0xff]
        %v2091 = vld [vmem:[#allocation2 + $0x220] sm:$0xff]
        %v2092 = vld [vmem:[#allocation2 + $0x228] sm:$0xff]
        %v2093 = vld [vmem:[#allocation2 + $0x230] sm:$0xff]
        %v2094 = vld [vmem:[#allocation2 + $0x238] sm:$0xff]
        %v2095 = vld [vmem:[#allocation2 + $0x240] sm:$0xff]
        %v2096 = vld [vmem:[#allocation2 + $0x248] sm:$0xff]
        %v2097 = vld [vmem:[#allocation2 + $0x250] sm:$0xff]
        %v2098 = vld [vmem:[#allocation2 + $0x258] sm:$0xff]
        %v2099 = vld [vmem:[#allocation2 + $0x260] sm:$0xff]
        %v2100 = vld [vmem:[#allocation2 + $0x268] sm:$0xff]
        %v2101 = vld [vmem:[#allocation2 + $0x270] sm:$0xff]
        %v2102 = vld [vmem:[#allocation2 + $0x278] sm:$0xff]
        %v2103 = vld [vmem:[#allocation2 + $0x280] sm:$0xff]
        %v2104 = vld [vmem:[#allocation2 + $0x288] sm:$0xff]
        %v2105 = vld [vmem:[#allocation2 + $0x290] sm:$0xff]
        %v2106 = vld [vmem:[#allocation2 + $0x298] sm:$0xff]
        %v2107 = vld [vmem:[#allocation2 + $0x2a0] sm:$0xff]
        %v2108 = vld [vmem:[#allocation2 + $0x2a8] sm:$0xff]
        %v2109 = vld [vmem:[#allocation2 + $0x2b0] sm:$0xff]
        %v2110 = vld [vmem:[#allocation2 + $0x2b8] sm:$0xff]
        %v2111 = vld [vmem:[#allocation2 + $0x2c0] sm:$0xff]
        %v2112 = vld [vmem:[#allocation2 + $0x2c8] sm:$0xff]
        %v2113 = vld [vmem:[#allocation2 + $0x2d0] sm:$0xff]
        %v2114 = vld [vmem:[#allocation2 + $0x2d8] sm:$0xff]
        %v2115 = vld [vmem:[#allocation2 + $0x2e0] sm:$0xff]
        %v2116 = vld [vmem:[#allocation2 + $0x2e8] sm:$0xff]
        %v2117 = vld [vmem:[#allocation2 + $0x2f0] sm:$0xff]
        %v2118 = vld [vmem:[#allocation2 + $0x2f8] sm:$0xff]
        %v2119 = vld [vmem:[#allocation2 + $0x300] sm:$0xff]
        %v2120 = vld [vmem:[#allocation2 + $0x308] sm:$0xff]
        %v2121 = vld [vmem:[#allocation2 + $0x310] sm:$0xff]
        %v2122 = vld [vmem:[#allocation2 + $0x318] sm:$0xff]
        %v2123 = vld [vmem:[#allocation2 + $0x320] sm:$0xff]
        %v2124 = vld [vmem:[#allocation2 + $0x328] sm:$0xff]
        %v2125 = vld [vmem:[#allocation2 + $0x330] sm:$0xff]
        %v2126 = vld [vmem:[#allocation2 + $0x338] sm:$0xff]
        %v2127 = vld [vmem:[#allocation2 + $0x340] sm:$0xff]
        %v2128 = vld [vmem:[#allocation2 + $0x348] sm:$0xff]
        %v2129 = vld [vmem:[#allocation2 + $0x350] sm:$0xff]
        %v2130 = vld [vmem:[#allocation2 + $0x358] sm:$0xff]
        %v2131 = vmul.f32 %v2023, 0.020408163
        %v2132 = vmul.f32 %v2024, 0.020408163
        %v2133 = vmul.f32 %v2025, 0.020408163
        %v2134 = vmul.f32 %v2026, 0.020408163
        %v2135 = vmul.f32 %v2027, 0.020408163
        %v2136 = vmul.f32 %v2028, 0.020408163
        %v2137 = vmul.f32 %v2029, 0.020408163
        %v2138 = vmul.f32 %v2030, 0.020408163
        %v2139 = vmul.f32 %v2031, 0.020408163
        %v2140 = vmul.f32 %v2032, 0.020408163
        %v2141 = vmul.f32 %v2033, 0.020408163
        %v2142 = vmul.f32 %v2034, 0.020408163
        %v2143 = vmul.f32 %v2035, 0.020408163
        %v2144 = vmul.f32 %v2036, 0.020408163
        %v2145 = vmul.f32 %v2037, 0.020408163
        %v2146 = vmul.f32 %v2038, 0.020408163
        %v2147 = vmul.f32 %v2039, 0.020408163
        %v2148 = vmul.f32 %v2040, 0.020408163
        %v2149 = vmul.f32 %v2041, 0.020408163
        %v2150 = vmul.f32 %v2042, 0.020408163
        %v2151 = vmul.f32 %v2043, 0.020408163
        %v2152 = vmul.f32 %v2044, 0.020408163
        %v2153 = vmul.f32 %v2045, 0.020408163
        %v2154 = vmul.f32 %v2046, 0.020408163
        %v2155 = vmul.f32 %v2047, 0.020408163
        %v2156 = vmul.f32 %v2048, 0.020408163
        %v2157 = vmul.f32 %v2049, 0.020408163
        %v2158 = vmul.f32 %v2050, 0.020408163
        %v2159 = vmul.f32 %v2051, 0.020408163
        %v2160 = vmul.f32 %v2052, 0.020408163
        %v2161 = vmul.f32 %v2053, 0.020408163
        %v2162 = vmul.f32 %v2054, 0.020408163
        %v2163 = vmul.f32 %v2055, 0.020408163
        %v2164 = vmul.f32 %v2056, 0.020408163
        %v2165 = vmul.f32 %v2057, 0.020408163
        %v2166 = vmul.f32 %v2058, 0.020408163
        %v2167 = vmul.f32 %v2059, 0.020408163
        %v2168 = vmul.f32 %v2060, 0.020408163
        %v2169 = vmul.f32 %v2061, 0.020408163
        %v2170 = vmul.f32 %v2062, 0.020408163
        %v2171 = vmul.f32 %v2063, 0.020408163
        %v2172 = vmul.f32 %v2064, 0.020408163
        %v2173 = vmul.f32 %v2065, 0.020408163
        %v2174 = vmul.f32 %v2066, 0.020408163
        %v2175 = vmul.f32 %v2067, 0.020408163
        %v2176 = vmul.f32 %v2068, 0.020408163
        %v2177 = vmul.f32 %v2069, 0.020408163
        %v2178 = vmul.f32 %v2070, 0.020408163
        %v2179 = vmul.f32 %v2071, 0.020408163
        %v2180 = vmul.f32 %v2072, 0.020408163
        %v2181 = vmul.f32 %v2073, 0.020408163
        %v2182 = vmul.f32 %v2074, 0.020408163
        %v2183 = vmul.f32 %v2075, 0.020408163
        %v2184 = vmul.f32 %v2076, 0.020408163
        %v2185 = vmul.f32 %v2077, 0.020408163
        %v2186 = vmul.f32 %v2078, 0.020408163
        %v2187 = vmul.f32 %v2079, 0.020408163
        %v2188 = vmul.f32 %v2080, 0.020408163
        %v2189 = vmul.f32 %v2081, 0.020408163
        %v2190 = vmul.f32 %v2082, 0.020408163
        %v2191 = vmul.f32 %v2083, 0.020408163
        %v2192 = vmul.f32 %v2084, 0.020408163
        %v2193 = vmul.f32 %v2085, 0.020408163
        %v2194 = vmul.f32 %v2086, 0.020408163
        %v2195 = vmul.f32 %v2087, 0.020408163
        %v2196 = vmul.f32 %v2088, 0.020408163
        %v2197 = vmul.f32 %v2089, 0.020408163
        %v2198 = vmul.f32 %v2090, 0.020408163
        %v2199 = vmul.f32 %v2091, 0.020408163
        %v2200 = vmul.f32 %v2092, 0.020408163
        %v2201 = vmul.f32 %v2093, 0.020408163
        %v2202 = vmul.f32 %v2094, 0.020408163
        %v2203 = vmul.f32 %v2095, 0.020408163
        %v2204 = vmul.f32 %v2096, 0.020408163
        %v2205 = vmul.f32 %v2097, 0.020408163
        %v2206 = vmul.f32 %v2098, 0.020408163
        %v2207 = vmul.f32 %v2099, 0.020408163
        %v2208 = vmul.f32 %v2100, 0.020408163
        %v2209 = vmul.f32 %v2101, 0.020408163
        %v2210 = vmul.f32 %v2102, 0.020408163
        %v2211 = vmul.f32 %v2103, 0.020408163
        %v2212 = vmul.f32 %v2104, 0.020408163
        %v2213 = vmul.f32 %v2105, 0.020408163
        %v2214 = vmul.f32 %v2106, 0.020408163
        %v2215 = vmul.f32 %v2107, 0.020408163
        %v2216 = vmul.f32 %v2108, 0.020408163
        %v2217 = vmul.f32 %v2109, 0.020408163
        %v2218 = vmul.f32 %v2110, 0.020408163
        %v2219 = vmul.f32 %v2111, 0.020408163
        %v2220 = vmul.f32 %v2112, 0.020408163
        %v2221 = vmul.f32 %v2113, 0.020408163
        %v2222 = vmul.f32 %v2114, 0.020408163
        %v2223 = vmul.f32 %v2115, 0.020408163
        %v2224 = vmul.f32 %v2116, 0.020408163
        %v2225 = vmul.f32 %v2117, 0.020408163
        %v2226 = vmul.f32 %v2118, 0.020408163
        %v2227 = vmul.f32 %v2119, 0.020408163
        %v2228 = vmul.f32 %v2120, 0.020408163
        %v2229 = vmul.f32 %v2121, 0.020408163
        %v2230 = vmul.f32 %v2122, 0.020408163
        %v2231 = vmul.f32 %v2123, 0.020408163
        %v2232 = vmul.f32 %v2124, 0.020408163
        %v2233 = vmul.f32 %v2125, 0.020408163
        %v2234 = vmul.f32 %v2126, 0.020408163
        %v2235 = vmul.f32 %v2127, 0.020408163
        %v2236 = vmul.f32 %v2128, 0.020408163
        %v2237 = vmul.f32 %v2129, 0.020408163
        %v2238 = vmul.f32 %v2130, 0.020408163
        %v2239 = vld [vmem:[#allocation3] sm:$0xff]
        %v2240 = vld [vmem:[#allocation3 + $0x8] sm:$0xff]
        %v2241 = vld [vmem:[#allocation3 + $0x10] sm:$0xff]
        %v2242 = vld [vmem:[#allocation3 + $0x18] sm:$0xff]
        %v2243 = vld [vmem:[#allocation3 + $0x20] sm:$0xff]
        %v2244 = vld [vmem:[#allocation3 + $0x28] sm:$0xff]
        %v2245 = vld [vmem:[#allocation3 + $0x30] sm:$0xff]
        %v2246 = vld [vmem:[#allocation3 + $0x38] sm:$0xff]
        %v2247 = vld [vmem:[#allocation3 + $0x40] sm:$0xff]
        %v2248 = vld [vmem:[#allocation3 + $0x48] sm:$0xff]
        %v2249 = vld [vmem:[#allocation3 + $0x50] sm:$0xff]
        %v2250 = vld [vmem:[#allocation3 + $0x58] sm:$0xff]
        %v2251 = vld [vmem:[#allocation3 + $0x60] sm:$0xff]
        %v2252 = vld [vmem:[#allocation3 + $0x68] sm:$0xff]
        %v2253 = vld [vmem:[#allocation3 + $0x70] sm:$0xff]
        %v2254 = vld [vmem:[#allocation3 + $0x78] sm:$0xff]
        %v2255 = vld [vmem:[#allocation3 + $0x80] sm:$0xff]
        %v2256 = vld [vmem:[#allocation3 + $0x88] sm:$0xff]
        %v2257 = vld [vmem:[#allocation3 + $0x90] sm:$0xff]
        %v2258 = vld [vmem:[#allocation3 + $0x98] sm:$0xff]
        %v2259 = vld [vmem:[#allocation3 + $0xa0] sm:$0xff]
        %v2260 = vld [vmem:[#allocation3 + $0xa8] sm:$0xff]
        %v2261 = vld [vmem:[#allocation3 + $0xb0] sm:$0xff]
        %v2262 = vld [vmem:[#allocation3 + $0xb8] sm:$0xff]
        %v2263 = vld [vmem:[#allocation3 + $0xc0] sm:$0xff]
        %v2264 = vld [vmem:[#allocation3 + $0xc8] sm:$0xff]
        %v2265 = vld [vmem:[#allocation3 + $0xd0] sm:$0xff]
        %v2266 = vld [vmem:[#allocation3 + $0xd8] sm:$0xff]
        %v2267 = vld [vmem:[#allocation3 + $0xe0] sm:$0xff]
        %v2268 = vld [vmem:[#allocation3 + $0xe8] sm:$0xff]
        %v2269 = vld [vmem:[#allocation3 + $0xf0] sm:$0xff]
        %v2270 = vld [vmem:[#allocation3 + $0xf8] sm:$0xff]
        %v2271 = vld [vmem:[#allocation3 + $0x100] sm:$0xff]
        %v2272 = vld [vmem:[#allocation3 + $0x108] sm:$0xff]
        %v2273 = vld [vmem:[#allocation3 + $0x110] sm:$0xff]
        %v2274 = vld [vmem:[#allocation3 + $0x118] sm:$0xff]
        %v2275 = vld [vmem:[#allocation3 + $0x120] sm:$0xff]
        %v2276 = vld [vmem:[#allocation3 + $0x128] sm:$0xff]
        %v2277 = vld [vmem:[#allocation3 + $0x130] sm:$0xff]
        %v2278 = vld [vmem:[#allocation3 + $0x138] sm:$0xff]
        %v2279 = vld [vmem:[#allocation3 + $0x140] sm:$0xff]
        %v2280 = vld [vmem:[#allocation3 + $0x148] sm:$0xff]
        %v2281 = vld [vmem:[#allocation3 + $0x150] sm:$0xff]
        %v2282 = vld [vmem:[#allocation3 + $0x158] sm:$0xff]
        %v2283 = vld [vmem:[#allocation3 + $0x160] sm:$0xff]
        %v2284 = vld [vmem:[#allocation3 + $0x168] sm:$0xff]
        %v2285 = vld [vmem:[#allocation3 + $0x170] sm:$0xff]
        %v2286 = vld [vmem:[#allocation3 + $0x178] sm:$0xff]
        %v2287 = vld [vmem:[#allocation3 + $0x180] sm:$0xff]
        %v2288 = vld [vmem:[#allocation3 + $0x188] sm:$0xff]
        %v2289 = vld [vmem:[#allocation3 + $0x190] sm:$0xff]
        %v2290 = vld [vmem:[#allocation3 + $0x198] sm:$0xff]
        %v2291 = vld [vmem:[#allocation3 + $0x1a0] sm:$0xff]
        %v2292 = vld [vmem:[#allocation3 + $0x1a8] sm:$0xff]
        %v2293 = vld [vmem:[#allocation3 + $0x1b0] sm:$0xff]
        %v2294 = vld [vmem:[#allocation3 + $0x1b8] sm:$0xff]
        %v2295 = vld [vmem:[#allocation3 + $0x1c0] sm:$0xff]
        %v2296 = vld [vmem:[#allocation3 + $0x1c8] sm:$0xff]
        %v2297 = vld [vmem:[#allocation3 + $0x1d0] sm:$0xff]
        %v2298 = vld [vmem:[#allocation3 + $0x1d8] sm:$0xff]
        %v2299 = vld [vmem:[#allocation3 + $0x1e0] sm:$0xff]
        %v2300 = vld [vmem:[#allocation3 + $0x1e8] sm:$0xff]
        %v2301 = vld [vmem:[#allocation3 + $0x1f0] sm:$0xff]
        %v2302 = vld [vmem:[#allocation3 + $0x1f8] sm:$0xff]
        %v2303 = vld [vmem:[#allocation3 + $0x200] sm:$0xff]
        %v2304 = vld [vmem:[#allocation3 + $0x208] sm:$0xff]
        %v2305 = vld [vmem:[#allocation3 + $0x210] sm:$0xff]
        %v2306 = vld [vmem:[#allocation3 + $0x218] sm:$0xff]
        %v2307 = vld [vmem:[#allocation3 + $0x220] sm:$0xff]
        %v2308 = vld [vmem:[#allocation3 + $0x228] sm:$0xff]
        %v2309 = vld [vmem:[#allocation3 + $0x230] sm:$0xff]
        %v2310 = vld [vmem:[#allocation3 + $0x238] sm:$0xff]
        %v2311 = vld [vmem:[#allocation3 + $0x240] sm:$0xff]
        %v2312 = vld [vmem:[#allocation3 + $0x248] sm:$0xff]
        %v2313 = vld [vmem:[#allocation3 + $0x250] sm:$0xff]
        %v2314 = vld [vmem:[#allocation3 + $0x258] sm:$0xff]
        %v2315 = vld [vmem:[#allocation3 + $0x260] sm:$0xff]
        %v2316 = vld [vmem:[#allocation3 + $0x268] sm:$0xff]
        %v2317 = vld [vmem:[#allocation3 + $0x270] sm:$0xff]
        %v2318 = vld [vmem:[#allocation3 + $0x278] sm:$0xff]
        %v2319 = vld [vmem:[#allocation3 + $0x280] sm:$0xff]
        %v2320 = vld [vmem:[#allocation3 + $0x288] sm:$0xff]
        %v2321 = vld [vmem:[#allocation3 + $0x290] sm:$0xff]
        %v2322 = vld [vmem:[#allocation3 + $0x298] sm:$0xff]
        %v2323 = vld [vmem:[#allocation3 + $0x2a0] sm:$0xff]
        %v2324 = vld [vmem:[#allocation3 + $0x2a8] sm:$0xff]
        %v2325 = vld [vmem:[#allocation3 + $0x2b0] sm:$0xff]
        %v2326 = vld [vmem:[#allocation3 + $0x2b8] sm:$0xff]
        %v2327 = vld [vmem:[#allocation3 + $0x2c0] sm:$0xff]
        %v2328 = vld [vmem:[#allocation3 + $0x2c8] sm:$0xff]
        %v2329 = vld [vmem:[#allocation3 + $0x2d0] sm:$0xff]
        %v2330 = vld [vmem:[#allocation3 + $0x2d8] sm:$0xff]
        %v2331 = vld [vmem:[#allocation3 + $0x2e0] sm:$0xff]
        %v2332 = vld [vmem:[#allocation3 + $0x2e8] sm:$0xff]
        %v2333 = vld [vmem:[#allocation3 + $0x2f0] sm:$0xff]
        %v2334 = vld [vmem:[#allocation3 + $0x2f8] sm:$0xff]
        %v2335 = vld [vmem:[#allocation3 + $0x300] sm:$0xff]
        %v2336 = vld [vmem:[#allocation3 + $0x308] sm:$0xff]
        %v2337 = vld [vmem:[#allocation3 + $0x310] sm:$0xff]
        %v2338 = vld [vmem:[#allocation3 + $0x318] sm:$0xff]
        %v2339 = vld [vmem:[#allocation3 + $0x320] sm:$0xff]
        %v2340 = vld [vmem:[#allocation3 + $0x328] sm:$0xff]
        %v2341 = vld [vmem:[#allocation3 + $0x330] sm:$0xff]
        %v2342 = vld [vmem:[#allocation3 + $0x338] sm:$0xff]
        %v2343 = vld [vmem:[#allocation3 + $0x340] sm:$0xff]
        %v2344 = vld [vmem:[#allocation3 + $0x348] sm:$0xff]
        %v2345 = vld [vmem:[#allocation3 + $0x350] sm:$0xff]
        %v2346 = vld [vmem:[#allocation3 + $0x358] sm:$0xff]
        %v2347 = vmul.f32 %v2239, 0.020408163
        %v2348 = vmul.f32 %v2240, 0.020408163
        %v2349 = vmul.f32 %v2241, 0.020408163
        %v2350 = vmul.f32 %v2242, 0.020408163
        %v2351 = vmul.f32 %v2243, 0.020408163
        %v2352 = vmul.f32 %v2244, 0.020408163
        %v2353 = vmul.f32 %v2245, 0.020408163
        %v2354 = vmul.f32 %v2246, 0.020408163
        %v2355 = vmul.f32 %v2247, 0.020408163
        %v2356 = vmul.f32 %v2248, 0.020408163
        %v2357 = vmul.f32 %v2249, 0.020408163
        %v2358 = vmul.f32 %v2250, 0.020408163
        %v2359 = vmul.f32 %v2251, 0.020408163
        %v2360 = vmul.f32 %v2252, 0.020408163
        %v2361 = vmul.f32 %v2253, 0.020408163
        %v2362 = vmul.f32 %v2254, 0.020408163
        %v2363 = vmul.f32 %v2255, 0.020408163
        %v2364 = vmul.f32 %v2256, 0.020408163
        %v2365 = vmul.f32 %v2257, 0.020408163
        %v2366 = vmul.f32 %v2258, 0.020408163
        %v2367 = vmul.f32 %v2259, 0.020408163
        %v2368 = vmul.f32 %v2260, 0.020408163
        %v2369 = vmul.f32 %v2261, 0.020408163
        %v2370 = vmul.f32 %v2262, 0.020408163
        %v2371 = vmul.f32 %v2263, 0.020408163
        %v2372 = vmul.f32 %v2264, 0.020408163
        %v2373 = vmul.f32 %v2265, 0.020408163
        %v2374 = vmul.f32 %v2266, 0.020408163
        %v2375 = vmul.f32 %v2267, 0.020408163
        %v2376 = vmul.f32 %v2268, 0.020408163
        %v2377 = vmul.f32 %v2269, 0.020408163
        %v2378 = vmul.f32 %v2270, 0.020408163
        %v2379 = vmul.f32 %v2271, 0.020408163
        %v2380 = vmul.f32 %v2272, 0.020408163
        %v2381 = vmul.f32 %v2273, 0.020408163
        %v2382 = vmul.f32 %v2274, 0.020408163
        %v2383 = vmul.f32 %v2275, 0.020408163
        %v2384 = vmul.f32 %v2276, 0.020408163
        %v2385 = vmul.f32 %v2277, 0.020408163
        %v2386 = vmul.f32 %v2278, 0.020408163
        %v2387 = vmul.f32 %v2279, 0.020408163
        %v2388 = vmul.f32 %v2280, 0.020408163
        %v2389 = vmul.f32 %v2281, 0.020408163
        %v2390 = vmul.f32 %v2282, 0.020408163
        %v2391 = vmul.f32 %v2283, 0.020408163
        %v2392 = vmul.f32 %v2284, 0.020408163
        %v2393 = vmul.f32 %v2285, 0.020408163
        %v2394 = vmul.f32 %v2286, 0.020408163
        %v2395 = vmul.f32 %v2287, 0.020408163
        %v2396 = vmul.f32 %v2288, 0.020408163
        %v2397 = vmul.f32 %v2289, 0.020408163
        %v2398 = vmul.f32 %v2290, 0.020408163
        %v2399 = vmul.f32 %v2291, 0.020408163
        %v2400 = vmul.f32 %v2292, 0.020408163
        %v2401 = vmul.f32 %v2293, 0.020408163
        %v2402 = vmul.f32 %v2294, 0.020408163
        %v2403 = vmul.f32 %v2295, 0.020408163
        %v2404 = vmul.f32 %v2296, 0.020408163
        %v2405 = vmul.f32 %v2297, 0.020408163
        %v2406 = vmul.f32 %v2298, 0.020408163
        %v2407 = vmul.f32 %v2299, 0.020408163
        %v2408 = vmul.f32 %v2300, 0.020408163
        %v2409 = vmul.f32 %v2301, 0.020408163
        %v2410 = vmul.f32 %v2302, 0.020408163
        %v2411 = vmul.f32 %v2303, 0.020408163
        %v2412 = vmul.f32 %v2304, 0.020408163
        %v2413 = vmul.f32 %v2305, 0.020408163
        %v2414 = vmul.f32 %v2306, 0.020408163
        %v2415 = vmul.f32 %v2307, 0.020408163
        %v2416 = vmul.f32 %v2308, 0.020408163
        %v2417 = vmul.f32 %v2309, 0.020408163
        %v2418 = vmul.f32 %v2310, 0.020408163
        %v2419 = vmul.f32 %v2311, 0.020408163
        %v2420 = vmul.f32 %v2312, 0.020408163
        %v2421 = vmul.f32 %v2313, 0.020408163
        %v2422 = vmul.f32 %v2314, 0.020408163
        %v2423 = vmul.f32 %v2315, 0.020408163
        %v2424 = vmul.f32 %v2316, 0.020408163
        %v2425 = vmul.f32 %v2317, 0.020408163
        %v2426 = vmul.f32 %v2318, 0.020408163
        %v2427 = vmul.f32 %v2319, 0.020408163
        %v2428 = vmul.f32 %v2320, 0.020408163
        %v2429 = vmul.f32 %v2321, 0.020408163
        %v2430 = vmul.f32 %v2322, 0.020408163
        %v2431 = vmul.f32 %v2323, 0.020408163
        %v2432 = vmul.f32 %v2324, 0.020408163
        %v2433 = vmul.f32 %v2325, 0.020408163
        %v2434 = vmul.f32 %v2326, 0.020408163
        %v2435 = vmul.f32 %v2327, 0.020408163
        %v2436 = vmul.f32 %v2328, 0.020408163
        %v2437 = vmul.f32 %v2329, 0.020408163
        %v2438 = vmul.f32 %v2330, 0.020408163
        %v2439 = vmul.f32 %v2331, 0.020408163
        %v2440 = vmul.f32 %v2332, 0.020408163
        %v2441 = vmul.f32 %v2333, 0.020408163
        %v2442 = vmul.f32 %v2334, 0.020408163
        %v2443 = vmul.f32 %v2335, 0.020408163
        %v2444 = vmul.f32 %v2336, 0.020408163
        %v2445 = vmul.f32 %v2337, 0.020408163
        %v2446 = vmul.f32 %v2338, 0.020408163
        %v2447 = vmul.f32 %v2339, 0.020408163
        %v2448 = vmul.f32 %v2340, 0.020408163
        %v2449 = vmul.f32 %v2341, 0.020408163
        %v2450 = vmul.f32 %v2342, 0.020408163
        %v2451 = vmul.f32 %v2343, 0.020408163
        %v2452 = vmul.f32 %v2344, 0.020408163
        %v2453 = vmul.f32 %v2345, 0.020408163
        %v2454 = vmul.f32 %v2346, 0.020408163
        %v2455 = vmul.f32 %v2131, %v2131
        %v2456 = vmul.f32 %v2132, %v2132
        %v2457 = vmul.f32 %v2133, %v2133
        %v2458 = vmul.f32 %v2134, %v2134
        %v2459 = vmul.f32 %v2135, %v2135
        %v2460 = vmul.f32 %v2136, %v2136
        %v2461 = vmul.f32 %v2137, %v2137
        %v2462 = vmul.f32 %v2138, %v2138
        %v2463 = vmul.f32 %v2139, %v2139
        %v2464 = vmul.f32 %v2140, %v2140
        %v2465 = vmul.f32 %v2141, %v2141
        %v2466 = vmul.f32 %v2142, %v2142
        %v2467 = vmul.f32 %v2143, %v2143
        %v2468 = vmul.f32 %v2144, %v2144
        %v2469 = vmul.f32 %v2145, %v2145
        %v2470 = vmul.f32 %v2146, %v2146
        %v2471 = vmul.f32 %v2147, %v2147
        %v2472 = vmul.f32 %v2148, %v2148
        %v2473 = vmul.f32 %v2149, %v2149
        %v2474 = vmul.f32 %v2150, %v2150
        %v2475 = vmul.f32 %v2151, %v2151
        %v2476 = vmul.f32 %v2152, %v2152
        %v2477 = vmul.f32 %v2153, %v2153
        %v2478 = vmul.f32 %v2154, %v2154
        %v2479 = vmul.f32 %v2155, %v2155
        %v2480 = vmul.f32 %v2156, %v2156
        %v2481 = vmul.f32 %v2157, %v2157
        %v2482 = vmul.f32 %v2158, %v2158
        %v2483 = vmul.f32 %v2159, %v2159
        %v2484 = vmul.f32 %v2160, %v2160
        %v2485 = vmul.f32 %v2161, %v2161
        %v2486 = vmul.f32 %v2162, %v2162
        %v2487 = vmul.f32 %v2163, %v2163
        %v2488 = vmul.f32 %v2164, %v2164
        %v2489 = vmul.f32 %v2165, %v2165
        %v2490 = vmul.f32 %v2166, %v2166
        %v2491 = vmul.f32 %v2167, %v2167
        %v2492 = vmul.f32 %v2168, %v2168
        %v2493 = vmul.f32 %v2169, %v2169
        %v2494 = vmul.f32 %v2170, %v2170
        %v2495 = vmul.f32 %v2171, %v2171
        %v2496 = vmul.f32 %v2172, %v2172
        %v2497 = vmul.f32 %v2173, %v2173
        %v2498 = vmul.f32 %v2174, %v2174
        %v2499 = vmul.f32 %v2175, %v2175
        %v2500 = vmul.f32 %v2176, %v2176
        %v2501 = vmul.f32 %v2177, %v2177
        %v2502 = vmul.f32 %v2178, %v2178
        %v2503 = vmul.f32 %v2179, %v2179
        %v2504 = vmul.f32 %v2180, %v2180
        %v2505 = vmul.f32 %v2181, %v2181
        %v2506 = vmul.f32 %v2182, %v2182
        %v2507 = vmul.f32 %v2183, %v2183
        %v2508 = vmul.f32 %v2184, %v2184
        %v2509 = vmul.f32 %v2185, %v2185
        %v2510 = vmul.f32 %v2186, %v2186
        %v2511 = vmul.f32 %v2187, %v2187
        %v2512 = vmul.f32 %v2188, %v2188
        %v2513 = vmul.f32 %v2189, %v2189
        %v2514 = vmul.f32 %v2190, %v2190
        %v2515 = vmul.f32 %v2191, %v2191
        %v2516 = vmul.f32 %v2192, %v2192
        %v2517 = vmul.f32 %v2193, %v2193
        %v2518 = vmul.f32 %v2194, %v2194
        %v2519 = vmul.f32 %v2195, %v2195
        %v2520 = vmul.f32 %v2196, %v2196
        %v2521 = vmul.f32 %v2197, %v2197
        %v2522 = vmul.f32 %v2198, %v2198
        %v2523 = vmul.f32 %v2199, %v2199
        %v2524 = vmul.f32 %v2200, %v2200
        %v2525 = vmul.f32 %v2201, %v2201
        %v2526 = vmul.f32 %v2202, %v2202
        %v2527 = vmul.f32 %v2203, %v2203
        %v2528 = vmul.f32 %v2204, %v2204
        %v2529 = vmul.f32 %v2205, %v2205
        %v2530 = vmul.f32 %v2206, %v2206
        %v2531 = vmul.f32 %v2207, %v2207
        %v2532 = vmul.f32 %v2208, %v2208
        %v2533 = vmul.f32 %v2209, %v2209
        %v2534 = vmul.f32 %v2210, %v2210
        %v2535 = vmul.f32 %v2211, %v2211
        %v2536 = vmul.f32 %v2212, %v2212
        %v2537 = vmul.f32 %v2213, %v2213
        %v2538 = vmul.f32 %v2214, %v2214
        %v2539 = vmul.f32 %v2215, %v2215
        %v2540 = vmul.f32 %v2216, %v2216
        %v2541 = vmul.f32 %v2217, %v2217
        %v2542 = vmul.f32 %v2218, %v2218
        %v2543 = vmul.f32 %v2219, %v2219
        %v2544 = vmul.f32 %v2220, %v2220
        %v2545 = vmul.f32 %v2221, %v2221
        %v2546 = vmul.f32 %v2222, %v2222
        %v2547 = vmul.f32 %v2223, %v2223
        %v2548 = vmul.f32 %v2224, %v2224
        %v2549 = vmul.f32 %v2225, %v2225
        %v2550 = vmul.f32 %v2226, %v2226
        %v2551 = vmul.f32 %v2227, %v2227
        %v2552 = vmul.f32 %v2228, %v2228
        %v2553 = vmul.f32 %v2229, %v2229
        %v2554 = vmul.f32 %v2230, %v2230
        %v2555 = vmul.f32 %v2231, %v2231
        %v2556 = vmul.f32 %v2232, %v2232
        %v2557 = vmul.f32 %v2233, %v2233
        %v2558 = vmul.f32 %v2234, %v2234
        %v2559 = vmul.f32 %v2235, %v2235
        %v2560 = vmul.f32 %v2236, %v2236
        %v2561 = vmul.f32 %v2237, %v2237
        %v2562 = vmul.f32 %v2238, %v2238
        %v2563 = vsub.f32 %v2347, %v2455
        %v2564 = vsub.f32 %v2348, %v2456
        %v2565 = vsub.f32 %v2349, %v2457
        %v2566 = vsub.f32 %v2350, %v2458
        %v2567 = vsub.f32 %v2351, %v2459
        %v2568 = vsub.f32 %v2352, %v2460
        %v2569 = vsub.f32 %v2353, %v2461
        %v2570 = vsub.f32 %v2354, %v2462
        %v2571 = vsub.f32 %v2355, %v2463
        %v2572 = vsub.f32 %v2356, %v2464
        %v2573 = vsub.f32 %v2357, %v2465
        %v2574 = vsub.f32 %v2358, %v2466
        %v2575 = vsub.f32 %v2359, %v2467
        %v2576 = vsub.f32 %v2360, %v2468
        %v2577 = vsub.f32 %v2361, %v2469
        %v2578 = vsub.f32 %v2362, %v2470
        %v2579 = vsub.f32 %v2363, %v2471
        %v2580 = vsub.f32 %v2364, %v2472
        %v2581 = vsub.f32 %v2365, %v2473
        %v2582 = vsub.f32 %v2366, %v2474
        %v2583 = vsub.f32 %v2367, %v2475
        %v2584 = vsub.f32 %v2368, %v2476
        %v2585 = vsub.f32 %v2369, %v2477
        %v2586 = vsub.f32 %v2370, %v2478
        %v2587 = vsub.f32 %v2371, %v2479
        %v2588 = vsub.f32 %v2372, %v2480
        %v2589 = vsub.f32 %v2373, %v2481
        %v2590 = vsub.f32 %v2374, %v2482
        %v2591 = vsub.f32 %v2375, %v2483
        %v2592 = vsub.f32 %v2376, %v2484
        %v2593 = vsub.f32 %v2377, %v2485
        %v2594 = vsub.f32 %v2378, %v2486
        %v2595 = vsub.f32 %v2379, %v2487
        %v2596 = vsub.f32 %v2380, %v2488
        %v2597 = vsub.f32 %v2381, %v2489
        %v2598 = vsub.f32 %v2382, %v2490
        %v2599 = vsub.f32 %v2383, %v2491
        %v2600 = vsub.f32 %v2384, %v2492
        %v2601 = vsub.f32 %v2385, %v2493
        %v2602 = vsub.f32 %v2386, %v2494
        %v2603 = vsub.f32 %v2387, %v2495
        %v2604 = vsub.f32 %v2388, %v2496
        %v2605 = vsub.f32 %v2389, %v2497
        %v2606 = vsub.f32 %v2390, %v2498
        %v2607 = vsub.f32 %v2391, %v2499
        %v2608 = vsub.f32 %v2392, %v2500
        %v2609 = vsub.f32 %v2393, %v2501
        %v2610 = vsub.f32 %v2394, %v2502
        %v2611 = vsub.f32 %v2395, %v2503
        %v2612 = vsub.f32 %v2396, %v2504
        %v2613 = vsub.f32 %v2397, %v2505
        %v2614 = vsub.f32 %v2398, %v2506
        %v2615 = vsub.f32 %v2399, %v2507
        %v2616 = vsub.f32 %v2400, %v2508
        %v2617 = vsub.f32 %v2401, %v2509
        %v2618 = vsub.f32 %v2402, %v2510
        %v2619 = vsub.f32 %v2403, %v2511
        %v2620 = vsub.f32 %v2404, %v2512
        %v2621 = vsub.f32 %v2405, %v2513
        %v2622 = vsub.f32 %v2406, %v2514
        %v2623 = vsub.f32 %v2407, %v2515
        %v2624 = vsub.f32 %v2408, %v2516
        %v2625 = vsub.f32 %v2409, %v2517
        %v2626 = vsub.f32 %v2410, %v2518
        %v2627 = vsub.f32 %v2411, %v2519
        %v2628 = vsub.f32 %v2412, %v2520
        %v2629 = vsub.f32 %v2413, %v2521
        %v2630 = vsub.f32 %v2414, %v2522
        %v2631 = vsub.f32 %v2415, %v2523
        %v2632 = vsub.f32 %v2416, %v2524
        %v2633 = vsub.f32 %v2417, %v2525
        %v2634 = vsub.f32 %v2418, %v2526
        %v2635 = vsub.f32 %v2419, %v2527
        %v2636 = vsub.f32 %v2420, %v2528
        %v2637 = vsub.f32 %v2421, %v2529
        %v2638 = vsub.f32 %v2422, %v2530
        %v2639 = vsub.f32 %v2423, %v2531
        %v2640 = vsub.f32 %v2424, %v2532
        %v2641 = vsub.f32 %v2425, %v2533
        %v2642 = vsub.f32 %v2426, %v2534
        %v2643 = vsub.f32 %v2427, %v2535
        %v2644 = vsub.f32 %v2428, %v2536
        %v2645 = vsub.f32 %v2429, %v2537
        %v2646 = vsub.f32 %v2430, %v2538
        %v2647 = vsub.f32 %v2431, %v2539
        %v2648 = vsub.f32 %v2432, %v2540
        %v2649 = vsub.f32 %v2433, %v2541
        %v2650 = vsub.f32 %v2434, %v2542
        %v2651 = vsub.f32 %v2435, %v2543
        %v2652 = vsub.f32 %v2436, %v2544
        %v2653 = vsub.f32 %v2437, %v2545
        %v2654 = vsub.f32 %v2438, %v2546
        %v2655 = vsub.f32 %v2439, %v2547
        %v2656 = vsub.f32 %v2440, %v2548
        %v2657 = vsub.f32 %v2441, %v2549
        %v2658 = vsub.f32 %v2442, %v2550
        %v2659 = vsub.f32 %v2443, %v2551
        %v2660 = vsub.f32 %v2444, %v2552
        %v2661 = vsub.f32 %v2445, %v2553
        %v2662 = vsub.f32 %v2446, %v2554
        %v2663 = vsub.f32 %v2447, %v2555
        %v2664 = vsub.f32 %v2448, %v2556
        %v2665 = vsub.f32 %v2449, %v2557
        %v2666 = vsub.f32 %v2450, %v2558
        %v2667 = vsub.f32 %v2451, %v2559
        %v2668 = vsub.f32 %v2452, %v2560
        %v2669 = vsub.f32 %v2453, %v2561
        %v2670 = vsub.f32 %v2454, %v2562
        %v2671 = vmax.f32 %v2563, 0.0
        %v2672 = vmax.f32 %v2564, 0.0
        %v2673 = vmax.f32 %v2565, 0.0
        %v2674 = vmax.f32 %v2566, 0.0
        %v2675 = vmax.f32 %v2567, 0.0
        %v2676 = vmax.f32 %v2568, 0.0
        %v2677 = vmax.f32 %v2569, 0.0
        %v2678 = vmax.f32 %v2570, 0.0
        %v2679 = vmax.f32 %v2571, 0.0
        %v2680 = vmax.f32 %v2572, 0.0
        %v2681 = vmax.f32 %v2573, 0.0
        %v2682 = vmax.f32 %v2574, 0.0
        %v2683 = vmax.f32 %v2575, 0.0
        %v2684 = vmax.f32 %v2576, 0.0
        %v2685 = vmax.f32 %v2577, 0.0
        %v2686 = vmax.f32 %v2578, 0.0
        %v2687 = vmax.f32 %v2579, 0.0
        %v2688 = vmax.f32 %v2580, 0.0
        %v2689 = vmax.f32 %v2581, 0.0
        %v2690 = vmax.f32 %v2582, 0.0
        %v2691 = vmax.f32 %v2583, 0.0
        %v2692 = vmax.f32 %v2584, 0.0
        %v2693 = vmax.f32 %v2585, 0.0
        %v2694 = vmax.f32 %v2586, 0.0
        %v2695 = vmax.f32 %v2587, 0.0
        %v2696 = vmax.f32 %v2588, 0.0
        %v2697 = vmax.f32 %v2589, 0.0
        %v2698 = vmax.f32 %v2590, 0.0
        %v2699 = vmax.f32 %v2591, 0.0
        %v2700 = vmax.f32 %v2592, 0.0
        %v2701 = vmax.f32 %v2593, 0.0
        %v2702 = vmax.f32 %v2594, 0.0
        %v2703 = vmax.f32 %v2595, 0.0
        %v2704 = vmax.f32 %v2596, 0.0
        %v2705 = vmax.f32 %v2597, 0.0
        %v2706 = vmax.f32 %v2598, 0.0
        %v2707 = vmax.f32 %v2599, 0.0
        %v2708 = vmax.f32 %v2600, 0.0
        %v2709 = vmax.f32 %v2601, 0.0
        %v2710 = vmax.f32 %v2602, 0.0
        %v2711 = vmax.f32 %v2603, 0.0
        %v2712 = vmax.f32 %v2604, 0.0
        %v2713 = vmax.f32 %v2605, 0.0
        %v2714 = vmax.f32 %v2606, 0.0
        %v2715 = vmax.f32 %v2607, 0.0
        %v2716 = vmax.f32 %v2608, 0.0
        %v2717 = vmax.f32 %v2609, 0.0
        %v2718 = vmax.f32 %v2610, 0.0
        %v2719 = vmax.f32 %v2611, 0.0
        %v2720 = vmax.f32 %v2612, 0.0
        %v2721 = vmax.f32 %v2613, 0.0
        %v2722 = vmax.f32 %v2614, 0.0
        %v2723 = vmax.f32 %v2615, 0.0
        %v2724 = vmax.f32 %v2616, 0.0
        %v2725 = vmax.f32 %v2617, 0.0
        %v2726 = vmax.f32 %v2618, 0.0
        %v2727 = vmax.f32 %v2619, 0.0
        %v2728 = vmax.f32 %v2620, 0.0
        %v2729 = vmax.f32 %v2621, 0.0
        %v2730 = vmax.f32 %v2622, 0.0
        %v2731 = vmax.f32 %v2623, 0.0
        %v2732 = vmax.f32 %v2624, 0.0
        %v2733 = vmax.f32 %v2625, 0.0
        %v2734 = vmax.f32 %v2626, 0.0
        %v2735 = vmax.f32 %v2627, 0.0
        %v2736 = vmax.f32 %v2628, 0.0
        %v2737 = vmax.f32 %v2629, 0.0
        %v2738 = vmax.f32 %v2630, 0.0
        %v2739 = vmax.f32 %v2631, 0.0
        %v2740 = vmax.f32 %v2632, 0.0
        %v2741 = vmax.f32 %v2633, 0.0
        %v2742 = vmax.f32 %v2634, 0.0
        %v2743 = vmax.f32 %v2635, 0.0
        %v2744 = vmax.f32 %v2636, 0.0
        %v2745 = vmax.f32 %v2637, 0.0
        %v2746 = vmax.f32 %v2638, 0.0
        %v2747 = vmax.f32 %v2639, 0.0
        %v2748 = vmax.f32 %v2640, 0.0
        %v2749 = vmax.f32 %v2641, 0.0
        %v2750 = vmax.f32 %v2642, 0.0
        %v2751 = vmax.f32 %v2643, 0.0
        %v2752 = vmax.f32 %v2644, 0.0
        %v2753 = vmax.f32 %v2645, 0.0
        %v2754 = vmax.f32 %v2646, 0.0
        %v2755 = vmax.f32 %v2647, 0.0
        %v2756 = vmax.f32 %v2648, 0.0
        %v2757 = vmax.f32 %v2649, 0.0
        %v2758 = vmax.f32 %v2650, 0.0
        %v2759 = vmax.f32 %v2651, 0.0
        %v2760 = vmax.f32 %v2652, 0.0
        %v2761 = vmax.f32 %v2653, 0.0
        %v2762 = vmax.f32 %v2654, 0.0
        %v2763 = vmax.f32 %v2655, 0.0
        %v2764 = vmax.f32 %v2656, 0.0
        %v2765 = vmax.f32 %v2657, 0.0
        %v2766 = vmax.f32 %v2658, 0.0
        %v2767 = vmax.f32 %v2659, 0.0
        %v2768 = vmax.f32 %v2660, 0.0
        %v2769 = vmax.f32 %v2661, 0.0
        %v2770 = vmax.f32 %v2662, 0.0
        %v2771 = vmax.f32 %v2663, 0.0
        %v2772 = vmax.f32 %v2664, 0.0
        %v2773 = vmax.f32 %v2665, 0.0
        %v2774 = vmax.f32 %v2666, 0.0
        %v2775 = vmax.f32 %v2667, 0.0
        %v2776 = vmax.f32 %v2668, 0.0
        %v2777 = vmax.f32 %v2669, 0.0
        %v2778 = vmax.f32 %v2670, 0.0
        %v2779 = vld [vmem:[%s265] sm:$0xff]
        %v2780 = vld [vmem:[%s265 + $0x8] sm:$0xff]
        %v2781 = vld [vmem:[%s265 + $0x10] sm:$0xff]
        %v2782 = vld [vmem:[%s265 + $0x18] sm:$0xff]
        %v2783 = vld [vmem:[%s265 + $0x20] sm:$0xff]
        %v2784 = vld [vmem:[%s265 + $0x28] sm:$0xff]
        %v2785 = vld [vmem:[%s265 + $0x30] sm:$0xff]
        %v2786 = vld [vmem:[%s265 + $0x38] sm:$0xff]
        %v2787 = vld [vmem:[%s265 + $0x40] sm:$0xff]
        %v2788 = vld [vmem:[%s265 + $0x48] sm:$0xff]
        %v2789 = vld [vmem:[%s265 + $0x50] sm:$0xff]
        %v2790 = vld [vmem:[%s265 + $0x58] sm:$0xff]
        %v2791 = vld [vmem:[%s265 + $0x60] sm:$0xff]
        %v2792 = vld [vmem:[%s265 + $0x68] sm:$0xff]
        %v2793 = vld [vmem:[%s265 + $0x70] sm:$0xff]
        %v2794 = vld [vmem:[%s265 + $0x78] sm:$0xff]
        %v2795 = vld [vmem:[%s265 + $0x80] sm:$0xff]
        %v2796 = vld [vmem:[%s265 + $0x88] sm:$0xff]
        %v2797 = vld [vmem:[%s265 + $0x90] sm:$0xff]
        %v2798 = vld [vmem:[%s265 + $0x98] sm:$0xff]
        %v2799 = vld [vmem:[%s265 + $0xa0] sm:$0xff]
        %v2800 = vld [vmem:[%s265 + $0xa8] sm:$0xff]
        %v2801 = vld [vmem:[%s265 + $0xb0] sm:$0xff]
        %v2802 = vld [vmem:[%s265 + $0xb8] sm:$0xff]
        %v2803 = vld [vmem:[%s265 + $0xc0] sm:$0xff]
        %v2804 = vld [vmem:[%s265 + $0xc8] sm:$0xff]
        %v2805 = vld [vmem:[%s265 + $0xd0] sm:$0xff]
        %v2806 = vld [vmem:[%s265 + $0xd8] sm:$0xff]
        %v2807 = vld [vmem:[%s265 + $0xe0] sm:$0xff]
        %v2808 = vld [vmem:[%s265 + $0xe8] sm:$0xff]
        %v2809 = vld [vmem:[%s265 + $0xf0] sm:$0xff]
        %v2810 = vld [vmem:[%s265 + $0xf8] sm:$0xff]
        %v2811 = vld [vmem:[%s265 + $0x100] sm:$0xff]
        %v2812 = vld [vmem:[%s265 + $0x108] sm:$0xff]
        %v2813 = vld [vmem:[%s265 + $0x110] sm:$0xff]
        %v2814 = vld [vmem:[%s265 + $0x118] sm:$0xff]
        %v2815 = vld [vmem:[%s265 + $0x120] sm:$0xff]
        %v2816 = vld [vmem:[%s265 + $0x128] sm:$0xff]
        %v2817 = vld [vmem:[%s265 + $0x130] sm:$0xff]
        %v2818 = vld [vmem:[%s265 + $0x138] sm:$0xff]
        %v2819 = vld [vmem:[%s265 + $0x140] sm:$0xff]
        %v2820 = vld [vmem:[%s265 + $0x148] sm:$0xff]
        %v2821 = vld [vmem:[%s265 + $0x150] sm:$0xff]
        %v2822 = vld [vmem:[%s265 + $0x158] sm:$0xff]
        %v2823 = vld [vmem:[%s265 + $0x160] sm:$0xff]
        %v2824 = vld [vmem:[%s265 + $0x168] sm:$0xff]
        %v2825 = vld [vmem:[%s265 + $0x170] sm:$0xff]
        %v2826 = vld [vmem:[%s265 + $0x178] sm:$0xff]
        %v2827 = vld [vmem:[%s265 + $0x180] sm:$0xff]
        %v2828 = vld [vmem:[%s265 + $0x188] sm:$0xff]
        %v2829 = vld [vmem:[%s265 + $0x190] sm:$0xff]
        %v2830 = vld [vmem:[%s265 + $0x198] sm:$0xff]
        %v2831 = vld [vmem:[%s265 + $0x1a0] sm:$0xff]
        %v2832 = vld [vmem:[%s265 + $0x1a8] sm:$0xff]
        %v2833 = vld [vmem:[%s265 + $0x1b0] sm:$0xff]
        %v2834 = vld [vmem:[%s265 + $0x1b8] sm:$0xff]
        %v2835 = vld [vmem:[%s265 + $0x1c0] sm:$0xff]
        %v2836 = vld [vmem:[%s265 + $0x1c8] sm:$0xff]
        %v2837 = vld [vmem:[%s265 + $0x1d0] sm:$0xff]
        %v2838 = vld [vmem:[%s265 + $0x1d8] sm:$0xff]
        %v2839 = vld [vmem:[%s265 + $0x1e0] sm:$0xff]
        %v2840 = vld [vmem:[%s265 + $0x1e8] sm:$0xff]
        %v2841 = vld [vmem:[%s265 + $0x1f0] sm:$0xff]
        %v2842 = vld [vmem:[%s265 + $0x1f8] sm:$0xff]
        %v2843 = vld [vmem:[%s265 + $0x200] sm:$0xff]
        %v2844 = vld [vmem:[%s265 + $0x208] sm:$0xff]
        %v2845 = vld [vmem:[%s265 + $0x210] sm:$0xff]
        %v2846 = vld [vmem:[%s265 + $0x218] sm:$0xff]
        %v2847 = vld [vmem:[%s265 + $0x220] sm:$0xff]
        %v2848 = vld [vmem:[%s265 + $0x228] sm:$0xff]
        %v2849 = vld [vmem:[%s265 + $0x230] sm:$0xff]
        %v2850 = vld [vmem:[%s265 + $0x238] sm:$0xff]
        %v2851 = vld [vmem:[%s265 + $0x240] sm:$0xff]
        %v2852 = vld [vmem:[%s265 + $0x248] sm:$0xff]
        %v2853 = vld [vmem:[%s265 + $0x250] sm:$0xff]
        %v2854 = vld [vmem:[%s265 + $0x258] sm:$0xff]
        %v2855 = vld [vmem:[%s265 + $0x260] sm:$0xff]
        %v2856 = vld [vmem:[%s265 + $0x268] sm:$0xff]
        %v2857 = vld [vmem:[%s265 + $0x270] sm:$0xff]
        %v2858 = vld [vmem:[%s265 + $0x278] sm:$0xff]
        %v2859 = vld [vmem:[%s265 + $0x280] sm:$0xff]
        %v2860 = vld [vmem:[%s265 + $0x288] sm:$0xff]
        %v2861 = vld [vmem:[%s265 + $0x290] sm:$0xff]
        %v2862 = vld [vmem:[%s265 + $0x298] sm:$0xff]
        %v2863 = vld [vmem:[%s265 + $0x2a0] sm:$0xff]
        %v2864 = vld [vmem:[%s265 + $0x2a8] sm:$0xff]
        %v2865 = vld [vmem:[%s265 + $0x2b0] sm:$0xff]
        %v2866 = vld [vmem:[%s265 + $0x2b8] sm:$0xff]
        %v2867 = vld [vmem:[%s265 + $0x2c0] sm:$0xff]
        %v2868 = vld [vmem:[%s265 + $0x2c8] sm:$0xff]
        %v2869 = vld [vmem:[%s265 + $0x2d0] sm:$0xff]
        %v2870 = vld [vmem:[%s265 + $0x2d8] sm:$0xff]
        %v2871 = vld [vmem:[%s265 + $0x2e0] sm:$0xff]
        %v2872 = vld [vmem:[%s265 + $0x2e8] sm:$0xff]
        %v2873 = vld [vmem:[%s265 + $0x2f0] sm:$0xff]
        %v2874 = vld [vmem:[%s265 + $0x2f8] sm:$0xff]
        %v2875 = vld [vmem:[%s265 + $0x300] sm:$0xff]
        %v2876 = vld [vmem:[%s265 + $0x308] sm:$0xff]
        %v2877 = vld [vmem:[%s265 + $0x310] sm:$0xff]
        %v2878 = vld [vmem:[%s265 + $0x318] sm:$0xff]
        %v2879 = vld [vmem:[%s265 + $0x320] sm:$0xff]
        %v2880 = vld [vmem:[%s265 + $0x328] sm:$0xff]
        %v2881 = vld [vmem:[%s265 + $0x330] sm:$0xff]
        %v2882 = vld [vmem:[%s265 + $0x338] sm:$0xff]
        %v2883 = vld [vmem:[%s265 + $0x340] sm:$0xff]
        %v2884 = vld [vmem:[%s265 + $0x348] sm:$0xff]
        %v2885 = vld [vmem:[%s265 + $0x350] sm:$0xff]
        %v2886 = vld [vmem:[%s265 + $0x358] sm:$0xff]
        %v2887 = vadd.f32 %v2671, 0.001
        %v2888 = vadd.f32 %v2672, 0.001
        %v2889 = vadd.f32 %v2673, 0.001
        %v2890 = vadd.f32 %v2674, 0.001
        %v2891 = vadd.f32 %v2675, 0.001
        %v2892 = vadd.f32 %v2676, 0.001
        %v2893 = vadd.f32 %v2677, 0.001
        %v2894 = vadd.f32 %v2678, 0.001
        %v2895 = vadd.f32 %v2679, 0.001
        %v2896 = vadd.f32 %v2680, 0.001
        %v2897 = vadd.f32 %v2681, 0.001
        %v2898 = vadd.f32 %v2682, 0.001
        %v2899 = vadd.f32 %v2683, 0.001
        %v2900 = vadd.f32 %v2684, 0.001
        %v2901 = vadd.f32 %v2685, 0.001
        %v2902 = vadd.f32 %v2686, 0.001
        %v2903 = vadd.f32 %v2687, 0.001
        %v2904 = vadd.f32 %v2688, 0.001
        %v2905 = vadd.f32 %v2689, 0.001
        %v2906 = vadd.f32 %v2690, 0.001
        %v2907 = vadd.f32 %v2691, 0.001
        %v2908 = vadd.f32 %v2692, 0.001
        %v2909 = vadd.f32 %v2693, 0.001
        %v2910 = vadd.f32 %v2694, 0.001
        %v2911 = vadd.f32 %v2695, 0.001
        %v2912 = vadd.f32 %v2696, 0.001
        %v2913 = vadd.f32 %v2697, 0.001
        %v2914 = vadd.f32 %v2698, 0.001
        %v2915 = vadd.f32 %v2699, 0.001
        %v2916 = vadd.f32 %v2700, 0.001
        %v2917 = vadd.f32 %v2701, 0.001
        %v2918 = vadd.f32 %v2702, 0.001
        %v2919 = vadd.f32 %v2703, 0.001
        %v2920 = vadd.f32 %v2704, 0.001
        %v2921 = vadd.f32 %v2705, 0.001
        %v2922 = vadd.f32 %v2706, 0.001
        %v2923 = vadd.f32 %v2707, 0.001
        %v2924 = vadd.f32 %v2708, 0.001
        %v2925 = vadd.f32 %v2709, 0.001
        %v2926 = vadd.f32 %v2710, 0.001
        %v2927 = vadd.f32 %v2711, 0.001
        %v2928 = vadd.f32 %v2712, 0.001
        %v2929 = vadd.f32 %v2713, 0.001
        %v2930 = vadd.f32 %v2714, 0.001
        %v2931 = vadd.f32 %v2715, 0.001
        %v2932 = vadd.f32 %v2716, 0.001
        %v2933 = vadd.f32 %v2717, 0.001
        %v2934 = vadd.f32 %v2718, 0.001
        %v2935 = vadd.f32 %v2719, 0.001
        %v2936 = vadd.f32 %v2720, 0.001
        %v2937 = vadd.f32 %v2721, 0.001
        %v2938 = vadd.f32 %v2722, 0.001
        %v2939 = vadd.f32 %v2723, 0.001
        %v2940 = vadd.f32 %v2724, 0.001
        %v2941 = vadd.f32 %v2725, 0.001
        %v2942 = vadd.f32 %v2726, 0.001
        %v2943 = vadd.f32 %v2727, 0.001
        %v2944 = vadd.f32 %v2728, 0.001
        %v2945 = vadd.f32 %v2729, 0.001
        %v2946 = vadd.f32 %v2730, 0.001
        %v2947 = vadd.f32 %v2731, 0.001
        %v2948 = vadd.f32 %v2732, 0.001
        %v2949 = vadd.f32 %v2733, 0.001
        %v2950 = vadd.f32 %v2734, 0.001
        %v2951 = vadd.f32 %v2735, 0.001
        %v2952 = vadd.f32 %v2736, 0.001
        %v2953 = vadd.f32 %v2737, 0.001
        %v2954 = vadd.f32 %v2738, 0.001
        %v2955 = vadd.f32 %v2739, 0.001
        %v2956 = vadd.f32 %v2740, 0.001
        %v2957 = vadd.f32 %v2741, 0.001
        %v2958 = vadd.f32 %v2742, 0.001
        %v2959 = vadd.f32 %v2743, 0.001
        %v2960 = vadd.f32 %v2744, 0.001
        %v2961 = vadd.f32 %v2745, 0.001
        %v2962 = vadd.f32 %v2746, 0.001
        %v2963 = vadd.f32 %v2747, 0.001
        %v2964 = vadd.f32 %v2748, 0.001
        %v2965 = vadd.f32 %v2749, 0.001
        %v2966 = vadd.f32 %v2750, 0.001
        %v2967 = vadd.f32 %v2751, 0.001
        %v2968 = vadd.f32 %v2752, 0.001
        %v2969 = vadd.f32 %v2753, 0.001
        %v2970 = vadd.f32 %v2754, 0.001
        %v2971 = vadd.f32 %v2755, 0.001
        %v2972 = vadd.f32 %v2756, 0.001
        %v2973 = vadd.f32 %v2757, 0.001
        %v2974 = vadd.f32 %v2758, 0.001
        %v2975 = vadd.f32 %v2759, 0.001
        %v2976 = vadd.f32 %v2760, 0.001
        %v2977 = vadd.f32 %v2761, 0.001
        %v2978 = vadd.f32 %v2762, 0.001
        %v2979 = vadd.f32 %v2763, 0.001
        %v2980 = vadd.f32 %v2764, 0.001
        %v2981 = vadd.f32 %v2765, 0.001
        %v2982 = vadd.f32 %v2766, 0.001
        %v2983 = vadd.f32 %v2767, 0.001
        %v2984 = vadd.f32 %v2768, 0.001
        %v2985 = vadd.f32 %v2769, 0.001
        %v2986 = vadd.f32 %v2770, 0.001
        %v2987 = vadd.f32 %v2771, 0.001
        %v2988 = vadd.f32 %v2772, 0.001
        %v2989 = vadd.f32 %v2773, 0.001
        %v2990 = vadd.f32 %v2774, 0.001
        %v2991 = vadd.f32 %v2775, 0.001
        %v2992 = vadd.f32 %v2776, 0.001
        %v2993 = vadd.f32 %v2777, 0.001
        %v2994 = vadd.f32 %v2778, 0.001
        %v2995 = vrsqrt.pop %v2887
        %v2996 = vmul.f32 %v2995, %v2887
        %v2997 = vmul.f32 %v2996, %v2995
        %v2998 = vmul.f32 0.5, %v2997
        %v2999 = vsub.f32 1.5, %v2998
        %v3000 = vmul.f32 %v2995, %v2999
        %vm3001 = vweird.f32 %v2887
        %vm3002 = vweird.f32 %v2995
        %vm3003 = vmor %vm3001, %vm3002
        %v3004 = vsel %vm3003, %v2995, %v3000
        %v3005 = vrsqrt.pop %v2888
        %v3006 = vmul.f32 %v3005, %v2888
        %v3007 = vmul.f32 %v3006, %v3005
        %v3008 = vmul.f32 0.5, %v3007
        %v3009 = vsub.f32 1.5, %v3008
        %v3010 = vmul.f32 %v3005, %v3009
        %vm3011 = vweird.f32 %v2888
        %vm3012 = vweird.f32 %v3005
        %vm3013 = vmor %vm3011, %vm3012
        %v3014 = vsel %vm3013, %v3005, %v3010
        %v3015 = vrsqrt.pop %v2889
        %v3016 = vmul.f32 %v3015, %v2889
        %v3017 = vmul.f32 %v3016, %v3015
        %v3018 = vmul.f32 0.5, %v3017
        %v3019 = vsub.f32 1.5, %v3018
        %v3020 = vmul.f32 %v3015, %v3019
        %vm3021 = vweird.f32 %v2889
        %vm3022 = vweird.f32 %v3015
        %vm3023 = vmor %vm3021, %vm3022
        %v3024 = vsel %vm3023, %v3015, %v3020
        %v3025 = vrsqrt.pop %v2890
        %v3026 = vmul.f32 %v3025, %v2890
        %v3027 = vmul.f32 %v3026, %v3025
        %v3028 = vmul.f32 0.5, %v3027
        %v3029 = vsub.f32 1.5, %v3028
        %v3030 = vmul.f32 %v3025, %v3029
        %vm3031 = vweird.f32 %v2890
        %vm3032 = vweird.f32 %v3025
        %vm3033 = vmor %vm3031, %vm3032
        %v3034 = vsel %vm3033, %v3025, %v3030
        %v3035 = vrsqrt.pop %v2891
        %v3036 = vmul.f32 %v3035, %v2891
        %v3037 = vmul.f32 %v3036, %v3035
        %v3038 = vmul.f32 0.5, %v3037
        %v3039 = vsub.f32 1.5, %v3038
        %v3040 = vmul.f32 %v3035, %v3039
        %vm3041 = vweird.f32 %v2891
        %vm3042 = vweird.f32 %v3035
        %vm3043 = vmor %vm3041, %vm3042
        %v3044 = vsel %vm3043, %v3035, %v3040
        %v3045 = vrsqrt.pop %v2892
        %v3046 = vmul.f32 %v3045, %v2892
        %v3047 = vmul.f32 %v3046, %v3045
        %v3048 = vmul.f32 0.5, %v3047
        %v3049 = vsub.f32 1.5, %v3048
        %v3050 = vmul.f32 %v3045, %v3049
        %vm3051 = vweird.f32 %v2892
        %vm3052 = vweird.f32 %v3045
        %vm3053 = vmor %vm3051, %vm3052
        %v3054 = vsel %vm3053, %v3045, %v3050
        %v3055 = vrsqrt.pop %v2893
        %v3056 = vmul.f32 %v3055, %v2893
        %v3057 = vmul.f32 %v3056, %v3055
        %v3058 = vmul.f32 0.5, %v3057
        %v3059 = vsub.f32 1.5, %v3058
        %v3060 = vmul.f32 %v3055, %v3059
        %vm3061 = vweird.f32 %v2893
        %vm3062 = vweird.f32 %v3055
        %vm3063 = vmor %vm3061, %vm3062
        %v3064 = vsel %vm3063, %v3055, %v3060
        %v3065 = vrsqrt.pop %v2894
        %v3066 = vmul.f32 %v3065, %v2894
        %v3067 = vmul.f32 %v3066, %v3065
        %v3068 = vmul.f32 0.5, %v3067
        %v3069 = vsub.f32 1.5, %v3068
        %v3070 = vmul.f32 %v3065, %v3069
        %vm3071 = vweird.f32 %v2894
        %vm3072 = vweird.f32 %v3065
        %vm3073 = vmor %vm3071, %vm3072
        %v3074 = vsel %vm3073, %v3065, %v3070
        %v3075 = vrsqrt.pop %v2895
        %v3076 = vmul.f32 %v3075, %v2895
        %v3077 = vmul.f32 %v3076, %v3075
        %v3078 = vmul.f32 0.5, %v3077
        %v3079 = vsub.f32 1.5, %v3078
        %v3080 = vmul.f32 %v3075, %v3079
        %vm3081 = vweird.f32 %v2895
        %vm3082 = vweird.f32 %v3075
        %vm3083 = vmor %vm3081, %vm3082
        %v3084 = vsel %vm3083, %v3075, %v3080
        %v3085 = vrsqrt.pop %v2896
        %v3086 = vmul.f32 %v3085, %v2896
        %v3087 = vmul.f32 %v3086, %v3085
        %v3088 = vmul.f32 0.5, %v3087
        %v3089 = vsub.f32 1.5, %v3088
        %v3090 = vmul.f32 %v3085, %v3089
        %vm3091 = vweird.f32 %v2896
        %vm3092 = vweird.f32 %v3085
        %vm3093 = vmor %vm3091, %vm3092
        %v3094 = vsel %vm3093, %v3085, %v3090
        %v3095 = vrsqrt.pop %v2897
        %v3096 = vmul.f32 %v3095, %v2897
        %v3097 = vmul.f32 %v3096, %v3095
        %v3098 = vmul.f32 0.5, %v3097
        %v3099 = vsub.f32 1.5, %v3098
        %v3100 = vmul.f32 %v3095, %v3099
        %vm3101 = vweird.f32 %v2897
        %vm3102 = vweird.f32 %v3095
        %vm3103 = vmor %vm3101, %vm3102
        %v3104 = vsel %vm3103, %v3095, %v3100
        %v3105 = vrsqrt.pop %v2898
        %v3106 = vmul.f32 %v3105, %v2898
        %v3107 = vmul.f32 %v3106, %v3105
        %v3108 = vmul.f32 0.5, %v3107
        %v3109 = vsub.f32 1.5, %v3108
        %v3110 = vmul.f32 %v3105, %v3109
        %vm3111 = vweird.f32 %v2898
        %vm3112 = vweird.f32 %v3105
        %vm3113 = vmor %vm3111, %vm3112
        %v3114 = vsel %vm3113, %v3105, %v3110
        %v3115 = vrsqrt.pop %v2899
        %v3116 = vmul.f32 %v3115, %v2899
        %v3117 = vmul.f32 %v3116, %v3115
        %v3118 = vmul.f32 0.5, %v3117
        %v3119 = vsub.f32 1.5, %v3118
        %v3120 = vmul.f32 %v3115, %v3119
        %vm3121 = vweird.f32 %v2899
        %vm3122 = vweird.f32 %v3115
        %vm3123 = vmor %vm3121, %vm3122
        %v3124 = vsel %vm3123, %v3115, %v3120
        %v3125 = vrsqrt.pop %v2900
        %v3126 = vmul.f32 %v3125, %v2900
        %v3127 = vmul.f32 %v3126, %v3125
        %v3128 = vmul.f32 0.5, %v3127
        %v3129 = vsub.f32 1.5, %v3128
        %v3130 = vmul.f32 %v3125, %v3129
        %vm3131 = vweird.f32 %v2900
        %vm3132 = vweird.f32 %v3125
        %vm3133 = vmor %vm3131, %vm3132
        %v3134 = vsel %vm3133, %v3125, %v3130
        %v3135 = vrsqrt.pop %v2901
        %v3136 = vmul.f32 %v3135, %v2901
        %v3137 = vmul.f32 %v3136, %v3135
        %v3138 = vmul.f32 0.5, %v3137
        %v3139 = vsub.f32 1.5, %v3138
        %v3140 = vmul.f32 %v3135, %v3139
        %vm3141 = vweird.f32 %v2901
        %vm3142 = vweird.f32 %v3135
        %vm3143 = vmor %vm3141, %vm3142
        %v3144 = vsel %vm3143, %v3135, %v3140
        %v3145 = vrsqrt.pop %v2902
        %v3146 = vmul.f32 %v3145, %v2902
        %v3147 = vmul.f32 %v3146, %v3145
        %v3148 = vmul.f32 0.5, %v3147
        %v3149 = vsub.f32 1.5, %v3148
        %v3150 = vmul.f32 %v3145, %v3149
        %vm3151 = vweird.f32 %v2902
        %vm3152 = vweird.f32 %v3145
        %vm3153 = vmor %vm3151, %vm3152
        %v3154 = vsel %vm3153, %v3145, %v3150
        %v3155 = vrsqrt.pop %v2903
        %v3156 = vmul.f32 %v3155, %v2903
        %v3157 = vmul.f32 %v3156, %v3155
        %v3158 = vmul.f32 0.5, %v3157
        %v3159 = vsub.f32 1.5, %v3158
        %v3160 = vmul.f32 %v3155, %v3159
        %vm3161 = vweird.f32 %v2903
        %vm3162 = vweird.f32 %v3155
        %vm3163 = vmor %vm3161, %vm3162
        %v3164 = vsel %vm3163, %v3155, %v3160
        %v3165 = vrsqrt.pop %v2904
        %v3166 = vmul.f32 %v3165, %v2904
        %v3167 = vmul.f32 %v3166, %v3165
        %v3168 = vmul.f32 0.5, %v3167
        %v3169 = vsub.f32 1.5, %v3168
        %v3170 = vmul.f32 %v3165, %v3169
        %vm3171 = vweird.f32 %v2904
        %vm3172 = vweird.f32 %v3165
        %vm3173 = vmor %vm3171, %vm3172
        %v3174 = vsel %vm3173, %v3165, %v3170
        %v3175 = vrsqrt.pop %v2905
        %v3176 = vmul.f32 %v3175, %v2905
        %v3177 = vmul.f32 %v3176, %v3175
        %v3178 = vmul.f32 0.5, %v3177
        %v3179 = vsub.f32 1.5, %v3178
        %v3180 = vmul.f32 %v3175, %v3179
        %vm3181 = vweird.f32 %v2905
        %vm3182 = vweird.f32 %v3175
        %vm3183 = vmor %vm3181, %vm3182
        %v3184 = vsel %vm3183, %v3175, %v3180
        %v3185 = vrsqrt.pop %v2906
        %v3186 = vmul.f32 %v3185, %v2906
        %v3187 = vmul.f32 %v3186, %v3185
        %v3188 = vmul.f32 0.5, %v3187
        %v3189 = vsub.f32 1.5, %v3188
        %v3190 = vmul.f32 %v3185, %v3189
        %vm3191 = vweird.f32 %v2906
        %vm3192 = vweird.f32 %v3185
        %vm3193 = vmor %vm3191, %vm3192
        %v3194 = vsel %vm3193, %v3185, %v3190
        %v3195 = vrsqrt.pop %v2907
        %v3196 = vmul.f32 %v3195, %v2907
        %v3197 = vmul.f32 %v3196, %v3195
        %v3198 = vmul.f32 0.5, %v3197
        %v3199 = vsub.f32 1.5, %v3198
        %v3200 = vmul.f32 %v3195, %v3199
        %vm3201 = vweird.f32 %v2907
        %vm3202 = vweird.f32 %v3195
        %vm3203 = vmor %vm3201, %vm3202
        %v3204 = vsel %vm3203, %v3195, %v3200
        %v3205 = vrsqrt.pop %v2908
        %v3206 = vmul.f32 %v3205, %v2908
        %v3207 = vmul.f32 %v3206, %v3205
        %v3208 = vmul.f32 0.5, %v3207
        %v3209 = vsub.f32 1.5, %v3208
        %v3210 = vmul.f32 %v3205, %v3209
        %vm3211 = vweird.f32 %v2908
        %vm3212 = vweird.f32 %v3205
        %vm3213 = vmor %vm3211, %vm3212
        %v3214 = vsel %vm3213, %v3205, %v3210
        %v3215 = vrsqrt.pop %v2909
        %v3216 = vmul.f32 %v3215, %v2909
        %v3217 = vmul.f32 %v3216, %v3215
        %v3218 = vmul.f32 0.5, %v3217
        %v3219 = vsub.f32 1.5, %v3218
        %v3220 = vmul.f32 %v3215, %v3219
        %vm3221 = vweird.f32 %v2909
        %vm3222 = vweird.f32 %v3215
        %vm3223 = vmor %vm3221, %vm3222
        %v3224 = vsel %vm3223, %v3215, %v3220
        %v3225 = vrsqrt.pop %v2910
        %v3226 = vmul.f32 %v3225, %v2910
        %v3227 = vmul.f32 %v3226, %v3225
        %v3228 = vmul.f32 0.5, %v3227
        %v3229 = vsub.f32 1.5, %v3228
        %v3230 = vmul.f32 %v3225, %v3229
        %vm3231 = vweird.f32 %v2910
        %vm3232 = vweird.f32 %v3225
        %vm3233 = vmor %vm3231, %vm3232
        %v3234 = vsel %vm3233, %v3225, %v3230
        %v3235 = vrsqrt.pop %v2911
        %v3236 = vmul.f32 %v3235, %v2911
        %v3237 = vmul.f32 %v3236, %v3235
        %v3238 = vmul.f32 0.5, %v3237
        %v3239 = vsub.f32 1.5, %v3238
        %v3240 = vmul.f32 %v3235, %v3239
        %vm3241 = vweird.f32 %v2911
        %vm3242 = vweird.f32 %v3235
        %vm3243 = vmor %vm3241, %vm3242
        %v3244 = vsel %vm3243, %v3235, %v3240
        %v3245 = vrsqrt.pop %v2912
        %v3246 = vmul.f32 %v3245, %v2912
        %v3247 = vmul.f32 %v3246, %v3245
        %v3248 = vmul.f32 0.5, %v3247
        %v3249 = vsub.f32 1.5, %v3248
        %v3250 = vmul.f32 %v3245, %v3249
        %vm3251 = vweird.f32 %v2912
        %vm3252 = vweird.f32 %v3245
        %vm3253 = vmor %vm3251, %vm3252
        %v3254 = vsel %vm3253, %v3245, %v3250
        %v3255 = vrsqrt.pop %v2913
        %v3256 = vmul.f32 %v3255, %v2913
        %v3257 = vmul.f32 %v3256, %v3255
        %v3258 = vmul.f32 0.5, %v3257
        %v3259 = vsub.f32 1.5, %v3258
        %v3260 = vmul.f32 %v3255, %v3259
        %vm3261 = vweird.f32 %v2913
        %vm3262 = vweird.f32 %v3255
        %vm3263 = vmor %vm3261, %vm3262
        %v3264 = vsel %vm3263, %v3255, %v3260
        %v3265 = vrsqrt.pop %v2914
        %v3266 = vmul.f32 %v3265, %v2914
        %v3267 = vmul.f32 %v3266, %v3265
        %v3268 = vmul.f32 0.5, %v3267
        %v3269 = vsub.f32 1.5, %v3268
        %v3270 = vmul.f32 %v3265, %v3269
        %vm3271 = vweird.f32 %v2914
        %vm3272 = vweird.f32 %v3265
        %vm3273 = vmor %vm3271, %vm3272
        %v3274 = vsel %vm3273, %v3265, %v3270
        %v3275 = vrsqrt.pop %v2915
        %v3276 = vmul.f32 %v3275, %v2915
        %v3277 = vmul.f32 %v3276, %v3275
        %v3278 = vmul.f32 0.5, %v3277
        %v3279 = vsub.f32 1.5, %v3278
        %v3280 = vmul.f32 %v3275, %v3279
        %vm3281 = vweird.f32 %v2915
        %vm3282 = vweird.f32 %v3275
        %vm3283 = vmor %vm3281, %vm3282
        %v3284 = vsel %vm3283, %v3275, %v3280
        %v3285 = vrsqrt.pop %v2916
        %v3286 = vmul.f32 %v3285, %v2916
        %v3287 = vmul.f32 %v3286, %v3285
        %v3288 = vmul.f32 0.5, %v3287
        %v3289 = vsub.f32 1.5, %v3288
        %v3290 = vmul.f32 %v3285, %v3289
        %vm3291 = vweird.f32 %v2916
        %vm3292 = vweird.f32 %v3285
        %vm3293 = vmor %vm3291, %vm3292
        %v3294 = vsel %vm3293, %v3285, %v3290
        %v3295 = vrsqrt.pop %v2917
        %v3296 = vmul.f32 %v3295, %v2917
        %v3297 = vmul.f32 %v3296, %v3295
        %v3298 = vmul.f32 0.5, %v3297
        %v3299 = vsub.f32 1.5, %v3298
        %v3300 = vmul.f32 %v3295, %v3299
        %vm3301 = vweird.f32 %v2917
        %vm3302 = vweird.f32 %v3295
        %vm3303 = vmor %vm3301, %vm3302
        %v3304 = vsel %vm3303, %v3295, %v3300
        %v3305 = vrsqrt.pop %v2918
        %v3306 = vmul.f32 %v3305, %v2918
        %v3307 = vmul.f32 %v3306, %v3305
        %v3308 = vmul.f32 0.5, %v3307
        %v3309 = vsub.f32 1.5, %v3308
        %v3310 = vmul.f32 %v3305, %v3309
        %vm3311 = vweird.f32 %v2918
        %vm3312 = vweird.f32 %v3305
        %vm3313 = vmor %vm3311, %vm3312
        %v3314 = vsel %vm3313, %v3305, %v3310
        %v3315 = vrsqrt.pop %v2919
        %v3316 = vmul.f32 %v3315, %v2919
        %v3317 = vmul.f32 %v3316, %v3315
        %v3318 = vmul.f32 0.5, %v3317
        %v3319 = vsub.f32 1.5, %v3318
        %v3320 = vmul.f32 %v3315, %v3319
        %vm3321 = vweird.f32 %v2919
        %vm3322 = vweird.f32 %v3315
        %vm3323 = vmor %vm3321, %vm3322
        %v3324 = vsel %vm3323, %v3315, %v3320
        %v3325 = vrsqrt.pop %v2920
        %v3326 = vmul.f32 %v3325, %v2920
        %v3327 = vmul.f32 %v3326, %v3325
        %v3328 = vmul.f32 0.5, %v3327
        %v3329 = vsub.f32 1.5, %v3328
        %v3330 = vmul.f32 %v3325, %v3329
        %vm3331 = vweird.f32 %v2920
        %vm3332 = vweird.f32 %v3325
        %vm3333 = vmor %vm3331, %vm3332
        %v3334 = vsel %vm3333, %v3325, %v3330
        %v3335 = vrsqrt.pop %v2921
        %v3336 = vmul.f32 %v3335, %v2921
        %v3337 = vmul.f32 %v3336, %v3335
        %v3338 = vmul.f32 0.5, %v3337
        %v3339 = vsub.f32 1.5, %v3338
        %v3340 = vmul.f32 %v3335, %v3339
        %vm3341 = vweird.f32 %v2921
        %vm3342 = vweird.f32 %v3335
        %vm3343 = vmor %vm3341, %vm3342
        %v3344 = vsel %vm3343, %v3335, %v3340
        %v3345 = vrsqrt.pop %v2922
        %v3346 = vmul.f32 %v3345, %v2922
        %v3347 = vmul.f32 %v3346, %v3345
        %v3348 = vmul.f32 0.5, %v3347
        %v3349 = vsub.f32 1.5, %v3348
        %v3350 = vmul.f32 %v3345, %v3349
        %vm3351 = vweird.f32 %v2922
        %vm3352 = vweird.f32 %v3345
        %vm3353 = vmor %vm3351, %vm3352
        %v3354 = vsel %vm3353, %v3345, %v3350
        %v3355 = vrsqrt.pop %v2923
        %v3356 = vmul.f32 %v3355, %v2923
        %v3357 = vmul.f32 %v3356, %v3355
        %v3358 = vmul.f32 0.5, %v3357
        %v3359 = vsub.f32 1.5, %v3358
        %v3360 = vmul.f32 %v3355, %v3359
        %vm3361 = vweird.f32 %v2923
        %vm3362 = vweird.f32 %v3355
        %vm3363 = vmor %vm3361, %vm3362
        %v3364 = vsel %vm3363, %v3355, %v3360
        %v3365 = vrsqrt.pop %v2924
        %v3366 = vmul.f32 %v3365, %v2924
        %v3367 = vmul.f32 %v3366, %v3365
        %v3368 = vmul.f32 0.5, %v3367
        %v3369 = vsub.f32 1.5, %v3368
        %v3370 = vmul.f32 %v3365, %v3369
        %vm3371 = vweird.f32 %v2924
        %vm3372 = vweird.f32 %v3365
        %vm3373 = vmor %vm3371, %vm3372
        %v3374 = vsel %vm3373, %v3365, %v3370
        %v3375 = vrsqrt.pop %v2925
        %v3376 = vmul.f32 %v3375, %v2925
        %v3377 = vmul.f32 %v3376, %v3375
        %v3378 = vmul.f32 0.5, %v3377
        %v3379 = vsub.f32 1.5, %v3378
        %v3380 = vmul.f32 %v3375, %v3379
        %vm3381 = vweird.f32 %v2925
        %vm3382 = vweird.f32 %v3375
        %vm3383 = vmor %vm3381, %vm3382
        %v3384 = vsel %vm3383, %v3375, %v3380
        %v3385 = vrsqrt.pop %v2926
        %v3386 = vmul.f32 %v3385, %v2926
        %v3387 = vmul.f32 %v3386, %v3385
        %v3388 = vmul.f32 0.5, %v3387
        %v3389 = vsub.f32 1.5, %v3388
        %v3390 = vmul.f32 %v3385, %v3389
        %vm3391 = vweird.f32 %v2926
        %vm3392 = vweird.f32 %v3385
        %vm3393 = vmor %vm3391, %vm3392
        %v3394 = vsel %vm3393, %v3385, %v3390
        %v3395 = vrsqrt.pop %v2927
        %v3396 = vmul.f32 %v3395, %v2927
        %v3397 = vmul.f32 %v3396, %v3395
        %v3398 = vmul.f32 0.5, %v3397
        %v3399 = vsub.f32 1.5, %v3398
        %v3400 = vmul.f32 %v3395, %v3399
        %vm3401 = vweird.f32 %v2927
        %vm3402 = vweird.f32 %v3395
        %vm3403 = vmor %vm3401, %vm3402
        %v3404 = vsel %vm3403, %v3395, %v3400
        %v3405 = vrsqrt.pop %v2928
        %v3406 = vmul.f32 %v3405, %v2928
        %v3407 = vmul.f32 %v3406, %v3405
        %v3408 = vmul.f32 0.5, %v3407
        %v3409 = vsub.f32 1.5, %v3408
        %v3410 = vmul.f32 %v3405, %v3409
        %vm3411 = vweird.f32 %v2928
        %vm3412 = vweird.f32 %v3405
        %vm3413 = vmor %vm3411, %vm3412
        %v3414 = vsel %vm3413, %v3405, %v3410
        %v3415 = vrsqrt.pop %v2929
        %v3416 = vmul.f32 %v3415, %v2929
        %v3417 = vmul.f32 %v3416, %v3415
        %v3418 = vmul.f32 0.5, %v3417
        %v3419 = vsub.f32 1.5, %v3418
        %v3420 = vmul.f32 %v3415, %v3419
        %vm3421 = vweird.f32 %v2929
        %vm3422 = vweird.f32 %v3415
        %vm3423 = vmor %vm3421, %vm3422
        %v3424 = vsel %vm3423, %v3415, %v3420
        %v3425 = vrsqrt.pop %v2930
        %v3426 = vmul.f32 %v3425, %v2930
        %v3427 = vmul.f32 %v3426, %v3425
        %v3428 = vmul.f32 0.5, %v3427
        %v3429 = vsub.f32 1.5, %v3428
        %v3430 = vmul.f32 %v3425, %v3429
        %vm3431 = vweird.f32 %v2930
        %vm3432 = vweird.f32 %v3425
        %vm3433 = vmor %vm3431, %vm3432
        %v3434 = vsel %vm3433, %v3425, %v3430
        %v3435 = vrsqrt.pop %v2931
        %v3436 = vmul.f32 %v3435, %v2931
        %v3437 = vmul.f32 %v3436, %v3435
        %v3438 = vmul.f32 0.5, %v3437
        %v3439 = vsub.f32 1.5, %v3438
        %v3440 = vmul.f32 %v3435, %v3439
        %vm3441 = vweird.f32 %v2931
        %vm3442 = vweird.f32 %v3435
        %vm3443 = vmor %vm3441, %vm3442
        %v3444 = vsel %vm3443, %v3435, %v3440
        %v3445 = vrsqrt.pop %v2932
        %v3446 = vmul.f32 %v3445, %v2932
        %v3447 = vmul.f32 %v3446, %v3445
        %v3448 = vmul.f32 0.5, %v3447
        %v3449 = vsub.f32 1.5, %v3448
        %v3450 = vmul.f32 %v3445, %v3449
        %vm3451 = vweird.f32 %v2932
        %vm3452 = vweird.f32 %v3445
        %vm3453 = vmor %vm3451, %vm3452
        %v3454 = vsel %vm3453, %v3445, %v3450
        %v3455 = vrsqrt.pop %v2933
        %v3456 = vmul.f32 %v3455, %v2933
        %v3457 = vmul.f32 %v3456, %v3455
        %v3458 = vmul.f32 0.5, %v3457
        %v3459 = vsub.f32 1.5, %v3458
        %v3460 = vmul.f32 %v3455, %v3459
        %vm3461 = vweird.f32 %v2933
        %vm3462 = vweird.f32 %v3455
        %vm3463 = vmor %vm3461, %vm3462
        %v3464 = vsel %vm3463, %v3455, %v3460
        %v3465 = vrsqrt.pop %v2934
        %v3466 = vmul.f32 %v3465, %v2934
        %v3467 = vmul.f32 %v3466, %v3465
        %v3468 = vmul.f32 0.5, %v3467
        %v3469 = vsub.f32 1.5, %v3468
        %v3470 = vmul.f32 %v3465, %v3469
        %vm3471 = vweird.f32 %v2934
        %vm3472 = vweird.f32 %v3465
        %vm3473 = vmor %vm3471, %vm3472
        %v3474 = vsel %vm3473, %v3465, %v3470
        %v3475 = vrsqrt.pop %v2935
        %v3476 = vmul.f32 %v3475, %v2935
        %v3477 = vmul.f32 %v3476, %v3475
        %v3478 = vmul.f32 0.5, %v3477
        %v3479 = vsub.f32 1.5, %v3478
        %v3480 = vmul.f32 %v3475, %v3479
        %vm3481 = vweird.f32 %v2935
        %vm3482 = vweird.f32 %v3475
        %vm3483 = vmor %vm3481, %vm3482
        %v3484 = vsel %vm3483, %v3475, %v3480
        %v3485 = vrsqrt.pop %v2936
        %v3486 = vmul.f32 %v3485, %v2936
        %v3487 = vmul.f32 %v3486, %v3485
        %v3488 = vmul.f32 0.5, %v3487
        %v3489 = vsub.f32 1.5, %v3488
        %v3490 = vmul.f32 %v3485, %v3489
        %vm3491 = vweird.f32 %v2936
        %vm3492 = vweird.f32 %v3485
        %vm3493 = vmor %vm3491, %vm3492
        %v3494 = vsel %vm3493, %v3485, %v3490
        %v3495 = vrsqrt.pop %v2937
        %v3496 = vmul.f32 %v3495, %v2937
        %v3497 = vmul.f32 %v3496, %v3495
        %v3498 = vmul.f32 0.5, %v3497
        %v3499 = vsub.f32 1.5, %v3498
        %v3500 = vmul.f32 %v3495, %v3499
        %vm3501 = vweird.f32 %v2937
        %vm3502 = vweird.f32 %v3495
        %vm3503 = vmor %vm3501, %vm3502
        %v3504 = vsel %vm3503, %v3495, %v3500
        %v3505 = vrsqrt.pop %v2938
        %v3506 = vmul.f32 %v3505, %v2938
        %v3507 = vmul.f32 %v3506, %v3505
        %v3508 = vmul.f32 0.5, %v3507
        %v3509 = vsub.f32 1.5, %v3508
        %v3510 = vmul.f32 %v3505, %v3509
        %vm3511 = vweird.f32 %v2938
        %vm3512 = vweird.f32 %v3505
        %vm3513 = vmor %vm3511, %vm3512
        %v3514 = vsel %vm3513, %v3505, %v3510
        %v3515 = vrsqrt.pop %v2939
        %v3516 = vmul.f32 %v3515, %v2939
        %v3517 = vmul.f32 %v3516, %v3515
        %v3518 = vmul.f32 0.5, %v3517
        %v3519 = vsub.f32 1.5, %v3518
        %v3520 = vmul.f32 %v3515, %v3519
        %vm3521 = vweird.f32 %v2939
        %vm3522 = vweird.f32 %v3515
        %vm3523 = vmor %vm3521, %vm3522
        %v3524 = vsel %vm3523, %v3515, %v3520
        %v3525 = vrsqrt.pop %v2940
        %v3526 = vmul.f32 %v3525, %v2940
        %v3527 = vmul.f32 %v3526, %v3525
        %v3528 = vmul.f32 0.5, %v3527
        %v3529 = vsub.f32 1.5, %v3528
        %v3530 = vmul.f32 %v3525, %v3529
        %vm3531 = vweird.f32 %v2940
        %vm3532 = vweird.f32 %v3525
        %vm3533 = vmor %vm3531, %vm3532
        %v3534 = vsel %vm3533, %v3525, %v3530
        %v3535 = vrsqrt.pop %v2941
        %v3536 = vmul.f32 %v3535, %v2941
        %v3537 = vmul.f32 %v3536, %v3535
        %v3538 = vmul.f32 0.5, %v3537
        %v3539 = vsub.f32 1.5, %v3538
        %v3540 = vmul.f32 %v3535, %v3539
        %vm3541 = vweird.f32 %v2941
        %vm3542 = vweird.f32 %v3535
        %vm3543 = vmor %vm3541, %vm3542
        %v3544 = vsel %vm3543, %v3535, %v3540
        %v3545 = vrsqrt.pop %v2942
        %v3546 = vmul.f32 %v3545, %v2942
        %v3547 = vmul.f32 %v3546, %v3545
        %v3548 = vmul.f32 0.5, %v3547
        %v3549 = vsub.f32 1.5, %v3548
        %v3550 = vmul.f32 %v3545, %v3549
        %vm3551 = vweird.f32 %v2942
        %vm3552 = vweird.f32 %v3545
        %vm3553 = vmor %vm3551, %vm3552
        %v3554 = vsel %vm3553, %v3545, %v3550
        %v3555 = vrsqrt.pop %v2943
        %v3556 = vmul.f32 %v3555, %v2943
        %v3557 = vmul.f32 %v3556, %v3555
        %v3558 = vmul.f32 0.5, %v3557
        %v3559 = vsub.f32 1.5, %v3558
        %v3560 = vmul.f32 %v3555, %v3559
        %vm3561 = vweird.f32 %v2943
        %vm3562 = vweird.f32 %v3555
        %vm3563 = vmor %vm3561, %vm3562
        %v3564 = vsel %vm3563, %v3555, %v3560
        %v3565 = vrsqrt.pop %v2944
        %v3566 = vmul.f32 %v3565, %v2944
        %v3567 = vmul.f32 %v3566, %v3565
        %v3568 = vmul.f32 0.5, %v3567
        %v3569 = vsub.f32 1.5, %v3568
        %v3570 = vmul.f32 %v3565, %v3569
        %vm3571 = vweird.f32 %v2944
        %vm3572 = vweird.f32 %v3565
        %vm3573 = vmor %vm3571, %vm3572
        %v3574 = vsel %vm3573, %v3565, %v3570
        %v3575 = vrsqrt.pop %v2945
        %v3576 = vmul.f32 %v3575, %v2945
        %v3577 = vmul.f32 %v3576, %v3575
        %v3578 = vmul.f32 0.5, %v3577
        %v3579 = vsub.f32 1.5, %v3578
        %v3580 = vmul.f32 %v3575, %v3579
        %vm3581 = vweird.f32 %v2945
        %vm3582 = vweird.f32 %v3575
        %vm3583 = vmor %vm3581, %vm3582
        %v3584 = vsel %vm3583, %v3575, %v3580
        %v3585 = vrsqrt.pop %v2946
        %v3586 = vmul.f32 %v3585, %v2946
        %v3587 = vmul.f32 %v3586, %v3585
        %v3588 = vmul.f32 0.5, %v3587
        %v3589 = vsub.f32 1.5, %v3588
        %v3590 = vmul.f32 %v3585, %v3589
        %vm3591 = vweird.f32 %v2946
        %vm3592 = vweird.f32 %v3585
        %vm3593 = vmor %vm3591, %vm3592
        %v3594 = vsel %vm3593, %v3585, %v3590
        %v3595 = vrsqrt.pop %v2947
        %v3596 = vmul.f32 %v3595, %v2947
        %v3597 = vmul.f32 %v3596, %v3595
        %v3598 = vmul.f32 0.5, %v3597
        %v3599 = vsub.f32 1.5, %v3598
        %v3600 = vmul.f32 %v3595, %v3599
        %vm3601 = vweird.f32 %v2947
        %vm3602 = vweird.f32 %v3595
        %vm3603 = vmor %vm3601, %vm3602
        %v3604 = vsel %vm3603, %v3595, %v3600
        %v3605 = vrsqrt.pop %v2948
        %v3606 = vmul.f32 %v3605, %v2948
        %v3607 = vmul.f32 %v3606, %v3605
        %v3608 = vmul.f32 0.5, %v3607
        %v3609 = vsub.f32 1.5, %v3608
        %v3610 = vmul.f32 %v3605, %v3609
        %vm3611 = vweird.f32 %v2948
        %vm3612 = vweird.f32 %v3605
        %vm3613 = vmor %vm3611, %vm3612
        %v3614 = vsel %vm3613, %v3605, %v3610
        %v3615 = vrsqrt.pop %v2949
        %v3616 = vmul.f32 %v3615, %v2949
        %v3617 = vmul.f32 %v3616, %v3615
        %v3618 = vmul.f32 0.5, %v3617
        %v3619 = vsub.f32 1.5, %v3618
        %v3620 = vmul.f32 %v3615, %v3619
        %vm3621 = vweird.f32 %v2949
        %vm3622 = vweird.f32 %v3615
        %vm3623 = vmor %vm3621, %vm3622
        %v3624 = vsel %vm3623, %v3615, %v3620
        %v3625 = vrsqrt.pop %v2950
        %v3626 = vmul.f32 %v3625, %v2950
        %v3627 = vmul.f32 %v3626, %v3625
        %v3628 = vmul.f32 0.5, %v3627
        %v3629 = vsub.f32 1.5, %v3628
        %v3630 = vmul.f32 %v3625, %v3629
        %vm3631 = vweird.f32 %v2950
        %vm3632 = vweird.f32 %v3625
        %vm3633 = vmor %vm3631, %vm3632
        %v3634 = vsel %vm3633, %v3625, %v3630
        %v3635 = vrsqrt.pop %v2951
        %v3636 = vmul.f32 %v3635, %v2951
        %v3637 = vmul.f32 %v3636, %v3635
        %v3638 = vmul.f32 0.5, %v3637
        %v3639 = vsub.f32 1.5, %v3638
        %v3640 = vmul.f32 %v3635, %v3639
        %vm3641 = vweird.f32 %v2951
        %vm3642 = vweird.f32 %v3635
        %vm3643 = vmor %vm3641, %vm3642
        %v3644 = vsel %vm3643, %v3635, %v3640
        %v3645 = vrsqrt.pop %v2952
        %v3646 = vmul.f32 %v3645, %v2952
        %v3647 = vmul.f32 %v3646, %v3645
        %v3648 = vmul.f32 0.5, %v3647
        %v3649 = vsub.f32 1.5, %v3648
        %v3650 = vmul.f32 %v3645, %v3649
        %vm3651 = vweird.f32 %v2952
        %vm3652 = vweird.f32 %v3645
        %vm3653 = vmor %vm3651, %vm3652
        %v3654 = vsel %vm3653, %v3645, %v3650
        %v3655 = vrsqrt.pop %v2953
        %v3656 = vmul.f32 %v3655, %v2953
        %v3657 = vmul.f32 %v3656, %v3655
        %v3658 = vmul.f32 0.5, %v3657
        %v3659 = vsub.f32 1.5, %v3658
        %v3660 = vmul.f32 %v3655, %v3659
        %vm3661 = vweird.f32 %v2953
        %vm3662 = vweird.f32 %v3655
        %vm3663 = vmor %vm3661, %vm3662
        %v3664 = vsel %vm3663, %v3655, %v3660
        %v3665 = vrsqrt.pop %v2954
        %v3666 = vmul.f32 %v3665, %v2954
        %v3667 = vmul.f32 %v3666, %v3665
        %v3668 = vmul.f32 0.5, %v3667
        %v3669 = vsub.f32 1.5, %v3668
        %v3670 = vmul.f32 %v3665, %v3669
        %vm3671 = vweird.f32 %v2954
        %vm3672 = vweird.f32 %v3665
        %vm3673 = vmor %vm3671, %vm3672
        %v3674 = vsel %vm3673, %v3665, %v3670
        %v3675 = vrsqrt.pop %v2955
        %v3676 = vmul.f32 %v3675, %v2955
        %v3677 = vmul.f32 %v3676, %v3675
        %v3678 = vmul.f32 0.5, %v3677
        %v3679 = vsub.f32 1.5, %v3678
        %v3680 = vmul.f32 %v3675, %v3679
        %vm3681 = vweird.f32 %v2955
        %vm3682 = vweird.f32 %v3675
        %vm3683 = vmor %vm3681, %vm3682
        %v3684 = vsel %vm3683, %v3675, %v3680
        %v3685 = vrsqrt.pop %v2956
        %v3686 = vmul.f32 %v3685, %v2956
        %v3687 = vmul.f32 %v3686, %v3685
        %v3688 = vmul.f32 0.5, %v3687
        %v3689 = vsub.f32 1.5, %v3688
        %v3690 = vmul.f32 %v3685, %v3689
        %vm3691 = vweird.f32 %v2956
        %vm3692 = vweird.f32 %v3685
        %vm3693 = vmor %vm3691, %vm3692
        %v3694 = vsel %vm3693, %v3685, %v3690
        %v3695 = vrsqrt.pop %v2957
        %v3696 = vmul.f32 %v3695, %v2957
        %v3697 = vmul.f32 %v3696, %v3695
        %v3698 = vmul.f32 0.5, %v3697
        %v3699 = vsub.f32 1.5, %v3698
        %v3700 = vmul.f32 %v3695, %v3699
        %vm3701 = vweird.f32 %v2957
        %vm3702 = vweird.f32 %v3695
        %vm3703 = vmor %vm3701, %vm3702
        %v3704 = vsel %vm3703, %v3695, %v3700
        %v3705 = vrsqrt.pop %v2958
        %v3706 = vmul.f32 %v3705, %v2958
        %v3707 = vmul.f32 %v3706, %v3705
        %v3708 = vmul.f32 0.5, %v3707
        %v3709 = vsub.f32 1.5, %v3708
        %v3710 = vmul.f32 %v3705, %v3709
        %vm3711 = vweird.f32 %v2958
        %vm3712 = vweird.f32 %v3705
        %vm3713 = vmor %vm3711, %vm3712
        %v3714 = vsel %vm3713, %v3705, %v3710
        %v3715 = vrsqrt.pop %v2959
        %v3716 = vmul.f32 %v3715, %v2959
        %v3717 = vmul.f32 %v3716, %v3715
        %v3718 = vmul.f32 0.5, %v3717
        %v3719 = vsub.f32 1.5, %v3718
        %v3720 = vmul.f32 %v3715, %v3719
        %vm3721 = vweird.f32 %v2959
        %vm3722 = vweird.f32 %v3715
        %vm3723 = vmor %vm3721, %vm3722
        %v3724 = vsel %vm3723, %v3715, %v3720
        %v3725 = vrsqrt.pop %v2960
        %v3726 = vmul.f32 %v3725, %v2960
        %v3727 = vmul.f32 %v3726, %v3725
        %v3728 = vmul.f32 0.5, %v3727
        %v3729 = vsub.f32 1.5, %v3728
        %v3730 = vmul.f32 %v3725, %v3729
        %vm3731 = vweird.f32 %v2960
        %vm3732 = vweird.f32 %v3725
        %vm3733 = vmor %vm3731, %vm3732
        %v3734 = vsel %vm3733, %v3725, %v3730
        %v3735 = vrsqrt.pop %v2961
        %v3736 = vmul.f32 %v3735, %v2961
        %v3737 = vmul.f32 %v3736, %v3735
        %v3738 = vmul.f32 0.5, %v3737
        %v3739 = vsub.f32 1.5, %v3738
        %v3740 = vmul.f32 %v3735, %v3739
        %vm3741 = vweird.f32 %v2961
        %vm3742 = vweird.f32 %v3735
        %vm3743 = vmor %vm3741, %vm3742
        %v3744 = vsel %vm3743, %v3735, %v3740
        %v3745 = vrsqrt.pop %v2962
        %v3746 = vmul.f32 %v3745, %v2962
        %v3747 = vmul.f32 %v3746, %v3745
        %v3748 = vmul.f32 0.5, %v3747
        %v3749 = vsub.f32 1.5, %v3748
        %v3750 = vmul.f32 %v3745, %v3749
        %vm3751 = vweird.f32 %v2962
        %vm3752 = vweird.f32 %v3745
        %vm3753 = vmor %vm3751, %vm3752
        %v3754 = vsel %vm3753, %v3745, %v3750
        %v3755 = vrsqrt.pop %v2963
        %v3756 = vmul.f32 %v3755, %v2963
        %v3757 = vmul.f32 %v3756, %v3755
        %v3758 = vmul.f32 0.5, %v3757
        %v3759 = vsub.f32 1.5, %v3758
        %v3760 = vmul.f32 %v3755, %v3759
        %vm3761 = vweird.f32 %v2963
        %vm3762 = vweird.f32 %v3755
        %vm3763 = vmor %vm3761, %vm3762
        %v3764 = vsel %vm3763, %v3755, %v3760
        %v3765 = vrsqrt.pop %v2964
        %v3766 = vmul.f32 %v3765, %v2964
        %v3767 = vmul.f32 %v3766, %v3765
        %v3768 = vmul.f32 0.5, %v3767
        %v3769 = vsub.f32 1.5, %v3768
        %v3770 = vmul.f32 %v3765, %v3769
        %vm3771 = vweird.f32 %v2964
        %vm3772 = vweird.f32 %v3765
        %vm3773 = vmor %vm3771, %vm3772
        %v3774 = vsel %vm3773, %v3765, %v3770
        %v3775 = vrsqrt.pop %v2965
        %v3776 = vmul.f32 %v3775, %v2965
        %v3777 = vmul.f32 %v3776, %v3775
        %v3778 = vmul.f32 0.5, %v3777
        %v3779 = vsub.f32 1.5, %v3778
        %v3780 = vmul.f32 %v3775, %v3779
        %vm3781 = vweird.f32 %v2965
        %vm3782 = vweird.f32 %v3775
        %vm3783 = vmor %vm3781, %vm3782
        %v3784 = vsel %vm3783, %v3775, %v3780
        %v3785 = vrsqrt.pop %v2966
        %v3786 = vmul.f32 %v3785, %v2966
        %v3787 = vmul.f32 %v3786, %v3785
        %v3788 = vmul.f32 0.5, %v3787
        %v3789 = vsub.f32 1.5, %v3788
        %v3790 = vmul.f32 %v3785, %v3789
        %vm3791 = vweird.f32 %v2966
        %vm3792 = vweird.f32 %v3785
        %vm3793 = vmor %vm3791, %vm3792
        %v3794 = vsel %vm3793, %v3785, %v3790
        %v3795 = vrsqrt.pop %v2967
        %v3796 = vmul.f32 %v3795, %v2967
        %v3797 = vmul.f32 %v3796, %v3795
        %v3798 = vmul.f32 0.5, %v3797
        %v3799 = vsub.f32 1.5, %v3798
        %v3800 = vmul.f32 %v3795, %v3799
        %vm3801 = vweird.f32 %v2967
        %vm3802 = vweird.f32 %v3795
        %vm3803 = vmor %vm3801, %vm3802
        %v3804 = vsel %vm3803, %v3795, %v3800
        %v3805 = vrsqrt.pop %v2968
        %v3806 = vmul.f32 %v3805, %v2968
        %v3807 = vmul.f32 %v3806, %v3805
        %v3808 = vmul.f32 0.5, %v3807
        %v3809 = vsub.f32 1.5, %v3808
        %v3810 = vmul.f32 %v3805, %v3809
        %vm3811 = vweird.f32 %v2968
        %vm3812 = vweird.f32 %v3805
        %vm3813 = vmor %vm3811, %vm3812
        %v3814 = vsel %vm3813, %v3805, %v3810
        %v3815 = vrsqrt.pop %v2969
        %v3816 = vmul.f32 %v3815, %v2969
        %v3817 = vmul.f32 %v3816, %v3815
        %v3818 = vmul.f32 0.5, %v3817
        %v3819 = vsub.f32 1.5, %v3818
        %v3820 = vmul.f32 %v3815, %v3819
        %vm3821 = vweird.f32 %v2969
        %vm3822 = vweird.f32 %v3815
        %vm3823 = vmor %vm3821, %vm3822
        %v3824 = vsel %vm3823, %v3815, %v3820
        %v3825 = vrsqrt.pop %v2970
        %v3826 = vmul.f32 %v3825, %v2970
        %v3827 = vmul.f32 %v3826, %v3825
        %v3828 = vmul.f32 0.5, %v3827
        %v3829 = vsub.f32 1.5, %v3828
        %v3830 = vmul.f32 %v3825, %v3829
        %vm3831 = vweird.f32 %v2970
        %vm3832 = vweird.f32 %v3825
        %vm3833 = vmor %vm3831, %vm3832
        %v3834 = vsel %vm3833, %v3825, %v3830
        %v3835 = vrsqrt.pop %v2971
        %v3836 = vmul.f32 %v3835, %v2971
        %v3837 = vmul.f32 %v3836, %v3835
        %v3838 = vmul.f32 0.5, %v3837
        %v3839 = vsub.f32 1.5, %v3838
        %v3840 = vmul.f32 %v3835, %v3839
        %vm3841 = vweird.f32 %v2971
        %vm3842 = vweird.f32 %v3835
        %vm3843 = vmor %vm3841, %vm3842
        %v3844 = vsel %vm3843, %v3835, %v3840
        %v3845 = vrsqrt.pop %v2972
        %v3846 = vmul.f32 %v3845, %v2972
        %v3847 = vmul.f32 %v3846, %v3845
        %v3848 = vmul.f32 0.5, %v3847
        %v3849 = vsub.f32 1.5, %v3848
        %v3850 = vmul.f32 %v3845, %v3849
        %vm3851 = vweird.f32 %v2972
        %vm3852 = vweird.f32 %v3845
        %vm3853 = vmor %vm3851, %vm3852
        %v3854 = vsel %vm3853, %v3845, %v3850
        %v3855 = vrsqrt.pop %v2973
        %v3856 = vmul.f32 %v3855, %v2973
        %v3857 = vmul.f32 %v3856, %v3855
        %v3858 = vmul.f32 0.5, %v3857
        %v3859 = vsub.f32 1.5, %v3858
        %v3860 = vmul.f32 %v3855, %v3859
        %vm3861 = vweird.f32 %v2973
        %vm3862 = vweird.f32 %v3855
        %vm3863 = vmor %vm3861, %vm3862
        %v3864 = vsel %vm3863, %v3855, %v3860
        %v3865 = vrsqrt.pop %v2974
        %v3866 = vmul.f32 %v3865, %v2974
        %v3867 = vmul.f32 %v3866, %v3865
        %v3868 = vmul.f32 0.5, %v3867
        %v3869 = vsub.f32 1.5, %v3868
        %v3870 = vmul.f32 %v3865, %v3869
        %vm3871 = vweird.f32 %v2974
        %vm3872 = vweird.f32 %v3865
        %vm3873 = vmor %vm3871, %vm3872
        %v3874 = vsel %vm3873, %v3865, %v3870
        %v3875 = vrsqrt.pop %v2975
        %v3876 = vmul.f32 %v3875, %v2975
        %v3877 = vmul.f32 %v3876, %v3875
        %v3878 = vmul.f32 0.5, %v3877
        %v3879 = vsub.f32 1.5, %v3878
        %v3880 = vmul.f32 %v3875, %v3879
        %vm3881 = vweird.f32 %v2975
        %vm3882 = vweird.f32 %v3875
        %vm3883 = vmor %vm3881, %vm3882
        %v3884 = vsel %vm3883, %v3875, %v3880
        %v3885 = vrsqrt.pop %v2976
        %v3886 = vmul.f32 %v3885, %v2976
        %v3887 = vmul.f32 %v3886, %v3885
        %v3888 = vmul.f32 0.5, %v3887
        %v3889 = vsub.f32 1.5, %v3888
        %v3890 = vmul.f32 %v3885, %v3889
        %vm3891 = vweird.f32 %v2976
        %vm3892 = vweird.f32 %v3885
        %vm3893 = vmor %vm3891, %vm3892
        %v3894 = vsel %vm3893, %v3885, %v3890
        %v3895 = vrsqrt.pop %v2977
        %v3896 = vmul.f32 %v3895, %v2977
        %v3897 = vmul.f32 %v3896, %v3895
        %v3898 = vmul.f32 0.5, %v3897
        %v3899 = vsub.f32 1.5, %v3898
        %v3900 = vmul.f32 %v3895, %v3899
        %vm3901 = vweird.f32 %v2977
        %vm3902 = vweird.f32 %v3895
        %vm3903 = vmor %vm3901, %vm3902
        %v3904 = vsel %vm3903, %v3895, %v3900
        %v3905 = vrsqrt.pop %v2978
        %v3906 = vmul.f32 %v3905, %v2978
        %v3907 = vmul.f32 %v3906, %v3905
        %v3908 = vmul.f32 0.5, %v3907
        %v3909 = vsub.f32 1.5, %v3908
        %v3910 = vmul.f32 %v3905, %v3909
        %vm3911 = vweird.f32 %v2978
        %vm3912 = vweird.f32 %v3905
        %vm3913 = vmor %vm3911, %vm3912
        %v3914 = vsel %vm3913, %v3905, %v3910
        %v3915 = vrsqrt.pop %v2979
        %v3916 = vmul.f32 %v3915, %v2979
        %v3917 = vmul.f32 %v3916, %v3915
        %v3918 = vmul.f32 0.5, %v3917
        %v3919 = vsub.f32 1.5, %v3918
        %v3920 = vmul.f32 %v3915, %v3919
        %vm3921 = vweird.f32 %v2979
        %vm3922 = vweird.f32 %v3915
        %vm3923 = vmor %vm3921, %vm3922
        %v3924 = vsel %vm3923, %v3915, %v3920
        %v3925 = vrsqrt.pop %v2980
        %v3926 = vmul.f32 %v3925, %v2980
        %v3927 = vmul.f32 %v3926, %v3925
        %v3928 = vmul.f32 0.5, %v3927
        %v3929 = vsub.f32 1.5, %v3928
        %v3930 = vmul.f32 %v3925, %v3929
        %vm3931 = vweird.f32 %v2980
        %vm3932 = vweird.f32 %v3925
        %vm3933 = vmor %vm3931, %vm3932
        %v3934 = vsel %vm3933, %v3925, %v3930
        %v3935 = vrsqrt.pop %v2981
        %v3936 = vmul.f32 %v3935, %v2981
        %v3937 = vmul.f32 %v3936, %v3935
        %v3938 = vmul.f32 0.5, %v3937
        %v3939 = vsub.f32 1.5, %v3938
        %v3940 = vmul.f32 %v3935, %v3939
        %vm3941 = vweird.f32 %v2981
        %vm3942 = vweird.f32 %v3935
        %vm3943 = vmor %vm3941, %vm3942
        %v3944 = vsel %vm3943, %v3935, %v3940
        %v3945 = vrsqrt.pop %v2982
        %v3946 = vmul.f32 %v3945, %v2982
        %v3947 = vmul.f32 %v3946, %v3945
        %v3948 = vmul.f32 0.5, %v3947
        %v3949 = vsub.f32 1.5, %v3948
        %v3950 = vmul.f32 %v3945, %v3949
        %vm3951 = vweird.f32 %v2982
        %vm3952 = vweird.f32 %v3945
        %vm3953 = vmor %vm3951, %vm3952
        %v3954 = vsel %vm3953, %v3945, %v3950
        %v3955 = vrsqrt.pop %v2983
        %v3956 = vmul.f32 %v3955, %v2983
        %v3957 = vmul.f32 %v3956, %v3955
        %v3958 = vmul.f32 0.5, %v3957
        %v3959 = vsub.f32 1.5, %v3958
        %v3960 = vmul.f32 %v3955, %v3959
        %vm3961 = vweird.f32 %v2983
        %vm3962 = vweird.f32 %v3955
        %vm3963 = vmor %vm3961, %vm3962
        %v3964 = vsel %vm3963, %v3955, %v3960
        %v3965 = vrsqrt.pop %v2984
        %v3966 = vmul.f32 %v3965, %v2984
        %v3967 = vmul.f32 %v3966, %v3965
        %v3968 = vmul.f32 0.5, %v3967
        %v3969 = vsub.f32 1.5, %v3968
        %v3970 = vmul.f32 %v3965, %v3969
        %vm3971 = vweird.f32 %v2984
        %vm3972 = vweird.f32 %v3965
        %vm3973 = vmor %vm3971, %vm3972
        %v3974 = vsel %vm3973, %v3965, %v3970
        %v3975 = vrsqrt.pop %v2985
        %v3976 = vmul.f32 %v3975, %v2985
        %v3977 = vmul.f32 %v3976, %v3975
        %v3978 = vmul.f32 0.5, %v3977
        %v3979 = vsub.f32 1.5, %v3978
        %v3980 = vmul.f32 %v3975, %v3979
        %vm3981 = vweird.f32 %v2985
        %vm3982 = vweird.f32 %v3975
        %vm3983 = vmor %vm3981, %vm3982
        %v3984 = vsel %vm3983, %v3975, %v3980
        %v3985 = vrsqrt.pop %v2986
        %v3986 = vmul.f32 %v3985, %v2986
        %v3987 = vmul.f32 %v3986, %v3985
        %v3988 = vmul.f32 0.5, %v3987
        %v3989 = vsub.f32 1.5, %v3988
        %v3990 = vmul.f32 %v3985, %v3989
        %vm3991 = vweird.f32 %v2986
        %vm3992 = vweird.f32 %v3985
        %vm3993 = vmor %vm3991, %vm3992
        %v3994 = vsel %vm3993, %v3985, %v3990
        %v3995 = vrsqrt.pop %v2987
        %v3996 = vmul.f32 %v3995, %v2987
        %v3997 = vmul.f32 %v3996, %v3995
        %v3998 = vmul.f32 0.5, %v3997
        %v3999 = vsub.f32 1.5, %v3998
        %v4000 = vmul.f32 %v3995, %v3999
        %vm4001 = vweird.f32 %v2987
        %vm4002 = vweird.f32 %v3995
        %vm4003 = vmor %vm4001, %vm4002
        %v4004 = vsel %vm4003, %v3995, %v4000
        %v4005 = vrsqrt.pop %v2988
        %v4006 = vmul.f32 %v4005, %v2988
        %v4007 = vmul.f32 %v4006, %v4005
        %v4008 = vmul.f32 0.5, %v4007
        %v4009 = vsub.f32 1.5, %v4008
        %v4010 = vmul.f32 %v4005, %v4009
        %vm4011 = vweird.f32 %v2988
        %vm4012 = vweird.f32 %v4005
        %vm4013 = vmor %vm4011, %vm4012
        %v4014 = vsel %vm4013, %v4005, %v4010
        %v4015 = vrsqrt.pop %v2989
        %v4016 = vmul.f32 %v4015, %v2989
        %v4017 = vmul.f32 %v4016, %v4015
        %v4018 = vmul.f32 0.5, %v4017
        %v4019 = vsub.f32 1.5, %v4018
        %v4020 = vmul.f32 %v4015, %v4019
        %vm4021 = vweird.f32 %v2989
        %vm4022 = vweird.f32 %v4015
        %vm4023 = vmor %vm4021, %vm4022
        %v4024 = vsel %vm4023, %v4015, %v4020
        %v4025 = vrsqrt.pop %v2990
        %v4026 = vmul.f32 %v4025, %v2990
        %v4027 = vmul.f32 %v4026, %v4025
        %v4028 = vmul.f32 0.5, %v4027
        %v4029 = vsub.f32 1.5, %v4028
        %v4030 = vmul.f32 %v4025, %v4029
        %vm4031 = vweird.f32 %v2990
        %vm4032 = vweird.f32 %v4025
        %vm4033 = vmor %vm4031, %vm4032
        %v4034 = vsel %vm4033, %v4025, %v4030
        %v4035 = vrsqrt.pop %v2991
        %v4036 = vmul.f32 %v4035, %v2991
        %v4037 = vmul.f32 %v4036, %v4035
        %v4038 = vmul.f32 0.5, %v4037
        %v4039 = vsub.f32 1.5, %v4038
        %v4040 = vmul.f32 %v4035, %v4039
        %vm4041 = vweird.f32 %v2991
        %vm4042 = vweird.f32 %v4035
        %vm4043 = vmor %vm4041, %vm4042
        %v4044 = vsel %vm4043, %v4035, %v4040
        %v4045 = vrsqrt.pop %v2992
        %v4046 = vmul.f32 %v4045, %v2992
        %v4047 = vmul.f32 %v4046, %v4045
        %v4048 = vmul.f32 0.5, %v4047
        %v4049 = vsub.f32 1.5, %v4048
        %v4050 = vmul.f32 %v4045, %v4049
        %vm4051 = vweird.f32 %v2992
        %vm4052 = vweird.f32 %v4045
        %vm4053 = vmor %vm4051, %vm4052
        %v4054 = vsel %vm4053, %v4045, %v4050
        %v4055 = vrsqrt.pop %v2993
        %v4056 = vmul.f32 %v4055, %v2993
        %v4057 = vmul.f32 %v4056, %v4055
        %v4058 = vmul.f32 0.5, %v4057
        %v4059 = vsub.f32 1.5, %v4058
        %v4060 = vmul.f32 %v4055, %v4059
        %vm4061 = vweird.f32 %v2993
        %vm4062 = vweird.f32 %v4055
        %vm4063 = vmor %vm4061, %vm4062
        %v4064 = vsel %vm4063, %v4055, %v4060
        %v4065 = vrsqrt.pop %v2994
        %v4066 = vmul.f32 %v4065, %v2994
        %v4067 = vmul.f32 %v4066, %v4065
        %v4068 = vmul.f32 0.5, %v4067
        %v4069 = vsub.f32 1.5, %v4068
        %v4070 = vmul.f32 %v4065, %v4069
        %vm4071 = vweird.f32 %v2994
        %vm4072 = vweird.f32 %v4065
        %vm4073 = vmor %vm4071, %vm4072
        %v4074 = vsel %vm4073, %v4065, %v4070
        %v4075 = vmul.f32 %v2779, %v3004
        %v4076 = vmul.f32 %v2780, %v3014
        %v4077 = vmul.f32 %v2781, %v3024
        %v4078 = vmul.f32 %v2782, %v3034
        %v4079 = vmul.f32 %v2783, %v3044
        %v4080 = vmul.f32 %v2784, %v3054
        %v4081 = vmul.f32 %v2785, %v3064
        %v4082 = vmul.f32 %v2786, %v3074
        %v4083 = vmul.f32 %v2787, %v3084
        %v4084 = vmul.f32 %v2788, %v3094
        %v4085 = vmul.f32 %v2789, %v3104
        %v4086 = vmul.f32 %v2790, %v3114
        %v4087 = vmul.f32 %v2791, %v3124
        %v4088 = vmul.f32 %v2792, %v3134
        %v4089 = vmul.f32 %v2793, %v3144
        %v4090 = vmul.f32 %v2794, %v3154
        %v4091 = vmul.f32 %v2795, %v3164
        %v4092 = vmul.f32 %v2796, %v3174
        %v4093 = vmul.f32 %v2797, %v3184
        %v4094 = vmul.f32 %v2798, %v3194
        %v4095 = vmul.f32 %v2799, %v3204
        %v4096 = vmul.f32 %v2800, %v3214
        %v4097 = vmul.f32 %v2801, %v3224
        %v4098 = vmul.f32 %v2802, %v3234
        %v4099 = vmul.f32 %v2803, %v3244
        %v4100 = vmul.f32 %v2804, %v3254
        %v4101 = vmul.f32 %v2805, %v3264
        %v4102 = vmul.f32 %v2806, %v3274
        %v4103 = vmul.f32 %v2807, %v3284
        %v4104 = vmul.f32 %v2808, %v3294
        %v4105 = vmul.f32 %v2809, %v3304
        %v4106 = vmul.f32 %v2810, %v3314
        %v4107 = vmul.f32 %v2811, %v3324
        %v4108 = vmul.f32 %v2812, %v3334
        %v4109 = vmul.f32 %v2813, %v3344
        %v4110 = vmul.f32 %v2814, %v3354
        %v4111 = vmul.f32 %v2815, %v3364
        %v4112 = vmul.f32 %v2816, %v3374
        %v4113 = vmul.f32 %v2817, %v3384
        %v4114 = vmul.f32 %v2818, %v3394
        %v4115 = vmul.f32 %v2819, %v3404
        %v4116 = vmul.f32 %v2820, %v3414
        %v4117 = vmul.f32 %v2821, %v3424
        %v4118 = vmul.f32 %v2822, %v3434
        %v4119 = vmul.f32 %v2823, %v3444
        %v4120 = vmul.f32 %v2824, %v3454
        %v4121 = vmul.f32 %v2825, %v3464
        %v4122 = vmul.f32 %v2826, %v3474
        %v4123 = vmul.f32 %v2827, %v3484
        %v4124 = vmul.f32 %v2828, %v3494
        %v4125 = vmul.f32 %v2829, %v3504
        %v4126 = vmul.f32 %v2830, %v3514
        %v4127 = vmul.f32 %v2831, %v3524
        %v4128 = vmul.f32 %v2832, %v3534
        %v4129 = vmul.f32 %v2833, %v3544
        %v4130 = vmul.f32 %v2834, %v3554
        %v4131 = vmul.f32 %v2835, %v3564
        %v4132 = vmul.f32 %v2836, %v3574
        %v4133 = vmul.f32 %v2837, %v3584
        %v4134 = vmul.f32 %v2838, %v3594
        %v4135 = vmul.f32 %v2839, %v3604
        %v4136 = vmul.f32 %v2840, %v3614
        %v4137 = vmul.f32 %v2841, %v3624
        %v4138 = vmul.f32 %v2842, %v3634
        %v4139 = vmul.f32 %v2843, %v3644
        %v4140 = vmul.f32 %v2844, %v3654
        %v4141 = vmul.f32 %v2845, %v3664
        %v4142 = vmul.f32 %v2846, %v3674
        %v4143 = vmul.f32 %v2847, %v3684
        %v4144 = vmul.f32 %v2848, %v3694
        %v4145 = vmul.f32 %v2849, %v3704
        %v4146 = vmul.f32 %v2850, %v3714
        %v4147 = vmul.f32 %v2851, %v3724
        %v4148 = vmul.f32 %v2852, %v3734
        %v4149 = vmul.f32 %v2853, %v3744
        %v4150 = vmul.f32 %v2854, %v3754
        %v4151 = vmul.f32 %v2855, %v3764
        %v4152 = vmul.f32 %v2856, %v3774
        %v4153 = vmul.f32 %v2857, %v3784
        %v4154 = vmul.f32 %v2858, %v3794
        %v4155 = vmul.f32 %v2859, %v3804
        %v4156 = vmul.f32 %v2860, %v3814
        %v4157 = vmul.f32 %v2861, %v3824
        %v4158 = vmul.f32 %v2862, %v3834
        %v4159 = vmul.f32 %v2863, %v3844
        %v4160 = vmul.f32 %v2864, %v3854
        %v4161 = vmul.f32 %v2865, %v3864
        %v4162 = vmul.f32 %v2866, %v3874
        %v4163 = vmul.f32 %v2867, %v3884
        %v4164 = vmul.f32 %v2868, %v3894
        %v4165 = vmul.f32 %v2869, %v3904
        %v4166 = vmul.f32 %v2870, %v3914
        %v4167 = vmul.f32 %v2871, %v3924
        %v4168 = vmul.f32 %v2872, %v3934
        %v4169 = vmul.f32 %v2873, %v3944
        %v4170 = vmul.f32 %v2874, %v3954
        %v4171 = vmul.f32 %v2875, %v3964
        %v4172 = vmul.f32 %v2876, %v3974
        %v4173 = vmul.f32 %v2877, %v3984
        %v4174 = vmul.f32 %v2878, %v3994
        %v4175 = vmul.f32 %v2879, %v4004
        %v4176 = vmul.f32 %v2880, %v4014
        %v4177 = vmul.f32 %v2881, %v4024
        %v4178 = vmul.f32 %v2882, %v4034
        %v4179 = vmul.f32 %v2883, %v4044
        %v4180 = vmul.f32 %v2884, %v4054
        %v4181 = vmul.f32 %v2885, %v4064
        %v4182 = vmul.f32 %v2886, %v4074
        %4183 = vst.msk [vmem:[%s277] sm:$0xff] %vm1155, %v4075
        %4184 = vst.msk [vmem:[%s277 + $0x8] sm:$0xff] %vm1155, %v4076
        %4185 = vst.msk [vmem:[%s277 + $0x10] sm:$0xff] %vm1155, %v4077
        %4186 = vst.msk [vmem:[%s277 + $0x18] sm:$0xff] %vm1155, %v4078
        %4187 = vst.msk [vmem:[%s277 + $0x20] sm:$0xff] %vm1155, %v4079
        %4188 = vst.msk [vmem:[%s277 + $0x28] sm:$0xff] %vm1155, %v4080
        %4189 = vst.msk [vmem:[%s277 + $0x30] sm:$0xff] %vm1155, %v4081
        %4190 = vst.msk [vmem:[%s277 + $0x38] sm:$0xff] %vm1155, %v4082
        %4191 = vst.msk [vmem:[%s277 + $0x40] sm:$0xff] %vm1155, %v4083
        %4192 = vst.msk [vmem:[%s277 + $0x48] sm:$0xff] %vm1155, %v4084
        %4193 = vst.msk [vmem:[%s277 + $0x50] sm:$0xff] %vm1155, %v4085
        %4194 = vst.msk [vmem:[%s277 + $0x58] sm:$0xff] %vm1155, %v4086
        %4195 = vst.msk [vmem:[%s277 + $0x60] sm:$0xff] %vm1155, %v4087
        %4196 = vst.msk [vmem:[%s277 + $0x68] sm:$0xff] %vm1155, %v4088
        %4197 = vst.msk [vmem:[%s277 + $0x70] sm:$0xff] %vm1155, %v4089
        %4198 = vst.msk [vmem:[%s277 + $0x78] sm:$0xff] %vm1155, %v4090
        %4199 = vst.msk [vmem:[%s277 + $0x80] sm:$0xff] %vm1155, %v4091
        %4200 = vst.msk [vmem:[%s277 + $0x88] sm:$0xff] %vm1155, %v4092
        %4201 = vst.msk [vmem:[%s277 + $0x90] sm:$0xff] %vm1155, %v4093
        %4202 = vst.msk [vmem:[%s277 + $0x98] sm:$0xff] %vm1155, %v4094
        %4203 = vst.msk [vmem:[%s277 + $0xa0] sm:$0xff] %vm1155, %v4095
        %4204 = vst.msk [vmem:[%s277 + $0xa8] sm:$0xff] %vm1155, %v4096
        %4205 = vst.msk [vmem:[%s277 + $0xb0] sm:$0xff] %vm1155, %v4097
        %4206 = vst.msk [vmem:[%s277 + $0xb8] sm:$0xff] %vm1155, %v4098
        %4207 = vst.msk [vmem:[%s277 + $0xc0] sm:$0xff] %vm1155, %v4099
        %4208 = vst.msk [vmem:[%s277 + $0xc8] sm:$0xff] %vm1155, %v4100
        %4209 = vst.msk [vmem:[%s277 + $0xd0] sm:$0xff] %vm1155, %v4101
        %4210 = vst.msk [vmem:[%s277 + $0xd8] sm:$0xff] %vm1155, %v4102
        %4211 = vst.msk [vmem:[%s277 + $0xe0] sm:$0xff] %vm1155, %v4103
        %4212 = vst.msk [vmem:[%s277 + $0xe8] sm:$0xff] %vm1155, %v4104
        %4213 = vst.msk [vmem:[%s277 + $0xf0] sm:$0xff] %vm1155, %v4105
        %4214 = vst.msk [vmem:[%s277 + $0xf8] sm:$0xff] %vm1155, %v4106
        %4215 = vst.msk [vmem:[%s277 + $0x100] sm:$0xff] %vm1155, %v4107
        %4216 = vst.msk [vmem:[%s277 + $0x108] sm:$0xff] %vm1155, %v4108
        %4217 = vst.msk [vmem:[%s277 + $0x110] sm:$0xff] %vm1155, %v4109
        %4218 = vst.msk [vmem:[%s277 + $0x118] sm:$0xff] %vm1155, %v4110
        %4219 = vst.msk [vmem:[%s277 + $0x120] sm:$0xff] %vm1155, %v4111
        %4220 = vst.msk [vmem:[%s277 + $0x128] sm:$0xff] %vm1155, %v4112
        %4221 = vst.msk [vmem:[%s277 + $0x130] sm:$0xff] %vm1155, %v4113
        %4222 = vst.msk [vmem:[%s277 + $0x138] sm:$0xff] %vm1155, %v4114
        %4223 = vst.msk [vmem:[%s277 + $0x140] sm:$0xff] %vm1155, %v4115
        %4224 = vst.msk [vmem:[%s277 + $0x148] sm:$0xff] %vm1155, %v4116
        %4225 = vst.msk [vmem:[%s277 + $0x150] sm:$0xff] %vm1155, %v4117
        %4226 = vst.msk [vmem:[%s277 + $0x158] sm:$0xff] %vm1155, %v4118
        %4227 = vst.msk [vmem:[%s277 + $0x160] sm:$0xff] %vm1155, %v4119
        %4228 = vst.msk [vmem:[%s277 + $0x168] sm:$0xff] %vm1155, %v4120
        %4229 = vst.msk [vmem:[%s277 + $0x170] sm:$0xff] %vm1155, %v4121
        %4230 = vst.msk [vmem:[%s277 + $0x178] sm:$0xff] %vm1155, %v4122
        %4231 = vst.msk [vmem:[%s277 + $0x180] sm:$0xff] %vm1155, %v4123
        %4232 = vst.msk [vmem:[%s277 + $0x188] sm:$0xff] %vm1155, %v4124
        %4233 = vst.msk [vmem:[%s277 + $0x190] sm:$0xff] %vm1155, %v4125
        %4234 = vst.msk [vmem:[%s277 + $0x198] sm:$0xff] %vm1155, %v4126
        %4235 = vst.msk [vmem:[%s277 + $0x1a0] sm:$0xff] %vm1155, %v4127
        %4236 = vst.msk [vmem:[%s277 + $0x1a8] sm:$0xff] %vm1155, %v4128
        %4237 = vst.msk [vmem:[%s277 + $0x1b0] sm:$0xff] %vm1155, %v4129
        %4238 = vst.msk [vmem:[%s277 + $0x1b8] sm:$0xff] %vm1155, %v4130
        %4239 = vst.msk [vmem:[%s277 + $0x1c0] sm:$0xff] %vm1155, %v4131
        %4240 = vst.msk [vmem:[%s277 + $0x1c8] sm:$0xff] %vm1155, %v4132
        %4241 = vst.msk [vmem:[%s277 + $0x1d0] sm:$0xff] %vm1155, %v4133
        %4242 = vst.msk [vmem:[%s277 + $0x1d8] sm:$0xff] %vm1155, %v4134
        %4243 = vst.msk [vmem:[%s277 + $0x1e0] sm:$0xff] %vm1155, %v4135
        %4244 = vst.msk [vmem:[%s277 + $0x1e8] sm:$0xff] %vm1155, %v4136
        %4245 = vst.msk [vmem:[%s277 + $0x1f0] sm:$0xff] %vm1155, %v4137
        %4246 = vst.msk [vmem:[%s277 + $0x1f8] sm:$0xff] %vm1155, %v4138
        %4247 = vst.msk [vmem:[%s277 + $0x200] sm:$0xff] %vm1155, %v4139
        %4248 = vst.msk [vmem:[%s277 + $0x208] sm:$0xff] %vm1155, %v4140
        %4249 = vst.msk [vmem:[%s277 + $0x210] sm:$0xff] %vm1155, %v4141
        %4250 = vst.msk [vmem:[%s277 + $0x218] sm:$0xff] %vm1155, %v4142
        %4251 = vst.msk [vmem:[%s277 + $0x220] sm:$0xff] %vm1155, %v4143
        %4252 = vst.msk [vmem:[%s277 + $0x228] sm:$0xff] %vm1155, %v4144
        %4253 = vst.msk [vmem:[%s277 + $0x230] sm:$0xff] %vm1155, %v4145
        %4254 = vst.msk [vmem:[%s277 + $0x238] sm:$0xff] %vm1155, %v4146
        %4255 = vst.msk [vmem:[%s277 + $0x240] sm:$0xff] %vm1155, %v4147
        %4256 = vst.msk [vmem:[%s277 + $0x248] sm:$0xff] %vm1155, %v4148
        %4257 = vst.msk [vmem:[%s277 + $0x250] sm:$0xff] %vm1155, %v4149
        %4258 = vst.msk [vmem:[%s277 + $0x258] sm:$0xff] %vm1155, %v4150
        %4259 = vst.msk [vmem:[%s277 + $0x260] sm:$0xff] %vm1155, %v4151
        %4260 = vst.msk [vmem:[%s277 + $0x268] sm:$0xff] %vm1155, %v4152
        %4261 = vst.msk [vmem:[%s277 + $0x270] sm:$0xff] %vm1155, %v4153
        %4262 = vst.msk [vmem:[%s277 + $0x278] sm:$0xff] %vm1155, %v4154
        %4263 = vst.msk [vmem:[%s277 + $0x280] sm:$0xff] %vm1155, %v4155
        %4264 = vst.msk [vmem:[%s277 + $0x288] sm:$0xff] %vm1155, %v4156
        %4265 = vst.msk [vmem:[%s277 + $0x290] sm:$0xff] %vm1155, %v4157
        %4266 = vst.msk [vmem:[%s277 + $0x298] sm:$0xff] %vm1155, %v4158
        %4267 = vst.msk [vmem:[%s277 + $0x2a0] sm:$0xff] %vm1155, %v4159
        %4268 = vst.msk [vmem:[%s277 + $0x2a8] sm:$0xff] %vm1155, %v4160
        %4269 = vst.msk [vmem:[%s277 + $0x2b0] sm:$0xff] %vm1155, %v4161
        %4270 = vst.msk [vmem:[%s277 + $0x2b8] sm:$0xff] %vm1155, %v4162
        %4271 = vst.msk [vmem:[%s277 + $0x2c0] sm:$0xff] %vm1155, %v4163
        %4272 = vst.msk [vmem:[%s277 + $0x2c8] sm:$0xff] %vm1155, %v4164
        %4273 = vst.msk [vmem:[%s277 + $0x2d0] sm:$0xff] %vm1155, %v4165
        %4274 = vst.msk [vmem:[%s277 + $0x2d8] sm:$0xff] %vm1155, %v4166
        %4275 = vst.msk [vmem:[%s277 + $0x2e0] sm:$0xff] %vm1155, %v4167
        %4276 = vst.msk [vmem:[%s277 + $0x2e8] sm:$0xff] %vm1155, %v4168
        %4277 = vst.msk [vmem:[%s277 + $0x2f0] sm:$0xff] %vm1155, %v4169
        %4278 = vst.msk [vmem:[%s277 + $0x2f8] sm:$0xff] %vm1155, %v4170
        %4279 = vst.msk [vmem:[%s277 + $0x300] sm:$0xff] %vm1155, %v4171
        %4280 = vst.msk [vmem:[%s277 + $0x308] sm:$0xff] %vm1155, %v4172
        %4281 = vst.msk [vmem:[%s277 + $0x310] sm:$0xff] %vm1155, %v4173
        %4282 = vst.msk [vmem:[%s277 + $0x318] sm:$0xff] %vm1155, %v4174
        %4283 = vst.msk [vmem:[%s277 + $0x320] sm:$0xff] %vm1155, %v4175
        %4284 = vst.msk [vmem:[%s277 + $0x328] sm:$0xff] %vm1155, %v4176
        %4285 = vst.msk [vmem:[%s277 + $0x330] sm:$0xff] %vm1155, %v4177
        %4286 = vst.msk [vmem:[%s277 + $0x338] sm:$0xff] %vm1155, %v4178
        %4287 = vst.msk [vmem:[%s277 + $0x340] sm:$0xff] %vm1155, %v4179
        %4288 = vst.msk [vmem:[%s277 + $0x348] sm:$0xff] %vm1155, %v4180
        %4289 = vst.msk [vmem:[%s277 + $0x350] sm:$0xff] %vm1155, %v4181
        %4290 = vst.msk [vmem:[%s277 + $0x358] sm:$0xff] %vm1155, %v4182
        %v4291 = vld [vmem:[%s271] sm:$0xff]
        %v4292 = vld [vmem:[%s271 + $0x8] sm:$0xff]
        %v4293 = vld [vmem:[%s271 + $0x10] sm:$0xff]
        %v4294 = vld [vmem:[%s271 + $0x18] sm:$0xff]
        %v4295 = vld [vmem:[%s271 + $0x20] sm:$0xff]
        %v4296 = vld [vmem:[%s271 + $0x28] sm:$0xff]
        %v4297 = vld [vmem:[%s271 + $0x30] sm:$0xff]
        %v4298 = vld [vmem:[%s271 + $0x38] sm:$0xff]
        %v4299 = vld [vmem:[%s271 + $0x40] sm:$0xff]
        %v4300 = vld [vmem:[%s271 + $0x48] sm:$0xff]
        %v4301 = vld [vmem:[%s271 + $0x50] sm:$0xff]
        %v4302 = vld [vmem:[%s271 + $0x58] sm:$0xff]
        %v4303 = vld [vmem:[%s271 + $0x60] sm:$0xff]
        %v4304 = vld [vmem:[%s271 + $0x68] sm:$0xff]
        %v4305 = vld [vmem:[%s271 + $0x70] sm:$0xff]
        %v4306 = vld [vmem:[%s271 + $0x78] sm:$0xff]
        %v4307 = vld [vmem:[%s271 + $0x80] sm:$0xff]
        %v4308 = vld [vmem:[%s271 + $0x88] sm:$0xff]
        %v4309 = vld [vmem:[%s271 + $0x90] sm:$0xff]
        %v4310 = vld [vmem:[%s271 + $0x98] sm:$0xff]
        %v4311 = vld [vmem:[%s271 + $0xa0] sm:$0xff]
        %v4312 = vld [vmem:[%s271 + $0xa8] sm:$0xff]
        %v4313 = vld [vmem:[%s271 + $0xb0] sm:$0xff]
        %v4314 = vld [vmem:[%s271 + $0xb8] sm:$0xff]
        %v4315 = vld [vmem:[%s271 + $0xc0] sm:$0xff]
        %v4316 = vld [vmem:[%s271 + $0xc8] sm:$0xff]
        %v4317 = vld [vmem:[%s271 + $0xd0] sm:$0xff]
        %v4318 = vld [vmem:[%s271 + $0xd8] sm:$0xff]
        %v4319 = vld [vmem:[%s271 + $0xe0] sm:$0xff]
        %v4320 = vld [vmem:[%s271 + $0xe8] sm:$0xff]
        %v4321 = vld [vmem:[%s271 + $0xf0] sm:$0xff]
        %v4322 = vld [vmem:[%s271 + $0xf8] sm:$0xff]
        %v4323 = vld [vmem:[%s271 + $0x100] sm:$0xff]
        %v4324 = vld [vmem:[%s271 + $0x108] sm:$0xff]
        %v4325 = vld [vmem:[%s271 + $0x110] sm:$0xff]
        %v4326 = vld [vmem:[%s271 + $0x118] sm:$0xff]
        %v4327 = vld [vmem:[%s271 + $0x120] sm:$0xff]
        %v4328 = vld [vmem:[%s271 + $0x128] sm:$0xff]
        %v4329 = vld [vmem:[%s271 + $0x130] sm:$0xff]
        %v4330 = vld [vmem:[%s271 + $0x138] sm:$0xff]
        %v4331 = vld [vmem:[%s271 + $0x140] sm:$0xff]
        %v4332 = vld [vmem:[%s271 + $0x148] sm:$0xff]
        %v4333 = vld [vmem:[%s271 + $0x150] sm:$0xff]
        %v4334 = vld [vmem:[%s271 + $0x158] sm:$0xff]
        %v4335 = vld [vmem:[%s271 + $0x160] sm:$0xff]
        %v4336 = vld [vmem:[%s271 + $0x168] sm:$0xff]
        %v4337 = vld [vmem:[%s271 + $0x170] sm:$0xff]
        %v4338 = vld [vmem:[%s271 + $0x178] sm:$0xff]
        %v4339 = vld [vmem:[%s271 + $0x180] sm:$0xff]
        %v4340 = vld [vmem:[%s271 + $0x188] sm:$0xff]
        %v4341 = vld [vmem:[%s271 + $0x190] sm:$0xff]
        %v4342 = vld [vmem:[%s271 + $0x198] sm:$0xff]
        %v4343 = vld [vmem:[%s271 + $0x1a0] sm:$0xff]
        %v4344 = vld [vmem:[%s271 + $0x1a8] sm:$0xff]
        %v4345 = vld [vmem:[%s271 + $0x1b0] sm:$0xff]
        %v4346 = vld [vmem:[%s271 + $0x1b8] sm:$0xff]
        %v4347 = vld [vmem:[%s271 + $0x1c0] sm:$0xff]
        %v4348 = vld [vmem:[%s271 + $0x1c8] sm:$0xff]
        %v4349 = vld [vmem:[%s271 + $0x1d0] sm:$0xff]
        %v4350 = vld [vmem:[%s271 + $0x1d8] sm:$0xff]
        %v4351 = vld [vmem:[%s271 + $0x1e0] sm:$0xff]
        %v4352 = vld [vmem:[%s271 + $0x1e8] sm:$0xff]
        %v4353 = vld [vmem:[%s271 + $0x1f0] sm:$0xff]
        %v4354 = vld [vmem:[%s271 + $0x1f8] sm:$0xff]
        %v4355 = vld [vmem:[%s271 + $0x200] sm:$0xff]
        %v4356 = vld [vmem:[%s271 + $0x208] sm:$0xff]
        %v4357 = vld [vmem:[%s271 + $0x210] sm:$0xff]
        %v4358 = vld [vmem:[%s271 + $0x218] sm:$0xff]
        %v4359 = vld [vmem:[%s271 + $0x220] sm:$0xff]
        %v4360 = vld [vmem:[%s271 + $0x228] sm:$0xff]
        %v4361 = vld [vmem:[%s271 + $0x230] sm:$0xff]
        %v4362 = vld [vmem:[%s271 + $0x238] sm:$0xff]
        %v4363 = vld [vmem:[%s271 + $0x240] sm:$0xff]
        %v4364 = vld [vmem:[%s271 + $0x248] sm:$0xff]
        %v4365 = vld [vmem:[%s271 + $0x250] sm:$0xff]
        %v4366 = vld [vmem:[%s271 + $0x258] sm:$0xff]
        %v4367 = vld [vmem:[%s271 + $0x260] sm:$0xff]
        %v4368 = vld [vmem:[%s271 + $0x268] sm:$0xff]
        %v4369 = vld [vmem:[%s271 + $0x270] sm:$0xff]
        %v4370 = vld [vmem:[%s271 + $0x278] sm:$0xff]
        %v4371 = vld [vmem:[%s271 + $0x280] sm:$0xff]
        %v4372 = vld [vmem:[%s271 + $0x288] sm:$0xff]
        %v4373 = vld [vmem:[%s271 + $0x290] sm:$0xff]
        %v4374 = vld [vmem:[%s271 + $0x298] sm:$0xff]
        %v4375 = vld [vmem:[%s271 + $0x2a0] sm:$0xff]
        %v4376 = vld [vmem:[%s271 + $0x2a8] sm:$0xff]
        %v4377 = vld [vmem:[%s271 + $0x2b0] sm:$0xff]
        %v4378 = vld [vmem:[%s271 + $0x2b8] sm:$0xff]
        %v4379 = vld [vmem:[%s271 + $0x2c0] sm:$0xff]
        %v4380 = vld [vmem:[%s271 + $0x2c8] sm:$0xff]
        %v4381 = vld [vmem:[%s271 + $0x2d0] sm:$0xff]
        %v4382 = vld [vmem:[%s271 + $0x2d8] sm:$0xff]
        %v4383 = vld [vmem:[%s271 + $0x2e0] sm:$0xff]
        %v4384 = vld [vmem:[%s271 + $0x2e8] sm:$0xff]
        %v4385 = vld [vmem:[%s271 + $0x2f0] sm:$0xff]
        %v4386 = vld [vmem:[%s271 + $0x2f8] sm:$0xff]
        %v4387 = vld [vmem:[%s271 + $0x300] sm:$0xff]
        %v4388 = vld [vmem:[%s271 + $0x308] sm:$0xff]
        %v4389 = vld [vmem:[%s271 + $0x310] sm:$0xff]
        %v4390 = vld [vmem:[%s271 + $0x318] sm:$0xff]
        %v4391 = vld [vmem:[%s271 + $0x320] sm:$0xff]
        %v4392 = vld [vmem:[%s271 + $0x328] sm:$0xff]
        %v4393 = vld [vmem:[%s271 + $0x330] sm:$0xff]
        %v4394 = vld [vmem:[%s271 + $0x338] sm:$0xff]
        %v4395 = vld [vmem:[%s271 + $0x340] sm:$0xff]
        %v4396 = vld [vmem:[%s271 + $0x348] sm:$0xff]
        %v4397 = vld [vmem:[%s271 + $0x350] sm:$0xff]
        %v4398 = vld [vmem:[%s271 + $0x358] sm:$0xff]
        %v4399 = vmul.f32 %v2131, %v4075
        %v4400 = vmul.f32 %v2132, %v4076
        %v4401 = vmul.f32 %v2133, %v4077
        %v4402 = vmul.f32 %v2134, %v4078
        %v4403 = vmul.f32 %v2135, %v4079
        %v4404 = vmul.f32 %v2136, %v4080
        %v4405 = vmul.f32 %v2137, %v4081
        %v4406 = vmul.f32 %v2138, %v4082
        %v4407 = vmul.f32 %v2139, %v4083
        %v4408 = vmul.f32 %v2140, %v4084
        %v4409 = vmul.f32 %v2141, %v4085
        %v4410 = vmul.f32 %v2142, %v4086
        %v4411 = vmul.f32 %v2143, %v4087
        %v4412 = vmul.f32 %v2144, %v4088
        %v4413 = vmul.f32 %v2145, %v4089
        %v4414 = vmul.f32 %v2146, %v4090
        %v4415 = vmul.f32 %v2147, %v4091
        %v4416 = vmul.f32 %v2148, %v4092
        %v4417 = vmul.f32 %v2149, %v4093
        %v4418 = vmul.f32 %v2150, %v4094
        %v4419 = vmul.f32 %v2151, %v4095
        %v4420 = vmul.f32 %v2152, %v4096
        %v4421 = vmul.f32 %v2153, %v4097
        %v4422 = vmul.f32 %v2154, %v4098
        %v4423 = vmul.f32 %v2155, %v4099
        %v4424 = vmul.f32 %v2156, %v4100
        %v4425 = vmul.f32 %v2157, %v4101
        %v4426 = vmul.f32 %v2158, %v4102
        %v4427 = vmul.f32 %v2159, %v4103
        %v4428 = vmul.f32 %v2160, %v4104
        %v4429 = vmul.f32 %v2161, %v4105
        %v4430 = vmul.f32 %v2162, %v4106
        %v4431 = vmul.f32 %v2163, %v4107
        %v4432 = vmul.f32 %v2164, %v4108
        %v4433 = vmul.f32 %v2165, %v4109
        %v4434 = vmul.f32 %v2166, %v4110
        %v4435 = vmul.f32 %v2167, %v4111
        %v4436 = vmul.f32 %v2168, %v4112
        %v4437 = vmul.f32 %v2169, %v4113
        %v4438 = vmul.f32 %v2170, %v4114
        %v4439 = vmul.f32 %v2171, %v4115
        %v4440 = vmul.f32 %v2172, %v4116
        %v4441 = vmul.f32 %v2173, %v4117
        %v4442 = vmul.f32 %v2174, %v4118
        %v4443 = vmul.f32 %v2175, %v4119
        %v4444 = vmul.f32 %v2176, %v4120
        %v4445 = vmul.f32 %v2177, %v4121
        %v4446 = vmul.f32 %v2178, %v4122
        %v4447 = vmul.f32 %v2179, %v4123
        %v4448 = vmul.f32 %v2180, %v4124
        %v4449 = vmul.f32 %v2181, %v4125
        %v4450 = vmul.f32 %v2182, %v4126
        %v4451 = vmul.f32 %v2183, %v4127
        %v4452 = vmul.f32 %v2184, %v4128
        %v4453 = vmul.f32 %v2185, %v4129
        %v4454 = vmul.f32 %v2186, %v4130
        %v4455 = vmul.f32 %v2187, %v4131
        %v4456 = vmul.f32 %v2188, %v4132
        %v4457 = vmul.f32 %v2189, %v4133
        %v4458 = vmul.f32 %v2190, %v4134
        %v4459 = vmul.f32 %v2191, %v4135
        %v4460 = vmul.f32 %v2192, %v4136
        %v4461 = vmul.f32 %v2193, %v4137
        %v4462 = vmul.f32 %v2194, %v4138
        %v4463 = vmul.f32 %v2195, %v4139
        %v4464 = vmul.f32 %v2196, %v4140
        %v4465 = vmul.f32 %v2197, %v4141
        %v4466 = vmul.f32 %v2198, %v4142
        %v4467 = vmul.f32 %v2199, %v4143
        %v4468 = vmul.f32 %v2200, %v4144
        %v4469 = vmul.f32 %v2201, %v4145
        %v4470 = vmul.f32 %v2202, %v4146
        %v4471 = vmul.f32 %v2203, %v4147
        %v4472 = vmul.f32 %v2204, %v4148
        %v4473 = vmul.f32 %v2205, %v4149
        %v4474 = vmul.f32 %v2206, %v4150
        %v4475 = vmul.f32 %v2207, %v4151
        %v4476 = vmul.f32 %v2208, %v4152
        %v4477 = vmul.f32 %v2209, %v4153
        %v4478 = vmul.f32 %v2210, %v4154
        %v4479 = vmul.f32 %v2211, %v4155
        %v4480 = vmul.f32 %v2212, %v4156
        %v4481 = vmul.f32 %v2213, %v4157
        %v4482 = vmul.f32 %v2214, %v4158
        %v4483 = vmul.f32 %v2215, %v4159
        %v4484 = vmul.f32 %v2216, %v4160
        %v4485 = vmul.f32 %v2217, %v4161
        %v4486 = vmul.f32 %v2218, %v4162
        %v4487 = vmul.f32 %v2219, %v4163
        %v4488 = vmul.f32 %v2220, %v4164
        %v4489 = vmul.f32 %v2221, %v4165
        %v4490 = vmul.f32 %v2222, %v4166
        %v4491 = vmul.f32 %v2223, %v4167
        %v4492 = vmul.f32 %v2224, %v4168
        %v4493 = vmul.f32 %v2225, %v4169
        %v4494 = vmul.f32 %v2226, %v4170
        %v4495 = vmul.f32 %v2227, %v4171
        %v4496 = vmul.f32 %v2228, %v4172
        %v4497 = vmul.f32 %v2229, %v4173
        %v4498 = vmul.f32 %v2230, %v4174
        %v4499 = vmul.f32 %v2231, %v4175
        %v4500 = vmul.f32 %v2232, %v4176
        %v4501 = vmul.f32 %v2233, %v4177
        %v4502 = vmul.f32 %v2234, %v4178
        %v4503 = vmul.f32 %v2235, %v4179
        %v4504 = vmul.f32 %v2236, %v4180
        %v4505 = vmul.f32 %v2237, %v4181
        %v4506 = vmul.f32 %v2238, %v4182
        %v4507 = vsub.f32 %v4291, %v4399
        %v4508 = vsub.f32 %v4292, %v4400
        %v4509 = vsub.f32 %v4293, %v4401
        %v4510 = vsub.f32 %v4294, %v4402
        %v4511 = vsub.f32 %v4295, %v4403
        %v4512 = vsub.f32 %v4296, %v4404
        %v4513 = vsub.f32 %v4297, %v4405
        %v4514 = vsub.f32 %v4298, %v4406
        %v4515 = vsub.f32 %v4299, %v4407
        %v4516 = vsub.f32 %v4300, %v4408
        %v4517 = vsub.f32 %v4301, %v4409
        %v4518 = vsub.f32 %v4302, %v4410
        %v4519 = vsub.f32 %v4303, %v4411
        %v4520 = vsub.f32 %v4304, %v4412
        %v4521 = vsub.f32 %v4305, %v4413
        %v4522 = vsub.f32 %v4306, %v4414
        %v4523 = vsub.f32 %v4307, %v4415
        %v4524 = vsub.f32 %v4308, %v4416
        %v4525 = vsub.f32 %v4309, %v4417
        %v4526 = vsub.f32 %v4310, %v4418
        %v4527 = vsub.f32 %v4311, %v4419
        %v4528 = vsub.f32 %v4312, %v4420
        %v4529 = vsub.f32 %v4313, %v4421
        %v4530 = vsub.f32 %v4314, %v4422
        %v4531 = vsub.f32 %v4315, %v4423
        %v4532 = vsub.f32 %v4316, %v4424
        %v4533 = vsub.f32 %v4317, %v4425
        %v4534 = vsub.f32 %v4318, %v4426
        %v4535 = vsub.f32 %v4319, %v4427
        %v4536 = vsub.f32 %v4320, %v4428
        %v4537 = vsub.f32 %v4321, %v4429
        %v4538 = vsub.f32 %v4322, %v4430
        %v4539 = vsub.f32 %v4323, %v4431
        %v4540 = vsub.f32 %v4324, %v4432
        %v4541 = vsub.f32 %v4325, %v4433
        %v4542 = vsub.f32 %v4326, %v4434
        %v4543 = vsub.f32 %v4327, %v4435
        %v4544 = vsub.f32 %v4328, %v4436
        %v4545 = vsub.f32 %v4329, %v4437
        %v4546 = vsub.f32 %v4330, %v4438
        %v4547 = vsub.f32 %v4331, %v4439
        %v4548 = vsub.f32 %v4332, %v4440
        %v4549 = vsub.f32 %v4333, %v4441
        %v4550 = vsub.f32 %v4334, %v4442
        %v4551 = vsub.f32 %v4335, %v4443
        %v4552 = vsub.f32 %v4336, %v4444
        %v4553 = vsub.f32 %v4337, %v4445
        %v4554 = vsub.f32 %v4338, %v4446
        %v4555 = vsub.f32 %v4339, %v4447
        %v4556 = vsub.f32 %v4340, %v4448
        %v4557 = vsub.f32 %v4341, %v4449
        %v4558 = vsub.f32 %v4342, %v4450
        %v4559 = vsub.f32 %v4343, %v4451
        %v4560 = vsub.f32 %v4344, %v4452
        %v4561 = vsub.f32 %v4345, %v4453
        %v4562 = vsub.f32 %v4346, %v4454
        %v4563 = vsub.f32 %v4347, %v4455
        %v4564 = vsub.f32 %v4348, %v4456
        %v4565 = vsub.f32 %v4349, %v4457
        %v4566 = vsub.f32 %v4350, %v4458
        %v4567 = vsub.f32 %v4351, %v4459
        %v4568 = vsub.f32 %v4352, %v4460
        %v4569 = vsub.f32 %v4353, %v4461
        %v4570 = vsub.f32 %v4354, %v4462
        %v4571 = vsub.f32 %v4355, %v4463
        %v4572 = vsub.f32 %v4356, %v4464
        %v4573 = vsub.f32 %v4357, %v4465
        %v4574 = vsub.f32 %v4358, %v4466
        %v4575 = vsub.f32 %v4359, %v4467
        %v4576 = vsub.f32 %v4360, %v4468
        %v4577 = vsub.f32 %v4361, %v4469
        %v4578 = vsub.f32 %v4362, %v4470
        %v4579 = vsub.f32 %v4363, %v4471
        %v4580 = vsub.f32 %v4364, %v4472
        %v4581 = vsub.f32 %v4365, %v4473
        %v4582 = vsub.f32 %v4366, %v4474
        %v4583 = vsub.f32 %v4367, %v4475
        %v4584 = vsub.f32 %v4368, %v4476
        %v4585 = vsub.f32 %v4369, %v4477
        %v4586 = vsub.f32 %v4370, %v4478
        %v4587 = vsub.f32 %v4371, %v4479
        %v4588 = vsub.f32 %v4372, %v4480
        %v4589 = vsub.f32 %v4373, %v4481
        %v4590 = vsub.f32 %v4374, %v4482
        %v4591 = vsub.f32 %v4375, %v4483
        %v4592 = vsub.f32 %v4376, %v4484
        %v4593 = vsub.f32 %v4377, %v4485
        %v4594 = vsub.f32 %v4378, %v4486
        %v4595 = vsub.f32 %v4379, %v4487
        %v4596 = vsub.f32 %v4380, %v4488
        %v4597 = vsub.f32 %v4381, %v4489
        %v4598 = vsub.f32 %v4382, %v4490
        %v4599 = vsub.f32 %v4383, %v4491
        %v4600 = vsub.f32 %v4384, %v4492
        %v4601 = vsub.f32 %v4385, %v4493
        %v4602 = vsub.f32 %v4386, %v4494
        %v4603 = vsub.f32 %v4387, %v4495
        %v4604 = vsub.f32 %v4388, %v4496
        %v4605 = vsub.f32 %v4389, %v4497
        %v4606 = vsub.f32 %v4390, %v4498
        %v4607 = vsub.f32 %v4391, %v4499
        %v4608 = vsub.f32 %v4392, %v4500
        %v4609 = vsub.f32 %v4393, %v4501
        %v4610 = vsub.f32 %v4394, %v4502
        %v4611 = vsub.f32 %v4395, %v4503
        %v4612 = vsub.f32 %v4396, %v4504
        %v4613 = vsub.f32 %v4397, %v4505
        %v4614 = vsub.f32 %v4398, %v4506
        %4615 = vst.msk [vmem:[%s283] sm:$0xff] %vm1155, %v4507
        %4616 = vst.msk [vmem:[%s283 + $0x8] sm:$0xff] %vm1155, %v4508
        %4617 = vst.msk [vmem:[%s283 + $0x10] sm:$0xff] %vm1155, %v4509
        %4618 = vst.msk [vmem:[%s283 + $0x18] sm:$0xff] %vm1155, %v4510
        %4619 = vst.msk [vmem:[%s283 + $0x20] sm:$0xff] %vm1155, %v4511
        %4620 = vst.msk [vmem:[%s283 + $0x28] sm:$0xff] %vm1155, %v4512
        %4621 = vst.msk [vmem:[%s283 + $0x30] sm:$0xff] %vm1155, %v4513
        %4622 = vst.msk [vmem:[%s283 + $0x38] sm:$0xff] %vm1155, %v4514
        %4623 = vst.msk [vmem:[%s283 + $0x40] sm:$0xff] %vm1155, %v4515
        %4624 = vst.msk [vmem:[%s283 + $0x48] sm:$0xff] %vm1155, %v4516
        %4625 = vst.msk [vmem:[%s283 + $0x50] sm:$0xff] %vm1155, %v4517
        %4626 = vst.msk [vmem:[%s283 + $0x58] sm:$0xff] %vm1155, %v4518
        %4627 = vst.msk [vmem:[%s283 + $0x60] sm:$0xff] %vm1155, %v4519
        %4628 = vst.msk [vmem:[%s283 + $0x68] sm:$0xff] %vm1155, %v4520
        %4629 = vst.msk [vmem:[%s283 + $0x70] sm:$0xff] %vm1155, %v4521
        %4630 = vst.msk [vmem:[%s283 + $0x78] sm:$0xff] %vm1155, %v4522
        %4631 = vst.msk [vmem:[%s283 + $0x80] sm:$0xff] %vm1155, %v4523
        %4632 = vst.msk [vmem:[%s283 + $0x88] sm:$0xff] %vm1155, %v4524
        %4633 = vst.msk [vmem:[%s283 + $0x90] sm:$0xff] %vm1155, %v4525
        %4634 = vst.msk [vmem:[%s283 + $0x98] sm:$0xff] %vm1155, %v4526
        %4635 = vst.msk [vmem:[%s283 + $0xa0] sm:$0xff] %vm1155, %v4527
        %4636 = vst.msk [vmem:[%s283 + $0xa8] sm:$0xff] %vm1155, %v4528
        %4637 = vst.msk [vmem:[%s283 + $0xb0] sm:$0xff] %vm1155, %v4529
        %4638 = vst.msk [vmem:[%s283 + $0xb8] sm:$0xff] %vm1155, %v4530
        %4639 = vst.msk [vmem:[%s283 + $0xc0] sm:$0xff] %vm1155, %v4531
        %4640 = vst.msk [vmem:[%s283 + $0xc8] sm:$0xff] %vm1155, %v4532
        %4641 = vst.msk [vmem:[%s283 + $0xd0] sm:$0xff] %vm1155, %v4533
        %4642 = vst.msk [vmem:[%s283 + $0xd8] sm:$0xff] %vm1155, %v4534
        %4643 = vst.msk [vmem:[%s283 + $0xe0] sm:$0xff] %vm1155, %v4535
        %4644 = vst.msk [vmem:[%s283 + $0xe8] sm:$0xff] %vm1155, %v4536
        %4645 = vst.msk [vmem:[%s283 + $0xf0] sm:$0xff] %vm1155, %v4537
        %4646 = vst.msk [vmem:[%s283 + $0xf8] sm:$0xff] %vm1155, %v4538
        %4647 = vst.msk [vmem:[%s283 + $0x100] sm:$0xff] %vm1155, %v4539
        %4648 = vst.msk [vmem:[%s283 + $0x108] sm:$0xff] %vm1155, %v4540
        %4649 = vst.msk [vmem:[%s283 + $0x110] sm:$0xff] %vm1155, %v4541
        %4650 = vst.msk [vmem:[%s283 + $0x118] sm:$0xff] %vm1155, %v4542
        %4651 = vst.msk [vmem:[%s283 + $0x120] sm:$0xff] %vm1155, %v4543
        %4652 = vst.msk [vmem:[%s283 + $0x128] sm:$0xff] %vm1155, %v4544
        %4653 = vst.msk [vmem:[%s283 + $0x130] sm:$0xff] %vm1155, %v4545
        %4654 = vst.msk [vmem:[%s283 + $0x138] sm:$0xff] %vm1155, %v4546
        %4655 = vst.msk [vmem:[%s283 + $0x140] sm:$0xff] %vm1155, %v4547
        %4656 = vst.msk [vmem:[%s283 + $0x148] sm:$0xff] %vm1155, %v4548
        %4657 = vst.msk [vmem:[%s283 + $0x150] sm:$0xff] %vm1155, %v4549
        %4658 = vst.msk [vmem:[%s283 + $0x158] sm:$0xff] %vm1155, %v4550
        %4659 = vst.msk [vmem:[%s283 + $0x160] sm:$0xff] %vm1155, %v4551
        %4660 = vst.msk [vmem:[%s283 + $0x168] sm:$0xff] %vm1155, %v4552
        %4661 = vst.msk [vmem:[%s283 + $0x170] sm:$0xff] %vm1155, %v4553
        %4662 = vst.msk [vmem:[%s283 + $0x178] sm:$0xff] %vm1155, %v4554
        %4663 = vst.msk [vmem:[%s283 + $0x180] sm:$0xff] %vm1155, %v4555
        %4664 = vst.msk [vmem:[%s283 + $0x188] sm:$0xff] %vm1155, %v4556
        %4665 = vst.msk [vmem:[%s283 + $0x190] sm:$0xff] %vm1155, %v4557
        %4666 = vst.msk [vmem:[%s283 + $0x198] sm:$0xff] %vm1155, %v4558
        %4667 = vst.msk [vmem:[%s283 + $0x1a0] sm:$0xff] %vm1155, %v4559
        %4668 = vst.msk [vmem:[%s283 + $0x1a8] sm:$0xff] %vm1155, %v4560
        %4669 = vst.msk [vmem:[%s283 + $0x1b0] sm:$0xff] %vm1155, %v4561
        %4670 = vst.msk [vmem:[%s283 + $0x1b8] sm:$0xff] %vm1155, %v4562
        %4671 = vst.msk [vmem:[%s283 + $0x1c0] sm:$0xff] %vm1155, %v4563
        %4672 = vst.msk [vmem:[%s283 + $0x1c8] sm:$0xff] %vm1155, %v4564
        %4673 = vst.msk [vmem:[%s283 + $0x1d0] sm:$0xff] %vm1155, %v4565
        %4674 = vst.msk [vmem:[%s283 + $0x1d8] sm:$0xff] %vm1155, %v4566
        %4675 = vst.msk [vmem:[%s283 + $0x1e0] sm:$0xff] %vm1155, %v4567
        %4676 = vst.msk [vmem:[%s283 + $0x1e8] sm:$0xff] %vm1155, %v4568
        %4677 = vst.msk [vmem:[%s283 + $0x1f0] sm:$0xff] %vm1155, %v4569
        %4678 = vst.msk [vmem:[%s283 + $0x1f8] sm:$0xff] %vm1155, %v4570
        %4679 = vst.msk [vmem:[%s283 + $0x200] sm:$0xff] %vm1155, %v4571
        %4680 = vst.msk [vmem:[%s283 + $0x208] sm:$0xff] %vm1155, %v4572
        %4681 = vst.msk [vmem:[%s283 + $0x210] sm:$0xff] %vm1155, %v4573
        %4682 = vst.msk [vmem:[%s283 + $0x218] sm:$0xff] %vm1155, %v4574
        %4683 = vst.msk [vmem:[%s283 + $0x220] sm:$0xff] %vm1155, %v4575
        %4684 = vst.msk [vmem:[%s283 + $0x228] sm:$0xff] %vm1155, %v4576
        %4685 = vst.msk [vmem:[%s283 + $0x230] sm:$0xff] %vm1155, %v4577
        %4686 = vst.msk [vmem:[%s283 + $0x238] sm:$0xff] %vm1155, %v4578
        %4687 = vst.msk [vmem:[%s283 + $0x240] sm:$0xff] %vm1155, %v4579
        %4688 = vst.msk [vmem:[%s283 + $0x248] sm:$0xff] %vm1155, %v4580
        %4689 = vst.msk [vmem:[%s283 + $0x250] sm:$0xff] %vm1155, %v4581
        %4690 = vst.msk [vmem:[%s283 + $0x258] sm:$0xff] %vm1155, %v4582
        %4691 = vst.msk [vmem:[%s283 + $0x260] sm:$0xff] %vm1155, %v4583
        %4692 = vst.msk [vmem:[%s283 + $0x268] sm:$0xff] %vm1155, %v4584
        %4693 = vst.msk [vmem:[%s283 + $0x270] sm:$0xff] %vm1155, %v4585
        %4694 = vst.msk [vmem:[%s283 + $0x278] sm:$0xff] %vm1155, %v4586
        %4695 = vst.msk [vmem:[%s283 + $0x280] sm:$0xff] %vm1155, %v4587
        %4696 = vst.msk [vmem:[%s283 + $0x288] sm:$0xff] %vm1155, %v4588
        %4697 = vst.msk [vmem:[%s283 + $0x290] sm:$0xff] %vm1155, %v4589
        %4698 = vst.msk [vmem:[%s283 + $0x298] sm:$0xff] %vm1155, %v4590
        %4699 = vst.msk [vmem:[%s283 + $0x2a0] sm:$0xff] %vm1155, %v4591
        %4700 = vst.msk [vmem:[%s283 + $0x2a8] sm:$0xff] %vm1155, %v4592
        %4701 = vst.msk [vmem:[%s283 + $0x2b0] sm:$0xff] %vm1155, %v4593
        %4702 = vst.msk [vmem:[%s283 + $0x2b8] sm:$0xff] %vm1155, %v4594
        %4703 = vst.msk [vmem:[%s283 + $0x2c0] sm:$0xff] %vm1155, %v4595
        %4704 = vst.msk [vmem:[%s283 + $0x2c8] sm:$0xff] %vm1155, %v4596
        %4705 = vst.msk [vmem:[%s283 + $0x2d0] sm:$0xff] %vm1155, %v4597
        %4706 = vst.msk [vmem:[%s283 + $0x2d8] sm:$0xff] %vm1155, %v4598
        %4707 = vst.msk [vmem:[%s283 + $0x2e0] sm:$0xff] %vm1155, %v4599
        %4708 = vst.msk [vmem:[%s283 + $0x2e8] sm:$0xff] %vm1155, %v4600
        %4709 = vst.msk [vmem:[%s283 + $0x2f0] sm:$0xff] %vm1155, %v4601
        %4710 = vst.msk [vmem:[%s283 + $0x2f8] sm:$0xff] %vm1155, %v4602
        %4711 = vst.msk [vmem:[%s283 + $0x300] sm:$0xff] %vm1155, %v4603
        %4712 = vst.msk [vmem:[%s283 + $0x308] sm:$0xff] %vm1155, %v4604
        %4713 = vst.msk [vmem:[%s283 + $0x310] sm:$0xff] %vm1155, %v4605
        %4714 = vst.msk [vmem:[%s283 + $0x318] sm:$0xff] %vm1155, %v4606
        %4715 = vst.msk [vmem:[%s283 + $0x320] sm:$0xff] %vm1155, %v4607
        %4716 = vst.msk [vmem:[%s283 + $0x328] sm:$0xff] %vm1155, %v4608
        %4717 = vst.msk [vmem:[%s283 + $0x330] sm:$0xff] %vm1155, %v4609
        %4718 = vst.msk [vmem:[%s283 + $0x338] sm:$0xff] %vm1155, %v4610
        %4719 = vst.msk [vmem:[%s283 + $0x340] sm:$0xff] %vm1155, %v4611
        %4720 = vst.msk [vmem:[%s283 + $0x348] sm:$0xff] %vm1155, %v4612
        %4721 = vst.msk [vmem:[%s283 + $0x350] sm:$0xff] %vm1155, %v4613
        %4722 = vst.msk [vmem:[%s283 + $0x358] sm:$0xff] %vm1155, %v4614
      $region40: #{tpu_custom_call.1} parent=31 // pred_fallthru
        _
      %s4723 = smul.u32 108, %s20
      %p4724 = scmp.lt.s32.totalorder %s4723, 431
      %s4725 = scalar_select %p4724, %s4723, 431
      %s4726 = smul.addr %s4725, 8
      %s4727 = scalar_lea.vmem %s3, %s4726
      %s4728 = smul.u32 108, %s20
      %p4729 = scmp.lt.s32.totalorder %s4728, 431
      %s4730 = scalar_select %p4729, %s4728, 431
      %s4731 = smul.addr %s4730, 8
      %s4732 = scalar_lea.vmem %s4, %s4731
      // Predicated region
      $region41: #{tpu_custom_call.1} parent=31 // pred_check
        %p4733 = pneg %p126
      $region42: #{tpu_custom_call.1} parent=31 // pred_check_branch
        %4735 = sbr.rel (%p4733) target = $region44
      $region43: #{tpu_custom_call.1} parent=31 // pred_region
        %s4736 = smul.u32 108, %s20
      $region44: #{tpu_custom_call.1} parent=31 // pred_fallthru
        _
      // Predicated region
      $region45: #{tpu_custom_call.1} parent=31 // pred_check
        %p4737 = pneg %p152
      $region46: #{tpu_custom_call.1} parent=31 // pred_check_branch
        %4739 = sbr.rel (%p4737) target = $region48
      $region47: #{tpu_custom_call.1} parent=31 // pred_region
        %s4740 = smul.u32 108, %s20
      $region48: #{tpu_custom_call.1} parent=31 // pred_fallthru
        _
    $region32: #{tpu_custom_call.1} parent=5 // pred_fallthru
      _
    %p4741 = scmp.le.s32.totalorder 2, %s11
    // Predicated region
    $region49: #{tpu_custom_call.1} parent=5 // pred_check
      %p4742 = pneg %p4741
    $region50: #{tpu_custom_call.1} parent=5 // pred_check_branch
      %4744 = sbr.rel (%p4742) target = $region52
    $region51: #{tpu_custom_call.1} parent=5 // pred_region
      %s4745 = ssub.s32 %s11, 2
      // Predicated region
      $region53: #{tpu_custom_call.1} parent=51 // pred_check
        %p4746 = pneg %p132
      $region54: #{tpu_custom_call.1} parent=51 // pred_check_branch
        %4748 = sbr.rel (%p4746) target = $region56
      $region55: #{tpu_custom_call.1} parent=51 // pred_region
        %s4749 = smul.u32 108, %s22
        %p4750 = scmp.lt.s32.totalorder %s4749, 431
        %s4751 = scalar_select %p4750, %s4749, 431
        %s4752 = smul.addr %s4751, 8
        %s4753 = scalar_lea.vmem %s3, %s4752
      $region56: #{tpu_custom_call.1} parent=51 // pred_fallthru
        _
      // Predicated region
      $region57: #{tpu_custom_call.1} parent=51 // pred_check
        %p4754 = pneg %p158
      $region58: #{tpu_custom_call.1} parent=51 // pred_check_branch
        %4756 = sbr.rel (%p4754) target = $region60
      $region59: #{tpu_custom_call.1} parent=51 // pred_region
        %s4757 = smul.u32 108, %s22
        %p4758 = scmp.lt.s32.totalorder %s4757, 431
        %s4759 = scalar_select %p4758, %s4757, 431
        %s4760 = smul.addr %s4759, 8
        %s4761 = scalar_lea.vmem %s4, %s4760
      $region60: #{tpu_custom_call.1} parent=51 // pred_fallthru
        _
    $region52: #{tpu_custom_call.1} parent=5 // pred_fallthru
      _
  $region6: #{tpu_custom_call.1} parent=0 // loop_footer
    %s15 = sadd.s32 1, %s11
  $region7: #{tpu_custom_call.1} parent=0 // loop_footer_branch
    %10 = sbr.rel target = $region3
  $region8: #{tpu_custom_call.1} parent=0 // loop_exit
    _

</llo_original>
